<compile_context>
chip_gen: v7x
topology: tpu7x:2x2x1
jax: 0.10.0
libtpu: 0.0.40
codegen_flags: <defaults>
</compile_context>

<pallas_src>
import jax
import jax.numpy as jnp
from jax import lax
from jax.experimental import pallas as pl
from jax.experimental.pallas import tpu as pltpu

INPUT_DIM = 6
D_MODEL = 32
NLAYERS = 2
LN_EPS = 1e-5
GP = 128              # gate pitch: r/z/n gate columns start at 0 / 128 / 256
G3 = 3 * GP
SUB = 8               # sublane quantum (batch padded to a multiple of this)


def _gru_encoder_kernel(x_ref, wih0_ref, whh0_ref, wih1_ref, whh1_ref,
                        misc_ref, out_ref, gi0_ref):
    """2-layer GRU over the full sequence + LayerNorm, single invocation.

    x_ref   : (T*Bp, D_in)  time-major input, batch padded to Bp (multiple of 8)
    wih0_ref: (D_in, 3*GP)  layer-0 input weights, gate-pitch-128 layout (r,z,n)
    whh0_ref: (H, 3*GP)     layer-0 hidden weights
    wih1_ref: (H, 3*GP)     layer-1 input weights
    whh1_ref: (H, 3*GP)     layer-1 hidden weights
    misc_ref: (8, 3*GP)     packed biases + LayerNorm params (see pack_params)
    out_ref : (Bp, H)
    gi0_ref : (T*Bp, 3*GP)  VMEM scratch for the hoisted layer-0 projection
    """
    BP = out_ref.shape[0]
    H = out_ref.shape[1]
    T = x_ref.shape[0] // BP

    # Loop-invariant parameters: read once, broadcast explicitly (hoisted so
    # no broadcast_in_dim is re-emitted inside the unrolled loop).
    b1c = jnp.broadcast_to(misc_ref[1:2, :], (BP, G3))      # layer-1 gi bias
    bhn0 = jnp.broadcast_to(misc_ref[2:3, 0:H], (BP, H))    # layer-0 b_hn
    bhn1 = jnp.broadcast_to(misc_ref[3:4, 0:H], (BP, H))    # layer-1 b_hn

    # Hoisted layer-0 input projection: one matmul for every timestep at once.
    # misc row 0 holds b_ih0 with the r/z parts of b_hh0 pre-folded in.
    gi0_ref[...] = (jnp.dot(x_ref[...], wih0_ref[...],
                            preferred_element_type=jnp.float32)
                    + misc_ref[0:1, :])

    h0 = jnp.zeros((BP, H), jnp.float32)
    h1 = jnp.zeros((BP, H), jnp.float32)

    # Fully-unrolled static time loop: hidden states stay in vregs.
    for t in range(T):
        gi0_t = gi0_ref[t * BP:(t + 1) * BP, :]              # tile-aligned

        # ---- layer 0 GRU cell ----
        gh0 = jnp.dot(h0, whh0_ref[...], preferred_element_type=jnp.float32)
        s0 = gi0_t + gh0
        r0 = jax.nn.sigmoid(s0[:, 0:H])
        z0 = jax.nn.sigmoid(s0[:, GP:GP + H])
        n0 = jnp.tanh(gi0_t[:, 2 * GP:2 * GP + H]
                      + r0 * (gh0[:, 2 * GP:2 * GP + H] + bhn0))
        h0 = n0 + z0 * (h0 - n0)                             # (1-z)*n + z*h

        # ---- layer 1 GRU cell (inter-layer dropout identity in eval) ----
        gi1 = jnp.dot(h0, wih1_ref[...],
                      preferred_element_type=jnp.float32) + b1c
        gh1 = jnp.dot(h1, whh1_ref[...], preferred_element_type=jnp.float32)
        s1 = gi1 + gh1
        r1 = jax.nn.sigmoid(s1[:, 0:H])
        z1 = jax.nn.sigmoid(s1[:, GP:GP + H])
        n1 = jnp.tanh(gi1[:, 2 * GP:2 * GP + H]
                      + r1 * (gh1[:, 2 * GP:2 * GP + H] + bhn1))
        h1 = n1 + z1 * (h1 - n1)

    # ---- LayerNorm over the feature axis of the last top-layer hidden ----
    gamma = misc_ref[4:5, 0:H]
    beta = misc_ref[5:6, 0:H]
    mean = jnp.mean(h1, axis=-1, keepdims=True)
    var = jnp.mean(jnp.square(h1 - mean), axis=-1, keepdims=True)
    x_hat = (h1 - mean) * lax.rsqrt(var + LN_EPS)
    out_ref[...] = x_hat * gamma + beta


def _pack_gates_mat(w, gp=GP, h=D_MODEL):
    """(in, 3H), gate order (r,z,n) -> (in, 3*gp) with gate g at columns g*gp."""
    inp = w.shape[0]
    out = jnp.zeros((inp, 3 * gp), jnp.float32)
    for g in range(3):
        out = out.at[:, g * gp:g * gp + h].set(w[:, g * h:(g + 1) * h])
    return out


def _pack_gates_vec(v, gp=GP, h=D_MODEL):
    """(3H,) gate order (r,z,n) -> (3*gp,) with gate g at columns g*gp."""
    out = jnp.zeros((3 * gp,), jnp.float32)
    for g in range(3):
        out = out.at[g * gp:g * gp + h].set(v[g * h:(g + 1) * h])
    return out


def pack_params(params):
    """Repack logical GRU/LayerNorm params into the kernel's padded layout."""
    H = D_MODEL
    bih0 = params["bih0"].reshape(-1)
    bhh0 = params["bhh0"].reshape(-1)
    bih1 = params["bih1"].reshape(-1)
    bhh1 = params["bhh1"].reshape(-1)

    # Input-side combined biases: r/z gates get b_ih + b_hh folded together;
    # the n gate keeps only b_in (b_hn stays inside the r*(...) term).
    b0 = jnp.concatenate([bih0[:2 * H] + bhh0[:2 * H], bih0[2 * H:]])
    b1 = jnp.concatenate([bih1[:2 * H] + bhh1[:2 * H], bih1[2 * H:]])

    misc = jnp.zeros((SUB, G3), jnp.float32)
    misc = misc.at[0, :].set(_pack_gates_vec(b0))       # layer-0 gi bias
    misc = misc.at[1, :].set(_pack_gates_vec(b1))       # layer-1 gi bias
    misc = misc.at[2, 0:H].set(bhh0[2 * H:])            # layer-0 b_hn
    misc = misc.at[3, 0:H].set(bhh1[2 * H:])            # layer-1 b_hn
    misc = misc.at[4, 0:H].set(params["gamma"].reshape(-1))
    misc = misc.at[5, 0:H].set(params["beta"].reshape(-1))

    return {
        "wih0": _pack_gates_mat(params["wih0"]),
        "whh0": _pack_gates_mat(params["whh0"]),
        "wih1": _pack_gates_mat(params["wih1"]),
        "whh1": _pack_gates_mat(params["whh1"]),
        "misc": misc,
    }


def gru_encoder(x, params):
    """x: (B, T, input_dim) float32 -> (B, d_model) float32."""
    B, T, D_in = x.shape
    H = D_MODEL
    BP = ((B + SUB - 1) // SUB) * SUB     # pad batch to the 8-sublane quantum

    pk = pack_params(params)

    x_tm = jnp.transpose(x, (1, 0, 2)).astype(jnp.float32)   # (T, B, D_in)
    x_tm = jnp.pad(x_tm, ((0, 0), (0, BP - B), (0, 0)))      # (T, BP, D_in)
    x2d = x_tm.reshape(T * BP, D_in)                         # time-major rows

    vmem = pl.BlockSpec(memory_space=pltpu.MemorySpace.VMEM)
    out = pl.pallas_call(
        _gru_encoder_kernel,
        out_shape=jax.ShapeDtypeStruct((BP, H), jnp.float32),
        in_specs=[vmem] * 6,
        out_specs=vmem,
        scratch_shapes=[pltpu.VMEM((T * BP, G3), jnp.float32)],
    )(x2d, pk["wih0"], pk["whh0"], pk["wih1"], pk["whh1"], pk["misc"])
    return out[:B]


def init_params(key, input_dim=INPUT_DIM, d_model=D_MODEL):
    """Deterministic synthetic init mirroring torch.nn.GRU shapes.

    torch weight_ih_l{k}: (3H, in) / weight_hh_l{k}: (3H, H), uniform(-k, k)
    with k = 1/sqrt(H). Stored pre-transposed to (in, 3H) / (H, 3H), gate
    order (r, z, n). LayerNorm: gamma=1, beta=0.
    """
    H = d_model
    k = 1.0 / jnp.sqrt(jnp.float32(H))
    keys = jax.random.split(key, 8)

    def u(kk, shape):
        return jax.random.uniform(kk, shape, jnp.float32, minval=-k, maxval=k)

    return {
        # layer 0: input_dim -> H
        "wih0": u(keys[0], (input_dim, 3 * H)),
        "whh0": u(keys[1], (H, 3 * H)),
        "bih0": u(keys[2], (1, 3 * H)),
        "bhh0": u(keys[3], (1, 3 * H)),
        # layer 1: H -> H
        "wih1": u(keys[4], (H, 3 * H)),
        "whh1": u(keys[5], (H, 3 * H)),
        "bih1": u(keys[6], (1, 3 * H)),
        "bhh1": u(keys[7], (1, 3 * H)),
        # LayerNorm
        "gamma": jnp.ones((1, H), jnp.float32),
        "beta": jnp.zeros((1, H), jnp.float32),
    }


def gru_encoder_ref(x, params):
    """Pure-JAX reference (torch.nn.GRU semantics) for the correctness check."""
    H = D_MODEL
    B, T, _ = x.shape

    def cell(x_t, h_prev, wih, whh, bih, bhh):
        gi = x_t @ wih + bih
        gh = h_prev @ whh + bhh
        r = jax.nn.sigmoid(gi[:, 0:H] + gh[:, 0:H])
        z = jax.nn.sigmoid(gi[:, H:2 * H] + gh[:, H:2 * H])
        n = jnp.tanh(gi[:, 2 * H:3 * H] + r * gh[:, 2 * H:3 * H])
        return (1.0 - z) * n + z * h_prev

    def step(carry, x_t):
        h0, h1 = carry
        h0 = cell(x_t, h0, params["wih0"], params["whh0"],
                  params["bih0"], params["bhh0"])
        h1 = cell(h0, h1, params["wih1"], params["whh1"],
                  params["bih1"], params["bhh1"])
        return (h0, h1), None

    h0 = jnp.zeros((B, H), jnp.float32)
    h1 = jnp.zeros((B, H), jnp.float32)
    (h0, h1), _ = lax.scan(step, (h0, h1), jnp.transpose(x, (1, 0, 2)))

    mean = jnp.mean(h1, axis=-1, keepdims=True)
    var = jnp.mean(jnp.square(h1 - mean), axis=-1, keepdims=True)
    x_hat = (h1 - mean) / jnp.sqrt(var + LN_EPS)
    return x_hat * params["gamma"] + params["beta"]


if __name__ == "__main__":
    key = jax.random.PRNGKey(0)
    k_param, k_x = jax.random.split(key)

    B, T = 2, 8
    params = init_params(k_param)
    x = jax.random.normal(k_x, (B, T, INPUT_DIM), jnp.float32)

    out = gru_encoder(x, params)
    out = jax.block_until_ready(out)

    ref = jax.block_until_ready(gru_encoder_ref(x, params))
    assert out.shape == (B, D_MODEL)
    assert jnp.allclose(out, ref, rtol=1e-4, atol=1e-4), "kernel != reference"

    print("KERNEL_OK")
</pallas_src>

<mosaic_0001>
module attributes {stable_mosaic.version = 11 : i64} {
  func.func @_gru_encoder_kernel(%arg0: memref<64x6xf32, #tpu.memory_space<vmem>>, %arg1: memref<6x384xf32, #tpu.memory_space<vmem>>, %arg2: memref<32x384xf32, #tpu.memory_space<vmem>>, %arg3: memref<32x384xf32, #tpu.memory_space<vmem>>, %arg4: memref<32x384xf32, #tpu.memory_space<vmem>>, %arg5: memref<8x384xf32, #tpu.memory_space<vmem>>, %arg6: memref<8x32xf32, #tpu.memory_space<vmem>>, %arg7: memref<64x384xf32, #tpu.memory_space<vmem>>) attributes {dimension_semantics = [], scalar_prefetch = 0 : i64, scratch_operands = 1 : i64, tpu.core_type = #tpu.core_type<tc>} {
    %c1 = arith.constant 1 : index
    %c0 = arith.constant 0 : index
    %0 = vector.load %arg5[%c1, %c0] : memref<8x384xf32, #tpu.memory_space<vmem>>, vector<1x384xf32>
    %1 = vector.shape_cast %0 : vector<1x384xf32> to vector<1x384xf32>
    %2 = vector.broadcast %1 : vector<1x384xf32> to vector<8x384xf32>
    %c2 = arith.constant 2 : index
    %c0_0 = arith.constant 0 : index
    %3 = vector.load %arg5[%c2, %c0_0] : memref<8x384xf32, #tpu.memory_space<vmem>>, vector<1x32xf32>
    %4 = vector.shape_cast %3 : vector<1x32xf32> to vector<1x32xf32>
    %5 = vector.broadcast %4 : vector<1x32xf32> to vector<8x32xf32>
    %c3 = arith.constant 3 : index
    %c0_1 = arith.constant 0 : index
    %6 = vector.load %arg5[%c3, %c0_1] : memref<8x384xf32, #tpu.memory_space<vmem>>, vector<1x32xf32>
    %7 = vector.shape_cast %6 : vector<1x32xf32> to vector<1x32xf32>
    %8 = vector.broadcast %7 : vector<1x32xf32> to vector<8x32xf32>
    %c0_2 = arith.constant 0 : index
    %c0_3 = arith.constant 0 : index
    %9 = vector.load %arg0[%c0_2, %c0_3] : memref<64x6xf32, #tpu.memory_space<vmem>>, vector<64x6xf32>
    %c0_4 = arith.constant 0 : index
    %c0_5 = arith.constant 0 : index
    %10 = vector.load %arg1[%c0_4, %c0_5] : memref<6x384xf32, #tpu.memory_space<vmem>>, vector<6x384xf32>
    %cst = arith.constant dense<0.000000e+00> : vector<64x384xf32>
    %11 = tpu.matmul %9, %10, %cst {dimension_numbers = #tpu.dot_dimension_numbers<[1], [0], [0], [1], [0, 0, 1, 1], [], []>} : vector<64x6xf32>, vector<6x384xf32>, vector<64x384xf32> -> vector<64x384xf32>
    %c0_6 = arith.constant 0 : index
    %c0_7 = arith.constant 0 : index
    %12 = vector.load %arg5[%c0_6, %c0_7] : memref<8x384xf32, #tpu.memory_space<vmem>>, vector<1x384xf32>
    %13 = vector.broadcast %12 : vector<1x384xf32> to vector<64x384xf32>
    %14 = arith.addf %11, %13 : vector<64x384xf32>
    %c0_8 = arith.constant 0 : index
    %c0_9 = arith.constant 0 : index
    %15 = vector.load %arg7[%c0_8, %c0_9] : memref<64x384xf32, #tpu.memory_space<vmem>>, vector<64x384xf32>
    tpu.vector_store %arg7[%c0_8, %c0_9], %14 {strides = array<i32>} : memref<64x384xf32, #tpu.memory_space<vmem>>, vector<64x384xf32>,
    %cst_10 = arith.constant 0.000000e+00 : f32
    %16 = vector.broadcast %cst_10 : f32 to vector<8x32xf32>
    %cst_11 = arith.constant 0.000000e+00 : f32
    %17 = vector.broadcast %cst_11 : f32 to vector<8x32xf32>
    %c0_12 = arith.constant 0 : index
    %c0_13 = arith.constant 0 : index
    %18 = vector.load %arg7[%c0_12, %c0_13] : memref<64x384xf32, #tpu.memory_space<vmem>>, vector<8x384xf32>
    %c0_14 = arith.constant 0 : index
    %c0_15 = arith.constant 0 : index
    %19 = vector.load %arg2[%c0_14, %c0_15] : memref<32x384xf32, #tpu.memory_space<vmem>>, vector<32x384xf32>
    %cst_16 = arith.constant dense<0.000000e+00> : vector<8x384xf32>
    %20 = tpu.matmul %16, %19, %cst_16 {dimension_numbers = #tpu.dot_dimension_numbers<[1], [0], [0], [1], [0, 0, 1, 1], [], []>} : vector<8x32xf32>, vector<32x384xf32>, vector<8x384xf32> -> vector<8x384xf32>
    %21 = arith.addf %18, %20 : vector<8x384xf32>
    %22 = vector.extract_strided_slice %21 {offsets = [0, 0], sizes = [8, 32], strides = [1, 1]} : vector<8x384xf32> to vector<8x32xf32>
    %23 = arith.negf %22 : vector<8x32xf32>
    %24 = math.exp %23 : vector<8x32xf32>
    %cst_17 = arith.constant 1.000000e+00 : f32
    %25 = vector.broadcast %cst_17 : f32 to vector<8x32xf32>
    %26 = arith.addf %25, %24 : vector<8x32xf32>
    %27 = arith.divf %25, %26 : vector<8x32xf32>
    %28 = vector.extract_strided_slice %21 {offsets = [0, 128], sizes = [8, 32], strides = [1, 1]} : vector<8x384xf32> to vector<8x32xf32>
    %29 = arith.negf %28 : vector<8x32xf32>
    %30 = math.exp %29 : vector<8x32xf32>
    %cst_18 = arith.constant 1.000000e+00 : f32
    %31 = vector.broadcast %cst_18 : f32 to vector<8x32xf32>
    %32 = arith.addf %31, %30 : vector<8x32xf32>
    %33 = arith.divf %31, %32 : vector<8x32xf32>
    %34 = vector.extract_strided_slice %18 {offsets = [0, 256], sizes = [8, 32], strides = [1, 1]} : vector<8x384xf32> to vector<8x32xf32>
    %35 = vector.extract_strided_slice %20 {offsets = [0, 256], sizes = [8, 32], strides = [1, 1]} : vector<8x384xf32> to vector<8x32xf32>
    %36 = arith.addf %35, %5 : vector<8x32xf32>
    %37 = arith.mulf %27, %36 : vector<8x32xf32>
    %38 = arith.addf %34, %37 : vector<8x32xf32>
    %39 = math.tanh %38 : vector<8x32xf32>
    %40 = arith.subf %16, %39 : vector<8x32xf32>
    %41 = arith.mulf %33, %40 : vector<8x32xf32>
    %42 = arith.addf %39, %41 : vector<8x32xf32>
    %c0_19 = arith.constant 0 : index
    %c0_20 = arith.constant 0 : index
    %43 = vector.load %arg3[%c0_19, %c0_20] : memref<32x384xf32, #tpu.memory_space<vmem>>, vector<32x384xf32>
    %cst_21 = arith.constant dense<0.000000e+00> : vector<8x384xf32>
    %44 = tpu.matmul %42, %43, %cst_21 {dimension_numbers = #tpu.dot_dimension_numbers<[1], [0], [0], [1], [0, 0, 1, 1], [], []>} : vector<8x32xf32>, vector<32x384xf32>, vector<8x384xf32> -> vector<8x384xf32>
    %45 = arith.addf %44, %2 : vector<8x384xf32>
    %c0_22 = arith.constant 0 : index
    %c0_23 = arith.constant 0 : index
    %46 = vector.load %arg4[%c0_22, %c0_23] : memref<32x384xf32, #tpu.memory_space<vmem>>, vector<32x384xf32>
    %cst_24 = arith.constant dense<0.000000e+00> : vector<8x384xf32>
    %47 = tpu.matmul %17, %46, %cst_24 {dimension_numbers = #tpu.dot_dimension_numbers<[1], [0], [0], [1], [0, 0, 1, 1], [], []>} : vector<8x32xf32>, vector<32x384xf32>, vector<8x384xf32> -> vector<8x384xf32>
    %48 = arith.addf %45, %47 : vector<8x384xf32>
    %49 = vector.extract_strided_slice %48 {offsets = [0, 0], sizes = [8, 32], strides = [1, 1]} : vector<8x384xf32> to vector<8x32xf32>
    %50 = arith.negf %49 : vector<8x32xf32>
    %51 = math.exp %50 : vector<8x32xf32>
    %cst_25 = arith.constant 1.000000e+00 : f32
    %52 = vector.broadcast %cst_25 : f32 to vector<8x32xf32>
    %53 = arith.addf %52, %51 : vector<8x32xf32>
    %54 = arith.divf %52, %53 : vector<8x32xf32>
    %55 = vector.extract_strided_slice %48 {offsets = [0, 128], sizes = [8, 32], strides = [1, 1]} : vector<8x384xf32> to vector<8x32xf32>
    %56 = arith.negf %55 : vector<8x32xf32>
    %57 = math.exp %56 : vector<8x32xf32>
    %cst_26 = arith.constant 1.000000e+00 : f32
    %58 = vector.broadcast %cst_26 : f32 to vector<8x32xf32>
    %59 = arith.addf %58, %57 : vector<8x32xf32>
    %60 = arith.divf %58, %59 : vector<8x32xf32>
    %61 = vector.extract_strided_slice %45 {offsets = [0, 256], sizes = [8, 32], strides = [1, 1]} : vector<8x384xf32> to vector<8x32xf32>
    %62 = vector.extract_strided_slice %47 {offsets = [0, 256], sizes = [8, 32], strides = [1, 1]} : vector<8x384xf32> to vector<8x32xf32>
    %63 = arith.addf %62, %8 : vector<8x32xf32>
    %64 = arith.mulf %54, %63 : vector<8x32xf32>
    %65 = arith.addf %61, %64 : vector<8x32xf32>
    %66 = math.tanh %65 : vector<8x32xf32>
    %67 = arith.subf %17, %66 : vector<8x32xf32>
    %68 = arith.mulf %60, %67 : vector<8x32xf32>
    %69 = arith.addf %66, %68 : vector<8x32xf32>
    %c8 = arith.constant 8 : index
    %c0_27 = arith.constant 0 : index
    %70 = vector.load %arg7[%c8, %c0_27] : memref<64x384xf32, #tpu.memory_space<vmem>>, vector<8x384xf32>
    %c0_28 = arith.constant 0 : index
    %c0_29 = arith.constant 0 : index
    %71 = vector.load %arg2[%c0_28, %c0_29] : memref<32x384xf32, #tpu.memory_space<vmem>>, vector<32x384xf32>
    %cst_30 = arith.constant dense<0.000000e+00> : vector<8x384xf32>
    %72 = tpu.matmul %42, %71, %cst_30 {dimension_numbers = #tpu.dot_dimension_numbers<[1], [0], [0], [1], [0, 0, 1, 1], [], []>} : vector<8x32xf32>, vector<32x384xf32>, vector<8x384xf32> -> vector<8x384xf32>
    %73 = arith.addf %70, %72 : vector<8x384xf32>
    %74 = vector.extract_strided_slice %73 {offsets = [0, 0], sizes = [8, 32], strides = [1, 1]} : vector<8x384xf32> to vector<8x32xf32>
    %75 = arith.negf %74 : vector<8x32xf32>
    %76 = math.exp %75 : vector<8x32xf32>
    %cst_31 = arith.constant 1.000000e+00 : f32
    %77 = vector.broadcast %cst_31 : f32 to vector<8x32xf32>
    %78 = arith.addf %77, %76 : vector<8x32xf32>
    %79 = arith.divf %77, %78 : vector<8x32xf32>
    %80 = vector.extract_strided_slice %73 {offsets = [0, 128], sizes = [8, 32], strides = [1, 1]} : vector<8x384xf32> to vector<8x32xf32>
    %81 = arith.negf %80 : vector<8x32xf32>
    %82 = math.exp %81 : vector<8x32xf32>
    %cst_32 = arith.constant 1.000000e+00 : f32
    %83 = vector.broadcast %cst_32 : f32 to vector<8x32xf32>
    %84 = arith.addf %83, %82 : vector<8x32xf32>
    %85 = arith.divf %83, %84 : vector<8x32xf32>
    %86 = vector.extract_strided_slice %70 {offsets = [0, 256], sizes = [8, 32], strides = [1, 1]} : vector<8x384xf32> to vector<8x32xf32>
    %87 = vector.extract_strided_slice %72 {offsets = [0, 256], sizes = [8, 32], strides = [1, 1]} : vector<8x384xf32> to vector<8x32xf32>
    %88 = arith.addf %87, %5 : vector<8x32xf32>
    %89 = arith.mulf %79, %88 : vector<8x32xf32>
    %90 = arith.addf %86, %89 : vector<8x32xf32>
    %91 = math.tanh %90 : vector<8x32xf32>
    %92 = arith.subf %42, %91 : vector<8x32xf32>
    %93 = arith.mulf %85, %92 : vector<8x32xf32>
    %94 = arith.addf %91, %93 : vector<8x32xf32>
    %c0_33 = arith.constant 0 : index
    %c0_34 = arith.constant 0 : index
    %95 = vector.load %arg3[%c0_33, %c0_34] : memref<32x384xf32, #tpu.memory_space<vmem>>, vector<32x384xf32>
    %cst_35 = arith.constant dense<0.000000e+00> : vector<8x384xf32>
    %96 = tpu.matmul %94, %95, %cst_35 {dimension_numbers = #tpu.dot_dimension_numbers<[1], [0], [0], [1], [0, 0, 1, 1], [], []>} : vector<8x32xf32>, vector<32x384xf32>, vector<8x384xf32> -> vector<8x384xf32>
    %97 = arith.addf %96, %2 : vector<8x384xf32>
    %c0_36 = arith.constant 0 : index
    %c0_37 = arith.constant 0 : index
    %98 = vector.load %arg4[%c0_36, %c0_37] : memref<32x384xf32, #tpu.memory_space<vmem>>, vector<32x384xf32>
    %cst_38 = arith.constant dense<0.000000e+00> : vector<8x384xf32>
    %99 = tpu.matmul %69, %98, %cst_38 {dimension_numbers = #tpu.dot_dimension_numbers<[1], [0], [0], [1], [0, 0, 1, 1], [], []>} : vector<8x32xf32>, vector<32x384xf32>, vector<8x384xf32> -> vector<8x384xf32>
    %100 = arith.addf %97, %99 : vector<8x384xf32>
    %101 = vector.extract_strided_slice %100 {offsets = [0, 0], sizes = [8, 32], strides = [1, 1]} : vector<8x384xf32> to vector<8x32xf32>
    %102 = arith.negf %101 : vector<8x32xf32>
    %103 = math.exp %102 : vector<8x32xf32>
    %cst_39 = arith.constant 1.000000e+00 : f32
    %104 = vector.broadcast %cst_39 : f32 to vector<8x32xf32>
    %105 = arith.addf %104, %103 : vector<8x32xf32>
    %106 = arith.divf %104, %105 : vector<8x32xf32>
    %107 = vector.extract_strided_slice %100 {offsets = [0, 128], sizes = [8, 32], strides = [1, 1]} : vector<8x384xf32> to vector<8x32xf32>
    %108 = arith.negf %107 : vector<8x32xf32>
    %109 = math.exp %108 : vector<8x32xf32>
    %cst_40 = arith.constant 1.000000e+00 : f32
    %110 = vector.broadcast %cst_40 : f32 to vector<8x32xf32>
    %111 = arith.addf %110, %109 : vector<8x32xf32>
    %112 = arith.divf %110, %111 : vector<8x32xf32>
    %113 = vector.extract_strided_slice %97 {offsets = [0, 256], sizes = [8, 32], strides = [1, 1]} : vector<8x384xf32> to vector<8x32xf32>
    %114 = vector.extract_strided_slice %99 {offsets = [0, 256], sizes = [8, 32], strides = [1, 1]} : vector<8x384xf32> to vector<8x32xf32>
    %115 = arith.addf %114, %8 : vector<8x32xf32>
    %116 = arith.mulf %106, %115 : vector<8x32xf32>
    %117 = arith.addf %113, %116 : vector<8x32xf32>
    %118 = math.tanh %117 : vector<8x32xf32>
    %119 = arith.subf %69, %118 : vector<8x32xf32>
    %120 = arith.mulf %112, %119 : vector<8x32xf32>
    %121 = arith.addf %118, %120 : vector<8x32xf32>
    %c16 = arith.constant 16 : index
    %c0_41 = arith.constant 0 : index
    %122 = vector.load %arg7[%c16, %c0_41] : memref<64x384xf32, #tpu.memory_space<vmem>>, vector<8x384xf32>
    %c0_42 = arith.constant 0 : index
    %c0_43 = arith.constant 0 : index
    %123 = vector.load %arg2[%c0_42, %c0_43] : memref<32x384xf32, #tpu.memory_space<vmem>>, vector<32x384xf32>
    %cst_44 = arith.constant dense<0.000000e+00> : vector<8x384xf32>
    %124 = tpu.matmul %94, %123, %cst_44 {dimension_numbers = #tpu.dot_dimension_numbers<[1], [0], [0], [1], [0, 0, 1, 1], [], []>} : vector<8x32xf32>, vector<32x384xf32>, vector<8x384xf32> -> vector<8x384xf32>
    %125 = arith.addf %122, %124 : vector<8x384xf32>
    %126 = vector.extract_strided_slice %125 {offsets = [0, 0], sizes = [8, 32], strides = [1, 1]} : vector<8x384xf32> to vector<8x32xf32>
    %127 = arith.negf %126 : vector<8x32xf32>
    %128 = math.exp %127 : vector<8x32xf32>
    %cst_45 = arith.constant 1.000000e+00 : f32
    %129 = vector.broadcast %cst_45 : f32 to vector<8x32xf32>
    %130 = arith.addf %129, %128 : vector<8x32xf32>
    %131 = arith.divf %129, %130 : vector<8x32xf32>
    %132 = vector.extract_strided_slice %125 {offsets = [0, 128], sizes = [8, 32], strides = [1, 1]} : vector<8x384xf32> to vector<8x32xf32>
    %133 = arith.negf %132 : vector<8x32xf32>
    %134 = math.exp %133 : vector<8x32xf32>
    %cst_46 = arith.constant 1.000000e+00 : f32
    %135 = vector.broadcast %cst_46 : f32 to vector<8x32xf32>
    %136 = arith.addf %135, %134 : vector<8x32xf32>
    %137 = arith.divf %135, %136 : vector<8x32xf32>
    %138 = vector.extract_strided_slice %122 {offsets = [0, 256], sizes = [8, 32], strides = [1, 1]} : vector<8x384xf32> to vector<8x32xf32>
    %139 = vector.extract_strided_slice %124 {offsets = [0, 256], sizes = [8, 32], strides = [1, 1]} : vector<8x384xf32> to vector<8x32xf32>
    %140 = arith.addf %139, %5 : vector<8x32xf32>
    %141 = arith.mulf %131, %140 : vector<8x32xf32>
    %142 = arith.addf %138, %141 : vector<8x32xf32>
    %143 = math.tanh %142 : vector<8x32xf32>
    %144 = arith.subf %94, %143 : vector<8x32xf32>
    %145 = arith.mulf %137, %144 : vector<8x32xf32>
    %146 = arith.addf %143, %145 : vector<8x32xf32>
    %c0_47 = arith.constant 0 : index
    %c0_48 = arith.constant 0 : index
    %147 = vector.load %arg3[%c0_47, %c0_48] : memref<32x384xf32, #tpu.memory_space<vmem>>, vector<32x384xf32>
    %cst_49 = arith.constant dense<0.000000e+00> : vector<8x384xf32>
    %148 = tpu.matmul %146, %147, %cst_49 {dimension_numbers = #tpu.dot_dimension_numbers<[1], [0], [0], [1], [0, 0, 1, 1], [], []>} : vector<8x32xf32>, vector<32x384xf32>, vector<8x384xf32> -> vector<8x384xf32>
    %149 = arith.addf %148, %2 : vector<8x384xf32>
    %c0_50 = arith.constant 0 : index
    %c0_51 = arith.constant 0 : index
    %150 = vector.load %arg4[%c0_50, %c0_51] : memref<32x384xf32, #tpu.memory_space<vmem>>, vector<32x384xf32>
    %cst_52 = arith.constant dense<0.000000e+00> : vector<8x384xf32>
    %151 = tpu.matmul %121, %150, %cst_52 {dimension_numbers = #tpu.dot_dimension_numbers<[1], [0], [0], [1], [0, 0, 1, 1], [], []>} : vector<8x32xf32>, vector<32x384xf32>, vector<8x384xf32> -> vector<8x384xf32>
    %152 = arith.addf %149, %151 : vector<8x384xf32>
    %153 = vector.extract_strided_slice %152 {offsets = [0, 0], sizes = [8, 32], strides = [1, 1]} : vector<8x384xf32> to vector<8x32xf32>
    %154 = arith.negf %153 : vector<8x32xf32>
    %155 = math.exp %154 : vector<8x32xf32>
    %cst_53 = arith.constant 1.000000e+00 : f32
    %156 = vector.broadcast %cst_53 : f32 to vector<8x32xf32>
    %157 = arith.addf %156, %155 : vector<8x32xf32>
    %158 = arith.divf %156, %157 : vector<8x32xf32>
    %159 = vector.extract_strided_slice %152 {offsets = [0, 128], sizes = [8, 32], strides = [1, 1]} : vector<8x384xf32> to vector<8x32xf32>
    %160 = arith.negf %159 : vector<8x32xf32>
    %161 = math.exp %160 : vector<8x32xf32>
    %cst_54 = arith.constant 1.000000e+00 : f32
    %162 = vector.broadcast %cst_54 : f32 to vector<8x32xf32>
    %163 = arith.addf %162, %161 : vector<8x32xf32>
    %164 = arith.divf %162, %163 : vector<8x32xf32>
    %165 = vector.extract_strided_slice %149 {offsets = [0, 256], sizes = [8, 32], strides = [1, 1]} : vector<8x384xf32> to vector<8x32xf32>
    %166 = vector.extract_strided_slice %151 {offsets = [0, 256], sizes = [8, 32], strides = [1, 1]} : vector<8x384xf32> to vector<8x32xf32>
    %167 = arith.addf %166, %8 : vector<8x32xf32>
    %168 = arith.mulf %158, %167 : vector<8x32xf32>
    %169 = arith.addf %165, %168 : vector<8x32xf32>
    %170 = math.tanh %169 : vector<8x32xf32>
    %171 = arith.subf %121, %170 : vector<8x32xf32>
    %172 = arith.mulf %164, %171 : vector<8x32xf32>
    %173 = arith.addf %170, %172 : vector<8x32xf32>
    %c24 = arith.constant 24 : index
    %c0_55 = arith.constant 0 : index
    %174 = vector.load %arg7[%c24, %c0_55] : memref<64x384xf32, #tpu.memory_space<vmem>>, vector<8x384xf32>
    %c0_56 = arith.constant 0 : index
    %c0_57 = arith.constant 0 : index
    %175 = vector.load %arg2[%c0_56, %c0_57] : memref<32x384xf32, #tpu.memory_space<vmem>>, vector<32x384xf32>
    %cst_58 = arith.constant dense<0.000000e+00> : vector<8x384xf32>
    %176 = tpu.matmul %146, %175, %cst_58 {dimension_numbers = #tpu.dot_dimension_numbers<[1], [0], [0], [1], [0, 0, 1, 1], [], []>} : vector<8x32xf32>, vector<32x384xf32>, vector<8x384xf32> -> vector<8x384xf32>
    %177 = arith.addf %174, %176 : vector<8x384xf32>
    %178 = vector.extract_strided_slice %177 {offsets = [0, 0], sizes = [8, 32], strides = [1, 1]} : vector<8x384xf32> to vector<8x32xf32>
    %179 = arith.negf %178 : vector<8x32xf32>
    %180 = math.exp %179 : vector<8x32xf32>
    %cst_59 = arith.constant 1.000000e+00 : f32
    %181 = vector.broadcast %cst_59 : f32 to vector<8x32xf32>
    %182 = arith.addf %181, %180 : vector<8x32xf32>
    %183 = arith.divf %181, %182 : vector<8x32xf32>
    %184 = vector.extract_strided_slice %177 {offsets = [0, 128], sizes = [8, 32], strides = [1, 1]} : vector<8x384xf32> to vector<8x32xf32>
    %185 = arith.negf %184 : vector<8x32xf32>
    %186 = math.exp %185 : vector<8x32xf32>
    %cst_60 = arith.constant 1.000000e+00 : f32
    %187 = vector.broadcast %cst_60 : f32 to vector<8x32xf32>
    %188 = arith.addf %187, %186 : vector<8x32xf32>
    %189 = arith.divf %187, %188 : vector<8x32xf32>
    %190 = vector.extract_strided_slice %174 {offsets = [0, 256], sizes = [8, 32], strides = [1, 1]} : vector<8x384xf32> to vector<8x32xf32>
    %191 = vector.extract_strided_slice %176 {offsets = [0, 256], sizes = [8, 32], strides = [1, 1]} : vector<8x384xf32> to vector<8x32xf32>
    %192 = arith.addf %191, %5 : vector<8x32xf32>
    %193 = arith.mulf %183, %192 : vector<8x32xf32>
    %194 = arith.addf %190, %193 : vector<8x32xf32>
    %195 = math.tanh %194 : vector<8x32xf32>
    %196 = arith.subf %146, %195 : vector<8x32xf32>
    %197 = arith.mulf %189, %196 : vector<8x32xf32>
    %198 = arith.addf %195, %197 : vector<8x32xf32>
    %c0_61 = arith.constant 0 : index
    %c0_62 = arith.constant 0 : index
    %199 = vector.load %arg3[%c0_61, %c0_62] : memref<32x384xf32, #tpu.memory_space<vmem>>, vector<32x384xf32>
    %cst_63 = arith.constant dense<0.000000e+00> : vector<8x384xf32>
    %200 = tpu.matmul %198, %199, %cst_63 {dimension_numbers = #tpu.dot_dimension_numbers<[1], [0], [0], [1], [0, 0, 1, 1], [], []>} : vector<8x32xf32>, vector<32x384xf32>, vector<8x384xf32> -> vector<8x384xf32>
    %201 = arith.addf %200, %2 : vector<8x384xf32>
    %c0_64 = arith.constant 0 : index
    %c0_65 = arith.constant 0 : index
    %202 = vector.load %arg4[%c0_64, %c0_65] : memref<32x384xf32, #tpu.memory_space<vmem>>, vector<32x384xf32>
    %cst_66 = arith.constant dense<0.000000e+00> : vector<8x384xf32>
    %203 = tpu.matmul %173, %202, %cst_66 {dimension_numbers = #tpu.dot_dimension_numbers<[1], [0], [0], [1], [0, 0, 1, 1], [], []>} : vector<8x32xf32>, vector<32x384xf32>, vector<8x384xf32> -> vector<8x384xf32>
    %204 = arith.addf %201, %203 : vector<8x384xf32>
    %205 = vector.extract_strided_slice %204 {offsets = [0, 0], sizes = [8, 32], strides = [1, 1]} : vector<8x384xf32> to vector<8x32xf32>
    %206 = arith.negf %205 : vector<8x32xf32>
    %207 = math.exp %206 : vector<8x32xf32>
    %cst_67 = arith.constant 1.000000e+00 : f32
    %208 = vector.broadcast %cst_67 : f32 to vector<8x32xf32>
    %209 = arith.addf %208, %207 : vector<8x32xf32>
    %210 = arith.divf %208, %209 : vector<8x32xf32>
    %211 = vector.extract_strided_slice %204 {offsets = [0, 128], sizes = [8, 32], strides = [1, 1]} : vector<8x384xf32> to vector<8x32xf32>
    %212 = arith.negf %211 : vector<8x32xf32>
    %213 = math.exp %212 : vector<8x32xf32>
    %cst_68 = arith.constant 1.000000e+00 : f32
    %214 = vector.broadcast %cst_68 : f32 to vector<8x32xf32>
    %215 = arith.addf %214, %213 : vector<8x32xf32>
    %216 = arith.divf %214, %215 : vector<8x32xf32>
    %217 = vector.extract_strided_slice %201 {offsets = [0, 256], sizes = [8, 32], strides = [1, 1]} : vector<8x384xf32> to vector<8x32xf32>
    %218 = vector.extract_strided_slice %203 {offsets = [0, 256], sizes = [8, 32], strides = [1, 1]} : vector<8x384xf32> to vector<8x32xf32>
    %219 = arith.addf %218, %8 : vector<8x32xf32>
    %220 = arith.mulf %210, %219 : vector<8x32xf32>
    %221 = arith.addf %217, %220 : vector<8x32xf32>
    %222 = math.tanh %221 : vector<8x32xf32>
    %223 = arith.subf %173, %222 : vector<8x32xf32>
    %224 = arith.mulf %216, %223 : vector<8x32xf32>
    %225 = arith.addf %222, %224 : vector<8x32xf32>
    %c32 = arith.constant 32 : index
    %c0_69 = arith.constant 0 : index
    %226 = vector.load %arg7[%c32, %c0_69] : memref<64x384xf32, #tpu.memory_space<vmem>>, vector<8x384xf32>
    %c0_70 = arith.constant 0 : index
    %c0_71 = arith.constant 0 : index
    %227 = vector.load %arg2[%c0_70, %c0_71] : memref<32x384xf32, #tpu.memory_space<vmem>>, vector<32x384xf32>
    %cst_72 = arith.constant dense<0.000000e+00> : vector<8x384xf32>
    %228 = tpu.matmul %198, %227, %cst_72 {dimension_numbers = #tpu.dot_dimension_numbers<[1], [0], [0], [1], [0, 0, 1, 1], [], []>} : vector<8x32xf32>, vector<32x384xf32>, vector<8x384xf32> -> vector<8x384xf32>
    %229 = arith.addf %226, %228 : vector<8x384xf32>
    %230 = vector.extract_strided_slice %229 {offsets = [0, 0], sizes = [8, 32], strides = [1, 1]} : vector<8x384xf32> to vector<8x32xf32>
    %231 = arith.negf %230 : vector<8x32xf32>
    %232 = math.exp %231 : vector<8x32xf32>
    %cst_73 = arith.constant 1.000000e+00 : f32
    %233 = vector.broadcast %cst_73 : f32 to vector<8x32xf32>
    %234 = arith.addf %233, %232 : vector<8x32xf32>
    %235 = arith.divf %233, %234 : vector<8x32xf32>
    %236 = vector.extract_strided_slice %229 {offsets = [0, 128], sizes = [8, 32], strides = [1, 1]} : vector<8x384xf32> to vector<8x32xf32>
    %237 = arith.negf %236 : vector<8x32xf32>
    %238 = math.exp %237 : vector<8x32xf32>
    %cst_74 = arith.constant 1.000000e+00 : f32
    %239 = vector.broadcast %cst_74 : f32 to vector<8x32xf32>
    %240 = arith.addf %239, %238 : vector<8x32xf32>
    %241 = arith.divf %239, %240 : vector<8x32xf32>
    %242 = vector.extract_strided_slice %226 {offsets = [0, 256], sizes = [8, 32], strides = [1, 1]} : vector<8x384xf32> to vector<8x32xf32>
    %243 = vector.extract_strided_slice %228 {offsets = [0, 256], sizes = [8, 32], strides = [1, 1]} : vector<8x384xf32> to vector<8x32xf32>
    %244 = arith.addf %243, %5 : vector<8x32xf32>
    %245 = arith.mulf %235, %244 : vector<8x32xf32>
    %246 = arith.addf %242, %245 : vector<8x32xf32>
    %247 = math.tanh %246 : vector<8x32xf32>
    %248 = arith.subf %198, %247 : vector<8x32xf32>
    %249 = arith.mulf %241, %248 : vector<8x32xf32>
    %250 = arith.addf %247, %249 : vector<8x32xf32>
    %c0_75 = arith.constant 0 : index
    %c0_76 = arith.constant 0 : index
    %251 = vector.load %arg3[%c0_75, %c0_76] : memref<32x384xf32, #tpu.memory_space<vmem>>, vector<32x384xf32>
    %cst_77 = arith.constant dense<0.000000e+00> : vector<8x384xf32>
    %252 = tpu.matmul %250, %251, %cst_77 {dimension_numbers = #tpu.dot_dimension_numbers<[1], [0], [0], [1], [0, 0, 1, 1], [], []>} : vector<8x32xf32>, vector<32x384xf32>, vector<8x384xf32> -> vector<8x384xf32>
    %253 = arith.addf %252, %2 : vector<8x384xf32>
    %c0_78 = arith.constant 0 : index
    %c0_79 = arith.constant 0 : index
    %254 = vector.load %arg4[%c0_78, %c0_79] : memref<32x384xf32, #tpu.memory_space<vmem>>, vector<32x384xf32>
    %cst_80 = arith.constant dense<0.000000e+00> : vector<8x384xf32>
    %255 = tpu.matmul %225, %254, %cst_80 {dimension_numbers = #tpu.dot_dimension_numbers<[1], [0], [0], [1], [0, 0, 1, 1], [], []>} : vector<8x32xf32>, vector<32x384xf32>, vector<8x384xf32> -> vector<8x384xf32>
    %256 = arith.addf %253, %255 : vector<8x384xf32>
    %257 = vector.extract_strided_slice %256 {offsets = [0, 0], sizes = [8, 32], strides = [1, 1]} : vector<8x384xf32> to vector<8x32xf32>
    %258 = arith.negf %257 : vector<8x32xf32>
    %259 = math.exp %258 : vector<8x32xf32>
    %cst_81 = arith.constant 1.000000e+00 : f32
    %260 = vector.broadcast %cst_81 : f32 to vector<8x32xf32>
    %261 = arith.addf %260, %259 : vector<8x32xf32>
    %262 = arith.divf %260, %261 : vector<8x32xf32>
    %263 = vector.extract_strided_slice %256 {offsets = [0, 128], sizes = [8, 32], strides = [1, 1]} : vector<8x384xf32> to vector<8x32xf32>
    %264 = arith.negf %263 : vector<8x32xf32>
    %265 = math.exp %264 : vector<8x32xf32>
    %cst_82 = arith.constant 1.000000e+00 : f32
    %266 = vector.broadcast %cst_82 : f32 to vector<8x32xf32>
    %267 = arith.addf %266, %265 : vector<8x32xf32>
    %268 = arith.divf %266, %267 : vector<8x32xf32>
    %269 = vector.extract_strided_slice %253 {offsets = [0, 256], sizes = [8, 32], strides = [1, 1]} : vector<8x384xf32> to vector<8x32xf32>
    %270 = vector.extract_strided_slice %255 {offsets = [0, 256], sizes = [8, 32], strides = [1, 1]} : vector<8x384xf32> to vector<8x32xf32>
    %271 = arith.addf %270, %8 : vector<8x32xf32>
    %272 = arith.mulf %262, %271 : vector<8x32xf32>
    %273 = arith.addf %269, %272 : vector<8x32xf32>
    %274 = math.tanh %273 : vector<8x32xf32>
    %275 = arith.subf %225, %274 : vector<8x32xf32>
    %276 = arith.mulf %268, %275 : vector<8x32xf32>
    %277 = arith.addf %274, %276 : vector<8x32xf32>
    %c40 = arith.constant 40 : index
    %c0_83 = arith.constant 0 : index
    %278 = vector.load %arg7[%c40, %c0_83] : memref<64x384xf32, #tpu.memory_space<vmem>>, vector<8x384xf32>
    %c0_84 = arith.constant 0 : index
    %c0_85 = arith.constant 0 : index
    %279 = vector.load %arg2[%c0_84, %c0_85] : memref<32x384xf32, #tpu.memory_space<vmem>>, vector<32x384xf32>
    %cst_86 = arith.constant dense<0.000000e+00> : vector<8x384xf32>
    %280 = tpu.matmul %250, %279, %cst_86 {dimension_numbers = #tpu.dot_dimension_numbers<[1], [0], [0], [1], [0, 0, 1, 1], [], []>} : vector<8x32xf32>, vector<32x384xf32>, vector<8x384xf32> -> vector<8x384xf32>
    %281 = arith.addf %278, %280 : vector<8x384xf32>
    %282 = vector.extract_strided_slice %281 {offsets = [0, 0], sizes = [8, 32], strides = [1, 1]} : vector<8x384xf32> to vector<8x32xf32>
    %283 = arith.negf %282 : vector<8x32xf32>
    %284 = math.exp %283 : vector<8x32xf32>
    %cst_87 = arith.constant 1.000000e+00 : f32
    %285 = vector.broadcast %cst_87 : f32 to vector<8x32xf32>
    %286 = arith.addf %285, %284 : vector<8x32xf32>
    %287 = arith.divf %285, %286 : vector<8x32xf32>
    %288 = vector.extract_strided_slice %281 {offsets = [0, 128], sizes = [8, 32], strides = [1, 1]} : vector<8x384xf32> to vector<8x32xf32>
    %289 = arith.negf %288 : vector<8x32xf32>
    %290 = math.exp %289 : vector<8x32xf32>
    %cst_88 = arith.constant 1.000000e+00 : f32
    %291 = vector.broadcast %cst_88 : f32 to vector<8x32xf32>
    %292 = arith.addf %291, %290 : vector<8x32xf32>
    %293 = arith.divf %291, %292 : vector<8x32xf32>
    %294 = vector.extract_strided_slice %278 {offsets = [0, 256], sizes = [8, 32], strides = [1, 1]} : vector<8x384xf32> to vector<8x32xf32>
    %295 = vector.extract_strided_slice %280 {offsets = [0, 256], sizes = [8, 32], strides = [1, 1]} : vector<8x384xf32> to vector<8x32xf32>
    %296 = arith.addf %295, %5 : vector<8x32xf32>
    %297 = arith.mulf %287, %296 : vector<8x32xf32>
    %298 = arith.addf %294, %297 : vector<8x32xf32>
    %299 = math.tanh %298 : vector<8x32xf32>
    %300 = arith.subf %250, %299 : vector<8x32xf32>
    %301 = arith.mulf %293, %300 : vector<8x32xf32>
    %302 = arith.addf %299, %301 : vector<8x32xf32>
    %c0_89 = arith.constant 0 : index
    %c0_90 = arith.constant 0 : index
    %303 = vector.load %arg3[%c0_89, %c0_90] : memref<32x384xf32, #tpu.memory_space<vmem>>, vector<32x384xf32>
    %cst_91 = arith.constant dense<0.000000e+00> : vector<8x384xf32>
    %304 = tpu.matmul %302, %303, %cst_91 {dimension_numbers = #tpu.dot_dimension_numbers<[1], [0], [0], [1], [0, 0, 1, 1], [], []>} : vector<8x32xf32>, vector<32x384xf32>, vector<8x384xf32> -> vector<8x384xf32>
    %305 = arith.addf %304, %2 : vector<8x384xf32>
    %c0_92 = arith.constant 0 : index
    %c0_93 = arith.constant 0 : index
    %306 = vector.load %arg4[%c0_92, %c0_93] : memref<32x384xf32, #tpu.memory_space<vmem>>, vector<32x384xf32>
    %cst_94 = arith.constant dense<0.000000e+00> : vector<8x384xf32>
    %307 = tpu.matmul %277, %306, %cst_94 {dimension_numbers = #tpu.dot_dimension_numbers<[1], [0], [0], [1], [0, 0, 1, 1], [], []>} : vector<8x32xf32>, vector<32x384xf32>, vector<8x384xf32> -> vector<8x384xf32>
    %308 = arith.addf %305, %307 : vector<8x384xf32>
    %309 = vector.extract_strided_slice %308 {offsets = [0, 0], sizes = [8, 32], strides = [1, 1]} : vector<8x384xf32> to vector<8x32xf32>
    %310 = arith.negf %309 : vector<8x32xf32>
    %311 = math.exp %310 : vector<8x32xf32>
    %cst_95 = arith.constant 1.000000e+00 : f32
    %312 = vector.broadcast %cst_95 : f32 to vector<8x32xf32>
    %313 = arith.addf %312, %311 : vector<8x32xf32>
    %314 = arith.divf %312, %313 : vector<8x32xf32>
    %315 = vector.extract_strided_slice %308 {offsets = [0, 128], sizes = [8, 32], strides = [1, 1]} : vector<8x384xf32> to vector<8x32xf32>
    %316 = arith.negf %315 : vector<8x32xf32>
    %317 = math.exp %316 : vector<8x32xf32>
    %cst_96 = arith.constant 1.000000e+00 : f32
    %318 = vector.broadcast %cst_96 : f32 to vector<8x32xf32>
    %319 = arith.addf %318, %317 : vector<8x32xf32>
    %320 = arith.divf %318, %319 : vector<8x32xf32>
    %321 = vector.extract_strided_slice %305 {offsets = [0, 256], sizes = [8, 32], strides = [1, 1]} : vector<8x384xf32> to vector<8x32xf32>
    %322 = vector.extract_strided_slice %307 {offsets = [0, 256], sizes = [8, 32], strides = [1, 1]} : vector<8x384xf32> to vector<8x32xf32>
    %323 = arith.addf %322, %8 : vector<8x32xf32>
    %324 = arith.mulf %314, %323 : vector<8x32xf32>
    %325 = arith.addf %321, %324 : vector<8x32xf32>
    %326 = math.tanh %325 : vector<8x32xf32>
    %327 = arith.subf %277, %326 : vector<8x32xf32>
    %328 = arith.mulf %320, %327 : vector<8x32xf32>
    %329 = arith.addf %326, %328 : vector<8x32xf32>
    %c48 = arith.constant 48 : index
    %c0_97 = arith.constant 0 : index
    %330 = vector.load %arg7[%c48, %c0_97] : memref<64x384xf32, #tpu.memory_space<vmem>>, vector<8x384xf32>
    %c0_98 = arith.constant 0 : index
    %c0_99 = arith.constant 0 : index
    %331 = vector.load %arg2[%c0_98, %c0_99] : memref<32x384xf32, #tpu.memory_space<vmem>>, vector<32x384xf32>
    %cst_100 = arith.constant dense<0.000000e+00> : vector<8x384xf32>
    %332 = tpu.matmul %302, %331, %cst_100 {dimension_numbers = #tpu.dot_dimension_numbers<[1], [0], [0], [1], [0, 0, 1, 1], [], []>} : vector<8x32xf32>, vector<32x384xf32>, vector<8x384xf32> -> vector<8x384xf32>
    %333 = arith.addf %330, %332 : vector<8x384xf32>
    %334 = vector.extract_strided_slice %333 {offsets = [0, 0], sizes = [8, 32], strides = [1, 1]} : vector<8x384xf32> to vector<8x32xf32>
    %335 = arith.negf %334 : vector<8x32xf32>
    %336 = math.exp %335 : vector<8x32xf32>
    %cst_101 = arith.constant 1.000000e+00 : f32
    %337 = vector.broadcast %cst_101 : f32 to vector<8x32xf32>
    %338 = arith.addf %337, %336 : vector<8x32xf32>
    %339 = arith.divf %337, %338 : vector<8x32xf32>
    %340 = vector.extract_strided_slice %333 {offsets = [0, 128], sizes = [8, 32], strides = [1, 1]} : vector<8x384xf32> to vector<8x32xf32>
    %341 = arith.negf %340 : vector<8x32xf32>
    %342 = math.exp %341 : vector<8x32xf32>
    %cst_102 = arith.constant 1.000000e+00 : f32
    %343 = vector.broadcast %cst_102 : f32 to vector<8x32xf32>
    %344 = arith.addf %343, %342 : vector<8x32xf32>
    %345 = arith.divf %343, %344 : vector<8x32xf32>
    %346 = vector.extract_strided_slice %330 {offsets = [0, 256], sizes = [8, 32], strides = [1, 1]} : vector<8x384xf32> to vector<8x32xf32>
    %347 = vector.extract_strided_slice %332 {offsets = [0, 256], sizes = [8, 32], strides = [1, 1]} : vector<8x384xf32> to vector<8x32xf32>
    %348 = arith.addf %347, %5 : vector<8x32xf32>
    %349 = arith.mulf %339, %348 : vector<8x32xf32>
    %350 = arith.addf %346, %349 : vector<8x32xf32>
    %351 = math.tanh %350 : vector<8x32xf32>
    %352 = arith.subf %302, %351 : vector<8x32xf32>
    %353 = arith.mulf %345, %352 : vector<8x32xf32>
    %354 = arith.addf %351, %353 : vector<8x32xf32>
    %c0_103 = arith.constant 0 : index
    %c0_104 = arith.constant 0 : index
    %355 = vector.load %arg3[%c0_103, %c0_104] : memref<32x384xf32, #tpu.memory_space<vmem>>, vector<32x384xf32>
    %cst_105 = arith.constant dense<0.000000e+00> : vector<8x384xf32>
    %356 = tpu.matmul %354, %355, %cst_105 {dimension_numbers = #tpu.dot_dimension_numbers<[1], [0], [0], [1], [0, 0, 1, 1], [], []>} : vector<8x32xf32>, vector<32x384xf32>, vector<8x384xf32> -> vector<8x384xf32>
    %357 = arith.addf %356, %2 : vector<8x384xf32>
    %c0_106 = arith.constant 0 : index
    %c0_107 = arith.constant 0 : index
    %358 = vector.load %arg4[%c0_106, %c0_107] : memref<32x384xf32, #tpu.memory_space<vmem>>, vector<32x384xf32>
    %cst_108 = arith.constant dense<0.000000e+00> : vector<8x384xf32>
    %359 = tpu.matmul %329, %358, %cst_108 {dimension_numbers = #tpu.dot_dimension_numbers<[1], [0], [0], [1], [0, 0, 1, 1], [], []>} : vector<8x32xf32>, vector<32x384xf32>, vector<8x384xf32> -> vector<8x384xf32>
    %360 = arith.addf %357, %359 : vector<8x384xf32>
    %361 = vector.extract_strided_slice %360 {offsets = [0, 0], sizes = [8, 32], strides = [1, 1]} : vector<8x384xf32> to vector<8x32xf32>
    %362 = arith.negf %361 : vector<8x32xf32>
    %363 = math.exp %362 : vector<8x32xf32>
    %cst_109 = arith.constant 1.000000e+00 : f32
    %364 = vector.broadcast %cst_109 : f32 to vector<8x32xf32>
    %365 = arith.addf %364, %363 : vector<8x32xf32>
    %366 = arith.divf %364, %365 : vector<8x32xf32>
    %367 = vector.extract_strided_slice %360 {offsets = [0, 128], sizes = [8, 32], strides = [1, 1]} : vector<8x384xf32> to vector<8x32xf32>
    %368 = arith.negf %367 : vector<8x32xf32>
    %369 = math.exp %368 : vector<8x32xf32>
    %cst_110 = arith.constant 1.000000e+00 : f32
    %370 = vector.broadcast %cst_110 : f32 to vector<8x32xf32>
    %371 = arith.addf %370, %369 : vector<8x32xf32>
    %372 = arith.divf %370, %371 : vector<8x32xf32>
    %373 = vector.extract_strided_slice %357 {offsets = [0, 256], sizes = [8, 32], strides = [1, 1]} : vector<8x384xf32> to vector<8x32xf32>
    %374 = vector.extract_strided_slice %359 {offsets = [0, 256], sizes = [8, 32], strides = [1, 1]} : vector<8x384xf32> to vector<8x32xf32>
    %375 = arith.addf %374, %8 : vector<8x32xf32>
    %376 = arith.mulf %366, %375 : vector<8x32xf32>
    %377 = arith.addf %373, %376 : vector<8x32xf32>
    %378 = math.tanh %377 : vector<8x32xf32>
    %379 = arith.subf %329, %378 : vector<8x32xf32>
    %380 = arith.mulf %372, %379 : vector<8x32xf32>
    %381 = arith.addf %378, %380 : vector<8x32xf32>
    %c56 = arith.constant 56 : index
    %c0_111 = arith.constant 0 : index
    %382 = vector.load %arg7[%c56, %c0_111] : memref<64x384xf32, #tpu.memory_space<vmem>>, vector<8x384xf32>
    %c0_112 = arith.constant 0 : index
    %c0_113 = arith.constant 0 : index
    %383 = vector.load %arg2[%c0_112, %c0_113] : memref<32x384xf32, #tpu.memory_space<vmem>>, vector<32x384xf32>
    %cst_114 = arith.constant dense<0.000000e+00> : vector<8x384xf32>
    %384 = tpu.matmul %354, %383, %cst_114 {dimension_numbers = #tpu.dot_dimension_numbers<[1], [0], [0], [1], [0, 0, 1, 1], [], []>} : vector<8x32xf32>, vector<32x384xf32>, vector<8x384xf32> -> vector<8x384xf32>
    %385 = arith.addf %382, %384 : vector<8x384xf32>
    %386 = vector.extract_strided_slice %385 {offsets = [0, 0], sizes = [8, 32], strides = [1, 1]} : vector<8x384xf32> to vector<8x32xf32>
    %387 = arith.negf %386 : vector<8x32xf32>
    %388 = math.exp %387 : vector<8x32xf32>
    %cst_115 = arith.constant 1.000000e+00 : f32
    %389 = vector.broadcast %cst_115 : f32 to vector<8x32xf32>
    %390 = arith.addf %389, %388 : vector<8x32xf32>
    %391 = arith.divf %389, %390 : vector<8x32xf32>
    %392 = vector.extract_strided_slice %385 {offsets = [0, 128], sizes = [8, 32], strides = [1, 1]} : vector<8x384xf32> to vector<8x32xf32>
    %393 = arith.negf %392 : vector<8x32xf32>
    %394 = math.exp %393 : vector<8x32xf32>
    %cst_116 = arith.constant 1.000000e+00 : f32
    %395 = vector.broadcast %cst_116 : f32 to vector<8x32xf32>
    %396 = arith.addf %395, %394 : vector<8x32xf32>
    %397 = arith.divf %395, %396 : vector<8x32xf32>
    %398 = vector.extract_strided_slice %382 {offsets = [0, 256], sizes = [8, 32], strides = [1, 1]} : vector<8x384xf32> to vector<8x32xf32>
    %399 = vector.extract_strided_slice %384 {offsets = [0, 256], sizes = [8, 32], strides = [1, 1]} : vector<8x384xf32> to vector<8x32xf32>
    %400 = arith.addf %399, %5 : vector<8x32xf32>
    %401 = arith.mulf %391, %400 : vector<8x32xf32>
    %402 = arith.addf %398, %401 : vector<8x32xf32>
    %403 = math.tanh %402 : vector<8x32xf32>
    %404 = arith.subf %354, %403 : vector<8x32xf32>
    %405 = arith.mulf %397, %404 : vector<8x32xf32>
    %406 = arith.addf %403, %405 : vector<8x32xf32>
    %c0_117 = arith.constant 0 : index
    %c0_118 = arith.constant 0 : index
    %407 = vector.load %arg3[%c0_117, %c0_118] : memref<32x384xf32, #tpu.memory_space<vmem>>, vector<32x384xf32>
    %cst_119 = arith.constant dense<0.000000e+00> : vector<8x384xf32>
    %408 = tpu.matmul %406, %407, %cst_119 {dimension_numbers = #tpu.dot_dimension_numbers<[1], [0], [0], [1], [0, 0, 1, 1], [], []>} : vector<8x32xf32>, vector<32x384xf32>, vector<8x384xf32> -> vector<8x384xf32>
    %409 = arith.addf %408, %2 : vector<8x384xf32>
    %c0_120 = arith.constant 0 : index
    %c0_121 = arith.constant 0 : index
    %410 = vector.load %arg4[%c0_120, %c0_121] : memref<32x384xf32, #tpu.memory_space<vmem>>, vector<32x384xf32>
    %cst_122 = arith.constant dense<0.000000e+00> : vector<8x384xf32>
    %411 = tpu.matmul %381, %410, %cst_122 {dimension_numbers = #tpu.dot_dimension_numbers<[1], [0], [0], [1], [0, 0, 1, 1], [], []>} : vector<8x32xf32>, vector<32x384xf32>, vector<8x384xf32> -> vector<8x384xf32>
    %412 = arith.addf %409, %411 : vector<8x384xf32>
    %413 = vector.extract_strided_slice %412 {offsets = [0, 0], sizes = [8, 32], strides = [1, 1]} : vector<8x384xf32> to vector<8x32xf32>
    %414 = arith.negf %413 : vector<8x32xf32>
    %415 = math.exp %414 : vector<8x32xf32>
    %cst_123 = arith.constant 1.000000e+00 : f32
    %416 = vector.broadcast %cst_123 : f32 to vector<8x32xf32>
    %417 = arith.addf %416, %415 : vector<8x32xf32>
    %418 = arith.divf %416, %417 : vector<8x32xf32>
    %419 = vector.extract_strided_slice %412 {offsets = [0, 128], sizes = [8, 32], strides = [1, 1]} : vector<8x384xf32> to vector<8x32xf32>
    %420 = arith.negf %419 : vector<8x32xf32>
    %421 = math.exp %420 : vector<8x32xf32>
    %cst_124 = arith.constant 1.000000e+00 : f32
    %422 = vector.broadcast %cst_124 : f32 to vector<8x32xf32>
    %423 = arith.addf %422, %421 : vector<8x32xf32>
    %424 = arith.divf %422, %423 : vector<8x32xf32>
    %425 = vector.extract_strided_slice %409 {offsets = [0, 256], sizes = [8, 32], strides = [1, 1]} : vector<8x384xf32> to vector<8x32xf32>
    %426 = vector.extract_strided_slice %411 {offsets = [0, 256], sizes = [8, 32], strides = [1, 1]} : vector<8x384xf32> to vector<8x32xf32>
    %427 = arith.addf %426, %8 : vector<8x32xf32>
    %428 = arith.mulf %418, %427 : vector<8x32xf32>
    %429 = arith.addf %425, %428 : vector<8x32xf32>
    %430 = math.tanh %429 : vector<8x32xf32>
    %431 = arith.subf %381, %430 : vector<8x32xf32>
    %432 = arith.mulf %424, %431 : vector<8x32xf32>
    %433 = arith.addf %430, %432 : vector<8x32xf32>
    %c4 = arith.constant 4 : index
    %c0_125 = arith.constant 0 : index
    %434 = vector.load %arg5[%c4, %c0_125] : memref<8x384xf32, #tpu.memory_space<vmem>>, vector<1x32xf32>
    %c5 = arith.constant 5 : index
    %c0_126 = arith.constant 0 : index
    %435 = vector.load %arg5[%c5, %c0_126] : memref<8x384xf32, #tpu.memory_space<vmem>>, vector<1x32xf32>
    %cst_127 = arith.constant dense<0.000000e+00> : vector<8xf32>
    %436 = vector.multi_reduction <add>, %433, %cst_127 [1] : vector<8x32xf32> to vector<8xf32>
    %437 = vector.shape_cast %436 : vector<8xf32> to vector<8x1xf32>
    %cst_128 = arith.constant 3.200000e+01 : f32
    %438 = vector.broadcast %cst_128 : f32 to vector<8x1xf32>
    %439 = arith.divf %437, %438 : vector<8x1xf32>
    %440 = vector.broadcast %439 : vector<8x1xf32> to vector<8x32xf32>
    %441 = arith.subf %433, %440 : vector<8x32xf32>
    %442 = arith.mulf %441, %441 : vector<8x32xf32>
    %cst_129 = arith.constant dense<0.000000e+00> : vector<8xf32>
    %443 = vector.multi_reduction <add>, %442, %cst_129 [1] : vector<8x32xf32> to vector<8xf32>
    %444 = vector.shape_cast %443 : vector<8xf32> to vector<8x1xf32>
    %cst_130 = arith.constant 3.200000e+01 : f32
    %445 = vector.broadcast %cst_130 : f32 to vector<8x1xf32>
    %446 = arith.divf %444, %445 : vector<8x1xf32>
    %447 = vector.broadcast %439 : vector<8x1xf32> to vector<8x32xf32>
    %448 = arith.subf %433, %447 : vector<8x32xf32>
    %cst_131 = arith.constant 9.99999974E-6 : f32
    %449 = vector.broadcast %cst_131 : f32 to vector<8x1xf32>
    %450 = arith.addf %446, %449 : vector<8x1xf32>
    %451 = math.rsqrt %450 : vector<8x1xf32>
    %452 = vector.broadcast %451 : vector<8x1xf32> to vector<8x32xf32>
    %453 = arith.mulf %448, %452 : vector<8x32xf32>
    %454 = vector.broadcast %434 : vector<1x32xf32> to vector<8x32xf32>
    %455 = arith.mulf %453, %454 : vector<8x32xf32>
    %456 = vector.broadcast %435 : vector<1x32xf32> to vector<8x32xf32>
    %457 = arith.addf %455, %456 : vector<8x32xf32>
    %c0_132 = arith.constant 0 : index
    %c0_133 = arith.constant 0 : index
    %458 = vector.load %arg6[%c0_132, %c0_133] : memref<8x32xf32, #tpu.memory_space<vmem>>, vector<8x32xf32>
    tpu.vector_store %arg6[%c0_132, %c0_133], %457 {strides = array<i32>} : memref<8x32xf32, #tpu.memory_space<vmem>>, vector<8x32xf32>,
    return
  }
}

</mosaic_0001>

<llo_original>
// kernel: tpu_custom_call.1
$region0: #{tpu_custom_call.1}
  #allocation0 [shape = 'u32[]', space=smem, size = 0x4, offset = 0x4, fixed_abs, tag = 'smem constant byte address 0x4 - core index']
  #allocation1 [shape = 'u32[144,128]{1,0:T(1,128)}', space=vmem, size = 0x12000, scoped, tag = 'internal scratch']
  #allocation2 [shape = 'f32[64,384]{1,0:T(8,128)}', space=vmem, size = 0x18000, scoped, tag = 'scratch operand']
  %s0 = inlined_call_operand.vmem [shape: f32[64,6], index: 0, kind: input, shape index: {}]
  %s1 = inlined_call_operand.vmem [shape: f32[6,384], index: 1, kind: input, shape index: {}]
  %s2 = inlined_call_operand.hbm [shape: f32[32,384], index: 2, kind: input, shape index: {}]
  %s3 = inlined_call_operand.hbm [shape: f32[32,384], index: 3, kind: input, shape index: {}]
  %s4 = inlined_call_operand.hbm [shape: f32[32,384], index: 4, kind: input, shape index: {}]
  %s5 = inlined_call_operand.vmem [shape: f32[8,384], index: 5, kind: input, shape index: {}]
  %s6 = inlined_call_operand.hbm [shape: f32[8,32], index: 6, kind: output, shape index: {}]
  %s7 = sld [smem:[#allocation0]]
  $region46: #{tpu_custom_call.1} parent=0
    _
  %s9 = ssub.s32 1, %s7
  %s10 = scalar_select 0, %s9, %s7
  $region1: #{tpu_custom_call.1} parent=0
    #allocation3 [shape = 'u8[49152]{0}', space=vmem, size = 0xc000, scoped, tag = 'input window, operand 2, single buffered']
    #allocation4 [shape = 's32[1]{0}', space=sflag, size = 0x4, scoped, tag = 'scoped memory for tpu_custom_call.1']
    #allocation5 [shape = 's32[1]{0}', space=sflag, size = 0x4, scoped, tag = 'scoped memory for tpu_custom_call.1']
    #allocation6 [shape = 'u8[49152]{0}', space=vmem, size = 0xc000, scoped, tag = 'input window, operand 3, single buffered']
    #allocation7 [shape = 's32[1]{0}', space=sflag, size = 0x4, scoped, tag = 'scoped memory for tpu_custom_call.1']
    #allocation8 [shape = 'u8[49152]{0}', space=vmem, size = 0xc000, scoped, tag = 'input window, operand 4, single buffered']
    #allocation9 [shape = 'u8[4096]{0}', space=vmem, size = 0x1000, scoped, tag = 'output window, operand 0, single buffered']
    %11 = vsyncpa [#allocation4], 0
    %12 = vsyncpa [#allocation7], 0
    %13 = vsyncpa [#allocation5], 0
    // Predicated region
    $region2: #{tpu_custom_call.1} parent=1 // pred_check
      _
    $region3: #{tpu_custom_call.1} parent=1 // pred_check_branch
      %15 = sbr.rel (0) target = $region5
    $region4: #{tpu_custom_call.1} parent=1 // pred_region
      _
    $region5: #{tpu_custom_call.1} parent=1 // pred_fallthru
      _
    // Predicated region
    $region6: #{tpu_custom_call.1} parent=1 // pred_check
      _
    $region7: #{tpu_custom_call.1} parent=1 // pred_check_branch
      %17 = sbr.rel (0) target = $region9
    $region8: #{tpu_custom_call.1} parent=1 // pred_region
      _
    $region9: #{tpu_custom_call.1} parent=1 // pred_fallthru
      _
    // Predicated region
    $region10: #{tpu_custom_call.1} parent=1 // pred_check
      _
    $region11: #{tpu_custom_call.1} parent=1 // pred_check_branch
      %19 = sbr.rel (0) target = $region13
    $region12: #{tpu_custom_call.1} parent=1 // pred_region
      %s21 = ssub.s32 1536, 1536
      %22 = vsyncadd [#allocation4], %s21
      %s23 = sshll.u32 [#allocation3], 4
      %s24 = int_to_ptr.vmem [resolvable:$true] %s23
      %29 = dma.hbm_to_vmem [thread:$0]  %s2, 1536, %s24, [#allocation4], 384, 384, 24
    $region13: #{tpu_custom_call.1} parent=1 // pred_fallthru
      _
    // Predicated region
    $region14: #{tpu_custom_call.1} parent=1 // pred_check
      _
    $region15: #{tpu_custom_call.1} parent=1 // pred_check_branch
      %31 = sbr.rel (0) target = $region17
    $region16: #{tpu_custom_call.1} parent=1 // pred_region
      %s33 = ssub.s32 1536, 1536
      %34 = vsyncadd [#allocation7], %s33
      %s35 = sshll.u32 [#allocation6], 4
      %s36 = int_to_ptr.vmem [resolvable:$true] %s35
      %41 = dma.hbm_to_vmem [thread:$0]  %s3, 1536, %s36, [#allocation7], 384, 384, 24
    $region17: #{tpu_custom_call.1} parent=1 // pred_fallthru
      _
    // Predicated region
    $region18: #{tpu_custom_call.1} parent=1 // pred_check
      _
    $region19: #{tpu_custom_call.1} parent=1 // pred_check_branch
      %43 = sbr.rel (0) target = $region21
    $region20: #{tpu_custom_call.1} parent=1 // pred_region
      %s45 = ssub.s32 1536, 1536
      %46 = vsyncadd [#allocation7], %s45
      %s47 = sshll.u32 [#allocation8], 4
      %s48 = int_to_ptr.vmem [resolvable:$true] %s47
      %53 = dma.hbm_to_vmem [thread:$0]  %s4, 1536, %s48, [#allocation7], 384, 384, 24
    $region21: #{tpu_custom_call.1} parent=1 // pred_fallthru
      _
    // Predicated region
    $region22: #{tpu_custom_call.1} parent=1 // pred_check
      _
    $region23: #{tpu_custom_call.1} parent=1 // pred_check_branch
      %55 = sbr.rel (0) target = $region25
    $region24: #{tpu_custom_call.1} parent=1 // pred_region
      _
    $region25: #{tpu_custom_call.1} parent=1 // pred_fallthru
      _
    // Predicated region
    $region26: #{tpu_custom_call.1} parent=1 // pred_check
      _
    $region27: #{tpu_custom_call.1} parent=1 // pred_check_branch
      %57 = sbr.rel (0) target = $region29
    $region28: #{tpu_custom_call.1} parent=1 // pred_region
      %58 = dma.done [#allocation4], 1536
    $region29: #{tpu_custom_call.1} parent=1 // pred_fallthru
      _
    // Predicated region
    $region30: #{tpu_custom_call.1} parent=1 // pred_check
      _
    $region31: #{tpu_custom_call.1} parent=1 // pred_check_branch
      %60 = sbr.rel (0) target = $region33
    $region32: #{tpu_custom_call.1} parent=1 // pred_region
      %61 = dma.done [#allocation7], 1536
    $region33: #{tpu_custom_call.1} parent=1 // pred_fallthru
      _
    // Predicated region
    $region34: #{tpu_custom_call.1} parent=1 // pred_check
      _
    $region35: #{tpu_custom_call.1} parent=1 // pred_check_branch
      %63 = sbr.rel (0) target = $region37
    $region36: #{tpu_custom_call.1} parent=1 // pred_region
      %64 = dma.done [#allocation7], 1536
    $region37: #{tpu_custom_call.1} parent=1 // pred_fallthru
      _
    %s65 = scalar_lea.vmem %s5, 1
    %v66 = vld [vmem:[%s65] ss:$8 sm:$0x7]
    %v68 = vlaneseq
    %v69 = vshrl.u32 %v68, 7
    %v70 = vsub.s32 0, %v69
    %v71 = vrot.slane %v66, %v70
    %v72 = vlaneseq
    %v73 = vshrl.u32 %v72, 7
    %v74 = vsub.s32 1, %v73
    %v75 = vrot.slane %v66, %v74
    %v76 = vlaneseq
    %v77 = vshrl.u32 %v76, 7
    %v78 = vsub.s32 2, %v77
    %v79 = vrot.slane %v66, %v78
    %v83 = vld [vmem:[%s5 + $0x2] ss:$0 sm:$0xff]
    %v84 = vld [vmem:[%s5 + $0x3] ss:$0 sm:$0xff]
    %v85 = vld [vmem:[%s0] sm:$0xff]
    %v86 = vld [vmem:[%s0 + $0x8] sm:$0xff]
    %v87 = vld [vmem:[%s0 + $0x10] sm:$0xff]
    %v88 = vld [vmem:[%s0 + $0x18] sm:$0xff]
    %v89 = vld [vmem:[%s0 + $0x20] sm:$0xff]
    %v90 = vld [vmem:[%s0 + $0x28] sm:$0xff]
    %v91 = vld [vmem:[%s0 + $0x30] sm:$0xff]
    %v92 = vld [vmem:[%s0 + $0x38] sm:$0xff]
    %v93 = vld [vmem:[%s1] sm:$0x3f]
    %v94 = vld [vmem:[%s1 + $0x8] sm:$0x3f]
    %v95 = vld [vmem:[%s1 + $0x10] sm:$0x3f]
    %v96 = vld [vmem:[%s5] ss:$8 sm:$0x7]
    %v98 = vlaneseq
    %v99 = vshrl.u32 %v98, 7
    %v100 = vsub.s32 0, %v99
    %v101 = vrot.slane %v96, %v100
    %v102 = vlaneseq
    %v103 = vshrl.u32 %v102, 7
    %v104 = vsub.s32 1, %v103
    %v105 = vrot.slane %v96, %v104
    %v106 = vlaneseq
    %v107 = vshrl.u32 %v106, 7
    %v108 = vsub.s32 2, %v107
    %v109 = vrot.slane %v96, %v108
    %vm113 = vcmask 48128
    %v115 = vsel %vm113, %v85, 0
    %v118 = vsel %vm113, %v86, 0
    %v121 = vsel %vm113, %v87, 0
    %v124 = vsel %vm113, %v88, 0
    %v127 = vsel %vm113, %v89, 0
    %v130 = vsel %vm113, %v90, 0
    %v133 = vsel %vm113, %v91, 0
    %v136 = vsel %vm113, %v92, 0
    %vm138 = vcmask 1045504
    %v140 = vsel %vm138, %v93, 0
    %v143 = vsel %vm138, %v94, 0
    %v146 = vsel %vm138, %v95, 0
    %148 = vmatprep.subr.mxu0 %v143
    %149 = vmatpush1.msra.mxu0 %v140
    %150 = vmatprep.subr.mxu0 0.0
    %151 = vmatpush1.msra.mxu0 0.0
    %152 = vmatprep.subr.mxu0 0.0
    %153 = vmatpush1.msra.mxu0 0.0
    %154 = vmatprep.subr.mxu0 0.0
    %155 = vmatpush1.msra.mxu0 0.0
    %156 = vmatprep.subr.mxu0 0.0
    %157 = vmatpush1.msra.mxu0 0.0
    %158 = vmatprep.subr.mxu0 0.0
    %159 = vmatpush1.msra.mxu0 0.0
    %160 = vmatprep.subr.mxu0 0.0
    %161 = vmatpush1.msra.mxu0 0.0
    %162 = vmatprep.subr.mxu0 0.0
    %163 = vmatpush1.msra.mxu0 0.0
    %164 = vmatprep.subr.mxu0 0.0
    %165 = vmatpush1.msra.mxu0 0.0
    %166 = vmatprep.subr.mxu0 0.0
    %167 = vmatpush1.msra.mxu0 0.0
    %168 = vmatprep.subr.mxu0 0.0
    %169 = vmatpush1.msra.mxu0 0.0
    %170 = vmatprep.subr.mxu0 0.0
    %171 = vmatpush1.msra.mxu0 0.0
    %172 = vmatprep.subr.mxu0 0.0
    %173 = vmatpush1.msra.mxu0 0.0
    %174 = vmatprep.subr.mxu0 0.0
    %175 = vmatpush1.msra.mxu0 0.0
    %176 = vmatprep.subr.mxu0 0.0
    %177 = vmatpush1.msra.mxu0 0.0
    %178 = vmatprep.subr.mxu0 0.0
    %179 = vmatpush1.msra.mxu0 0.0
    %180 = vmatprep.subr.mxu0 0.0
    %181 = vmatpush1.msra.mxu0 0.0
    %182 = vmatprep.subr.mxu0 0.0
    %183 = vmatpush1.msra.mxu0 0.0
    %184 = vmatprep.subr.mxu0 0.0
    %185 = vmatpush1.msra.mxu0 0.0
    %186 = vmatprep.subr.mxu0 0.0
    %187 = vmatpush1.msra.mxu0 0.0
    %188 = vmatprep.subr.mxu0 0.0
    %189 = vmatpush1.msra.mxu0 0.0
    %190 = vmatprep.subr.mxu0 0.0
    %191 = vmatpush1.msra.mxu0 0.0
    %192 = vmatprep.subr.mxu0 0.0
    %193 = vmatpush1.msra.mxu0 0.0
    %194 = vmatprep.subr.mxu0 0.0
    %195 = vmatpush1.msra.mxu0 0.0
    %196 = vmatprep.subr.mxu0 0.0
    %197 = vmatpush1.msra.mxu0 0.0
    %198 = vmatprep.subr.mxu0 0.0
    %199 = vmatpush1.msra.mxu0 0.0
    %200 = vmatprep.subr.mxu0 0.0
    %201 = vmatpush1.msra.mxu0 0.0
    %202 = vmatprep.subr.mxu0 0.0
    %203 = vmatpush1.msra.mxu0 0.0
    %204 = vmatprep.subr.mxu0 0.0
    %205 = vmatpush1.msra.mxu0 0.0
    %206 = vmatprep.subr.mxu0 0.0
    %207 = vmatpush1.msra.mxu0 0.0
    %208 = vmatprep.subr.mxu0 0.0
    %209 = vmatpush1.msra.mxu0 0.0
    %210 = vmatprep.subr.mxu0 0.0
    %211 = vmatpush1.msra.mxu0 0.0
    %212 = vmatprep.mubr.f32.mxu0 0.0
    %213 = vmatmul.mubr.f32.gmra.mrb[0].mxu0 %v115
    %v214 = vpop.f32.mrb[0].mxu0
    %v215 = vadd.f32 %v101, %v214
    %v216 = vpop.f32.mrb[0].mxu0
    %v217 = vadd.f32 %v105, %v216
    %218 = vmatprep.mubr.f32.mxu0 0.0
    %219 = vmatmul.mubr.f32.gmra.mrb[0].mxu0 %v118
    %v220 = vpop.f32.mrb[0].mxu0
    %v221 = vadd.f32 %v101, %v220
    %v222 = vpop.f32.mrb[0].mxu0
    %v223 = vadd.f32 %v105, %v222
    %224 = vmatprep.mubr.f32.mxu0 0.0
    %225 = vmatmul.mubr.f32.gmra.mrb[0].mxu0 %v121
    %v226 = vpop.f32.mrb[0].mxu0
    %v227 = vadd.f32 %v101, %v226
    %v228 = vpop.f32.mrb[0].mxu0
    %v229 = vadd.f32 %v105, %v228
    %230 = vmatprep.mubr.f32.mxu0 0.0
    %231 = vmatmul.mubr.f32.gmra.mrb[0].mxu0 %v124
    %v232 = vpop.f32.mrb[0].mxu0
    %v233 = vadd.f32 %v101, %v232
    %v234 = vpop.f32.mrb[0].mxu0
    %v235 = vadd.f32 %v105, %v234
    %236 = vmatprep.mubr.f32.mxu0 0.0
    %237 = vmatmul.mubr.f32.gmra.mrb[0].mxu0 %v127
    %v238 = vpop.f32.mrb[0].mxu0
    %v239 = vadd.f32 %v101, %v238
    %v240 = vpop.f32.mrb[0].mxu0
    %v241 = vadd.f32 %v105, %v240
    %242 = vmatprep.mubr.f32.mxu0 0.0
    %243 = vmatmul.mubr.f32.gmra.mrb[0].mxu0 %v130
    %v244 = vpop.f32.mrb[0].mxu0
    %v245 = vadd.f32 %v101, %v244
    %v246 = vpop.f32.mrb[0].mxu0
    %v247 = vadd.f32 %v105, %v246
    %248 = vmatprep.mubr.f32.mxu0 0.0
    %249 = vmatmul.mubr.f32.gmra.mrb[0].mxu0 %v133
    %v250 = vpop.f32.mrb[0].mxu0
    %v251 = vadd.f32 %v101, %v250
    %v252 = vpop.f32.mrb[0].mxu0
    %v253 = vadd.f32 %v105, %v252
    %254 = vmatprep.mubr.f32.mxu0 0.0
    %255 = vmatmul.mubr.f32.gmra.mrb[0].mxu0 %v136
    %v256 = vpop.f32.mrb[0].mxu0
    %v257 = vadd.f32 %v101, %v256
    %v258 = vpop.f32.mrb[0].mxu0
    %v259 = vadd.f32 %v105, %v258
    %260 = vdwg.mxu0
    %261 = vmatprep.subr.mxu0 0.0
    %262 = vmatpush1.msra.mxu0 %v146
    %263 = vmatprep.subr.mxu0 0.0
    %264 = vmatpush1.msra.mxu0 0.0
    %265 = vmatprep.subr.mxu0 0.0
    %266 = vmatpush1.msra.mxu0 0.0
    %267 = vmatprep.subr.mxu0 0.0
    %268 = vmatpush1.msra.mxu0 0.0
    %269 = vmatprep.subr.mxu0 0.0
    %270 = vmatpush1.msra.mxu0 0.0
    %271 = vmatprep.subr.mxu0 0.0
    %272 = vmatpush1.msra.mxu0 0.0
    %273 = vmatprep.subr.mxu0 0.0
    %274 = vmatpush1.msra.mxu0 0.0
    %275 = vmatprep.subr.mxu0 0.0
    %276 = vmatpush1.msra.mxu0 0.0
    %277 = vmatprep.subr.mxu0 0.0
    %278 = vmatpush1.msra.mxu0 0.0
    %279 = vmatprep.subr.mxu0 0.0
    %280 = vmatpush1.msra.mxu0 0.0
    %281 = vmatprep.subr.mxu0 0.0
    %282 = vmatpush1.msra.mxu0 0.0
    %283 = vmatprep.subr.mxu0 0.0
    %284 = vmatpush1.msra.mxu0 0.0
    %285 = vmatprep.subr.mxu0 0.0
    %286 = vmatpush1.msra.mxu0 0.0
    %287 = vmatprep.subr.mxu0 0.0
    %288 = vmatpush1.msra.mxu0 0.0
    %289 = vmatprep.subr.mxu0 0.0
    %290 = vmatpush1.msra.mxu0 0.0
    %291 = vmatprep.subr.mxu0 0.0
    %292 = vmatpush1.msra.mxu0 0.0
    %293 = vmatprep.subr.mxu0 0.0
    %294 = vmatpush1.msra.mxu0 0.0
    %295 = vmatprep.subr.mxu0 0.0
    %296 = vmatpush1.msra.mxu0 0.0
    %297 = vmatprep.subr.mxu0 0.0
    %298 = vmatpush1.msra.mxu0 0.0
    %299 = vmatprep.subr.mxu0 0.0
    %300 = vmatpush1.msra.mxu0 0.0
    %301 = vmatprep.subr.mxu0 0.0
    %302 = vmatpush1.msra.mxu0 0.0
    %303 = vmatprep.subr.mxu0 0.0
    %304 = vmatpush1.msra.mxu0 0.0
    %305 = vmatprep.subr.mxu0 0.0
    %306 = vmatpush1.msra.mxu0 0.0
    %307 = vmatprep.subr.mxu0 0.0
    %308 = vmatpush1.msra.mxu0 0.0
    %309 = vmatprep.subr.mxu0 0.0
    %310 = vmatpush1.msra.mxu0 0.0
    %311 = vmatprep.subr.mxu0 0.0
    %312 = vmatpush1.msra.mxu0 0.0
    %313 = vmatprep.subr.mxu0 0.0
    %314 = vmatpush1.msra.mxu0 0.0
    %315 = vmatprep.subr.mxu0 0.0
    %316 = vmatpush1.msra.mxu0 0.0
    %317 = vmatprep.subr.mxu0 0.0
    %318 = vmatpush1.msra.mxu0 0.0
    %319 = vmatprep.subr.mxu0 0.0
    %320 = vmatpush1.msra.mxu0 0.0
    %321 = vmatprep.subr.mxu0 0.0
    %322 = vmatpush1.msra.mxu0 0.0
    %323 = vmatprep.subr.mxu0 0.0
    %324 = vmatpush1.msra.mxu0 0.0
    %325 = vmatprep.mubr.f32.mxu0 0.0
    %326 = vmatmul.mubr.f32.gmra.mrb[0].mxu0 %v115
    %v327 = vpop.f32.mrb[0].mxu0
    %v328 = vadd.f32 %v109, %v327
    %v329 = vpop.f32.mrb[0].mxu0
    %330 = vmatprep.mubr.f32.mxu0 0.0
    %331 = vmatmul.mubr.f32.gmra.mrb[0].mxu0 %v118
    %v332 = vpop.f32.mrb[0].mxu0
    %v333 = vadd.f32 %v109, %v332
    %v334 = vpop.f32.mrb[0].mxu0
    %335 = vmatprep.mubr.f32.mxu0 0.0
    %336 = vmatmul.mubr.f32.gmra.mrb[0].mxu0 %v121
    %v337 = vpop.f32.mrb[0].mxu0
    %v338 = vadd.f32 %v109, %v337
    %v339 = vpop.f32.mrb[0].mxu0
    %340 = vmatprep.mubr.f32.mxu0 0.0
    %341 = vmatmul.mubr.f32.gmra.mrb[0].mxu0 %v124
    %v342 = vpop.f32.mrb[0].mxu0
    %v343 = vadd.f32 %v109, %v342
    %v344 = vpop.f32.mrb[0].mxu0
    %345 = vmatprep.mubr.f32.mxu0 0.0
    %346 = vmatmul.mubr.f32.gmra.mrb[0].mxu0 %v127
    %v347 = vpop.f32.mrb[0].mxu0
    %v348 = vadd.f32 %v109, %v347
    %v349 = vpop.f32.mrb[0].mxu0
    %350 = vmatprep.mubr.f32.mxu0 0.0
    %351 = vmatmul.mubr.f32.gmra.mrb[0].mxu0 %v130
    %v352 = vpop.f32.mrb[0].mxu0
    %v353 = vadd.f32 %v109, %v352
    %v354 = vpop.f32.mrb[0].mxu0
    %355 = vmatprep.mubr.f32.mxu0 0.0
    %356 = vmatmul.mubr.f32.gmra.mrb[0].mxu0 %v133
    %v357 = vpop.f32.mrb[0].mxu0
    %v358 = vadd.f32 %v109, %v357
    %v359 = vpop.f32.mrb[0].mxu0
    %360 = vmatprep.mubr.f32.mxu0 0.0
    %361 = vmatmul.mubr.f32.gmra.mrb[0].mxu0 %v136
    %v362 = vpop.f32.mrb[0].mxu0
    %v363 = vadd.f32 %v109, %v362
    %v364 = vpop.f32.mrb[0].mxu0
    %365 = vdwg.mxu0
    %366 = vst [vmem:[#allocation2] sm:$0xff] %v215
    %367 = vst [vmem:[#allocation2 + $0x8] sm:$0xff] %v217
    %368 = vst [vmem:[#allocation2 + $0x10] sm:$0xff] %v328
    %369 = vst [vmem:[#allocation2 + $0x18] sm:$0xff] %v221
    %370 = vst [vmem:[#allocation2 + $0x20] sm:$0xff] %v223
    %371 = vst [vmem:[#allocation2 + $0x28] sm:$0xff] %v333
    %372 = vst [vmem:[#allocation2 + $0x30] sm:$0xff] %v227
    %373 = vst [vmem:[#allocation2 + $0x38] sm:$0xff] %v229
    %374 = vst [vmem:[#allocation2 + $0x40] sm:$0xff] %v338
    %375 = vst [vmem:[#allocation2 + $0x48] sm:$0xff] %v233
    %376 = vst [vmem:[#allocation2 + $0x50] sm:$0xff] %v235
    %377 = vst [vmem:[#allocation2 + $0x58] sm:$0xff] %v343
    %378 = vst [vmem:[#allocation2 + $0x60] sm:$0xff] %v239
    %379 = vst [vmem:[#allocation2 + $0x68] sm:$0xff] %v241
    %380 = vst [vmem:[#allocation2 + $0x70] sm:$0xff] %v348
    %381 = vst [vmem:[#allocation2 + $0x78] sm:$0xff] %v245
    %382 = vst [vmem:[#allocation2 + $0x80] sm:$0xff] %v247
    %383 = vst [vmem:[#allocation2 + $0x88] sm:$0xff] %v353
    %384 = vst [vmem:[#allocation2 + $0x90] sm:$0xff] %v251
    %385 = vst [vmem:[#allocation2 + $0x98] sm:$0xff] %v253
    %386 = vst [vmem:[#allocation2 + $0xa0] sm:$0xff] %v358
    %387 = vst [vmem:[#allocation2 + $0xa8] sm:$0xff] %v257
    %388 = vst [vmem:[#allocation2 + $0xb0] sm:$0xff] %v259
    %389 = vst [vmem:[#allocation2 + $0xb8] sm:$0xff] %v363
    %v390 = vld [vmem:[#allocation2] sm:$0xff]
    %v391 = vld [vmem:[#allocation2 + $0x8] sm:$0xff]
    %v392 = vld [vmem:[#allocation2 + $0x10] sm:$0xff]
    %v393 = vld [vmem:[#allocation3] sm:$0xff]
    %v394 = vld [vmem:[#allocation3 + $0x8] sm:$0xff]
    %v395 = vld [vmem:[#allocation3 + $0x10] sm:$0xff]
    %v396 = vld [vmem:[#allocation3 + $0x18] sm:$0xff]
    %v397 = vld [vmem:[#allocation3 + $0x20] sm:$0xff]
    %v398 = vld [vmem:[#allocation3 + $0x28] sm:$0xff]
    %v399 = vld [vmem:[#allocation3 + $0x30] sm:$0xff]
    %v400 = vld [vmem:[#allocation3 + $0x38] sm:$0xff]
    %v401 = vld [vmem:[#allocation3 + $0x40] sm:$0xff]
    %v402 = vld [vmem:[#allocation3 + $0x48] sm:$0xff]
    %v403 = vld [vmem:[#allocation3 + $0x50] sm:$0xff]
    %v404 = vld [vmem:[#allocation3 + $0x58] sm:$0xff]
    %vm405 = vcmask 261120
    %v407 = vsel %vm405, 0.0, 0
    %409 = vmatprep.subr.mxu0 %v394
    %410 = vmatpush1.msra.mxu0 %v393
    %411 = vmatprep.subr.mxu0 %v397
    %412 = vmatpush1.msra.mxu0 %v396
    %413 = vmatprep.subr.mxu0 %v400
    %414 = vmatpush1.msra.mxu0 %v399
    %415 = vmatprep.subr.mxu0 %v403
    %416 = vmatpush1.msra.mxu0 %v402
    %417 = vmatprep.subr.mxu0 0.0
    %418 = vmatpush1.msra.mxu0 0.0
    %419 = vmatprep.subr.mxu0 0.0
    %420 = vmatpush1.msra.mxu0 0.0
    %421 = vmatprep.subr.mxu0 0.0
    %422 = vmatpush1.msra.mxu0 0.0
    %423 = vmatprep.subr.mxu0 0.0
    %424 = vmatpush1.msra.mxu0 0.0
    %425 = vmatprep.subr.mxu0 0.0
    %426 = vmatpush1.msra.mxu0 0.0
    %427 = vmatprep.subr.mxu0 0.0
    %428 = vmatpush1.msra.mxu0 0.0
    %429 = vmatprep.subr.mxu0 0.0
    %430 = vmatpush1.msra.mxu0 0.0
    %431 = vmatprep.subr.mxu0 0.0
    %432 = vmatpush1.msra.mxu0 0.0
    %433 = vmatprep.subr.mxu0 0.0
    %434 = vmatpush1.msra.mxu0 0.0
    %435 = vmatprep.subr.mxu0 0.0
    %436 = vmatpush1.msra.mxu0 0.0
    %437 = vmatprep.subr.mxu0 0.0
    %438 = vmatpush1.msra.mxu0 0.0
    %439 = vmatprep.subr.mxu0 0.0
    %440 = vmatpush1.msra.mxu0 0.0
    %441 = vmatprep.subr.mxu0 0.0
    %442 = vmatpush1.msra.mxu0 0.0
    %443 = vmatprep.subr.mxu0 0.0
    %444 = vmatpush1.msra.mxu0 0.0
    %445 = vmatprep.subr.mxu0 0.0
    %446 = vmatpush1.msra.mxu0 0.0
    %447 = vmatprep.subr.mxu0 0.0
    %448 = vmatpush1.msra.mxu0 0.0
    %449 = vmatprep.subr.mxu0 0.0
    %450 = vmatpush1.msra.mxu0 0.0
    %451 = vmatprep.subr.mxu0 0.0
    %452 = vmatpush1.msra.mxu0 0.0
    %453 = vmatprep.subr.mxu0 0.0
    %454 = vmatpush1.msra.mxu0 0.0
    %455 = vmatprep.subr.mxu0 0.0
    %456 = vmatpush1.msra.mxu0 0.0
    %457 = vmatprep.subr.mxu0 0.0
    %458 = vmatpush1.msra.mxu0 0.0
    %459 = vmatprep.subr.mxu0 0.0
    %460 = vmatpush1.msra.mxu0 0.0
    %461 = vmatprep.subr.mxu0 0.0
    %462 = vmatpush1.msra.mxu0 0.0
    %463 = vmatprep.subr.mxu0 0.0
    %464 = vmatpush1.msra.mxu0 0.0
    %465 = vmatprep.subr.mxu0 0.0
    %466 = vmatpush1.msra.mxu0 0.0
    %467 = vmatprep.subr.mxu0 0.0
    %468 = vmatpush1.msra.mxu0 0.0
    %469 = vmatprep.subr.mxu0 0.0
    %470 = vmatpush1.msra.mxu0 0.0
    %471 = vmatprep.subr.mxu0 0.0
    %472 = vmatpush1.msra.mxu0 0.0
    %473 = vmatprep.mubr.f32.mxu0 0.0
    %474 = vmatmul.mubr.f32.gmra.mrb[0].mxu0 %v407
    %v475 = vpop.f32.mrb[0].mxu0
    %v476 = vadd.f32 0.0, %v475
    %v477 = vpop.f32.mrb[0].mxu0
    %v478 = vadd.f32 0.0, %v477
    %479 = vdwg.mxu0
    %480 = vmatprep.subr.mxu0 0.0
    %481 = vmatpush1.msra.mxu0 %v395
    %482 = vmatprep.subr.mxu0 0.0
    %483 = vmatpush1.msra.mxu0 %v398
    %484 = vmatprep.subr.mxu0 0.0
    %485 = vmatpush1.msra.mxu0 %v401
    %486 = vmatprep.subr.mxu0 0.0
    %487 = vmatpush1.msra.mxu0 %v404
    %488 = vmatprep.subr.mxu0 0.0
    %489 = vmatpush1.msra.mxu0 0.0
    %490 = vmatprep.subr.mxu0 0.0
    %491 = vmatpush1.msra.mxu0 0.0
    %492 = vmatprep.subr.mxu0 0.0
    %493 = vmatpush1.msra.mxu0 0.0
    %494 = vmatprep.subr.mxu0 0.0
    %495 = vmatpush1.msra.mxu0 0.0
    %496 = vmatprep.subr.mxu0 0.0
    %497 = vmatpush1.msra.mxu0 0.0
    %498 = vmatprep.subr.mxu0 0.0
    %499 = vmatpush1.msra.mxu0 0.0
    %500 = vmatprep.subr.mxu0 0.0
    %501 = vmatpush1.msra.mxu0 0.0
    %502 = vmatprep.subr.mxu0 0.0
    %503 = vmatpush1.msra.mxu0 0.0
    %504 = vmatprep.subr.mxu0 0.0
    %505 = vmatpush1.msra.mxu0 0.0
    %506 = vmatprep.subr.mxu0 0.0
    %507 = vmatpush1.msra.mxu0 0.0
    %508 = vmatprep.subr.mxu0 0.0
    %509 = vmatpush1.msra.mxu0 0.0
    %510 = vmatprep.subr.mxu0 0.0
    %511 = vmatpush1.msra.mxu0 0.0
    %512 = vmatprep.subr.mxu0 0.0
    %513 = vmatpush1.msra.mxu0 0.0
    %514 = vmatprep.subr.mxu0 0.0
    %515 = vmatpush1.msra.mxu0 0.0
    %516 = vmatprep.subr.mxu0 0.0
    %517 = vmatpush1.msra.mxu0 0.0
    %518 = vmatprep.subr.mxu0 0.0
    %519 = vmatpush1.msra.mxu0 0.0
    %520 = vmatprep.subr.mxu0 0.0
    %521 = vmatpush1.msra.mxu0 0.0
    %522 = vmatprep.subr.mxu0 0.0
    %523 = vmatpush1.msra.mxu0 0.0
    %524 = vmatprep.subr.mxu0 0.0
    %525 = vmatpush1.msra.mxu0 0.0
    %526 = vmatprep.subr.mxu0 0.0
    %527 = vmatpush1.msra.mxu0 0.0
    %528 = vmatprep.subr.mxu0 0.0
    %529 = vmatpush1.msra.mxu0 0.0
    %530 = vmatprep.subr.mxu0 0.0
    %531 = vmatpush1.msra.mxu0 0.0
    %532 = vmatprep.subr.mxu0 0.0
    %533 = vmatpush1.msra.mxu0 0.0
    %534 = vmatprep.subr.mxu0 0.0
    %535 = vmatpush1.msra.mxu0 0.0
    %536 = vmatprep.subr.mxu0 0.0
    %537 = vmatpush1.msra.mxu0 0.0
    %538 = vmatprep.subr.mxu0 0.0
    %539 = vmatpush1.msra.mxu0 0.0
    %540 = vmatprep.subr.mxu0 0.0
    %541 = vmatpush1.msra.mxu0 0.0
    %542 = vmatprep.subr.mxu0 0.0
    %543 = vmatpush1.msra.mxu0 0.0
    %544 = vmatprep.mubr.f32.mxu0 0.0
    %545 = vmatmul.mubr.f32.gmra.mrb[0].mxu0 %v407
    %v546 = vpop.f32.mrb[0].mxu0
    %v547 = vadd.f32 0.0, %v546
    %v548 = vpop.f32.mrb[0].mxu0
    %549 = vdwg.mxu0
    %v550 = vadd.f32 %v390, %v476
    %v551 = vadd.f32 %v391, %v478
    %v552 = vxor.u32 %v550, 2147483648
    %v553 = vmul.f32 %v552, 1.442695
    %v554 = vpow.pop %v553
    %v555 = vadd.f32 %v554, 1.0
    %v556 = vrcp.pop %v555
    %v557 = vmul.f32 1.0, %v556
    %v558 = vxor.u32 %v551, 2147483648
    %v559 = vmul.f32 %v558, 1.442695
    %v560 = vpow.pop %v559
    %v561 = vadd.f32 %v560, 1.0
    %v562 = vrcp.pop %v561
    %v563 = vmul.f32 1.0, %v562
    %v564 = vadd.f32 %v547, %v83
    %v565 = vmul.f32 %v557, %v564
    %v566 = vadd.f32 %v392, %v565
    %v567 = vtanh.pop %v566
    %v568 = vsub.f32 0.0, %v567
    %v569 = vmul.f32 %v563, %v568
    %v570 = vadd.f32 %v567, %v569
    %v571 = vld [vmem:[#allocation6] sm:$0xff]
    %v572 = vld [vmem:[#allocation6 + $0x8] sm:$0xff]
    %v573 = vld [vmem:[#allocation6 + $0x10] sm:$0xff]
    %v574 = vld [vmem:[#allocation6 + $0x18] sm:$0xff]
    %v575 = vld [vmem:[#allocation6 + $0x20] sm:$0xff]
    %v576 = vld [vmem:[#allocation6 + $0x28] sm:$0xff]
    %v577 = vld [vmem:[#allocation6 + $0x30] sm:$0xff]
    %v578 = vld [vmem:[#allocation6 + $0x38] sm:$0xff]
    %v579 = vld [vmem:[#allocation6 + $0x40] sm:$0xff]
    %v580 = vld [vmem:[#allocation6 + $0x48] sm:$0xff]
    %v581 = vld [vmem:[#allocation6 + $0x50] sm:$0xff]
    %v582 = vld [vmem:[#allocation6 + $0x58] sm:$0xff]
    %v584 = vsel %vm405, %v570, 0
    %586 = vmatprep.subr.mxu0 %v572
    %587 = vmatpush1.msra.mxu0 %v571
    %588 = vmatprep.subr.mxu0 %v575
    %589 = vmatpush1.msra.mxu0 %v574
    %590 = vmatprep.subr.mxu0 %v578
    %591 = vmatpush1.msra.mxu0 %v577
    %592 = vmatprep.subr.mxu0 %v581
    %593 = vmatpush1.msra.mxu0 %v580
    %594 = vmatprep.subr.mxu0 0.0
    %595 = vmatpush1.msra.mxu0 0.0
    %596 = vmatprep.subr.mxu0 0.0
    %597 = vmatpush1.msra.mxu0 0.0
    %598 = vmatprep.subr.mxu0 0.0
    %599 = vmatpush1.msra.mxu0 0.0
    %600 = vmatprep.subr.mxu0 0.0
    %601 = vmatpush1.msra.mxu0 0.0
    %602 = vmatprep.subr.mxu0 0.0
    %603 = vmatpush1.msra.mxu0 0.0
    %604 = vmatprep.subr.mxu0 0.0
    %605 = vmatpush1.msra.mxu0 0.0
    %606 = vmatprep.subr.mxu0 0.0
    %607 = vmatpush1.msra.mxu0 0.0
    %608 = vmatprep.subr.mxu0 0.0
    %609 = vmatpush1.msra.mxu0 0.0
    %610 = vmatprep.subr.mxu0 0.0
    %611 = vmatpush1.msra.mxu0 0.0
    %612 = vmatprep.subr.mxu0 0.0
    %613 = vmatpush1.msra.mxu0 0.0
    %614 = vmatprep.subr.mxu0 0.0
    %615 = vmatpush1.msra.mxu0 0.0
    %616 = vmatprep.subr.mxu0 0.0
    %617 = vmatpush1.msra.mxu0 0.0
    %618 = vmatprep.subr.mxu0 0.0
    %619 = vmatpush1.msra.mxu0 0.0
    %620 = vmatprep.subr.mxu0 0.0
    %621 = vmatpush1.msra.mxu0 0.0
    %622 = vmatprep.subr.mxu0 0.0
    %623 = vmatpush1.msra.mxu0 0.0
    %624 = vmatprep.subr.mxu0 0.0
    %625 = vmatpush1.msra.mxu0 0.0
    %626 = vmatprep.subr.mxu0 0.0
    %627 = vmatpush1.msra.mxu0 0.0
    %628 = vmatprep.subr.mxu0 0.0
    %629 = vmatpush1.msra.mxu0 0.0
    %630 = vmatprep.subr.mxu0 0.0
    %631 = vmatpush1.msra.mxu0 0.0
    %632 = vmatprep.subr.mxu0 0.0
    %633 = vmatpush1.msra.mxu0 0.0
    %634 = vmatprep.subr.mxu0 0.0
    %635 = vmatpush1.msra.mxu0 0.0
    %636 = vmatprep.subr.mxu0 0.0
    %637 = vmatpush1.msra.mxu0 0.0
    %638 = vmatprep.subr.mxu0 0.0
    %639 = vmatpush1.msra.mxu0 0.0
    %640 = vmatprep.subr.mxu0 0.0
    %641 = vmatpush1.msra.mxu0 0.0
    %642 = vmatprep.subr.mxu0 0.0
    %643 = vmatpush1.msra.mxu0 0.0
    %644 = vmatprep.subr.mxu0 0.0
    %645 = vmatpush1.msra.mxu0 0.0
    %646 = vmatprep.subr.mxu0 0.0
    %647 = vmatpush1.msra.mxu0 0.0
    %648 = vmatprep.subr.mxu0 0.0
    %649 = vmatpush1.msra.mxu0 0.0
    %650 = vmatprep.mubr.f32.mxu0 0.0
    %651 = vmatmul.mubr.f32.gmra.mrb[0].mxu0 %v584
    %v652 = vpop.f32.mrb[0].mxu0
    %v653 = vadd.f32 %v71, %v652
    %v654 = vpop.f32.mrb[0].mxu0
    %v655 = vadd.f32 %v75, %v654
    %656 = vdwg.mxu0
    %657 = vmatprep.subr.mxu0 0.0
    %658 = vmatpush1.msra.mxu0 %v573
    %659 = vmatprep.subr.mxu0 0.0
    %660 = vmatpush1.msra.mxu0 %v576
    %661 = vmatprep.subr.mxu0 0.0
    %662 = vmatpush1.msra.mxu0 %v579
    %663 = vmatprep.subr.mxu0 0.0
    %664 = vmatpush1.msra.mxu0 %v582
    %665 = vmatprep.subr.mxu0 0.0
    %666 = vmatpush1.msra.mxu0 0.0
    %667 = vmatprep.subr.mxu0 0.0
    %668 = vmatpush1.msra.mxu0 0.0
    %669 = vmatprep.subr.mxu0 0.0
    %670 = vmatpush1.msra.mxu0 0.0
    %671 = vmatprep.subr.mxu0 0.0
    %672 = vmatpush1.msra.mxu0 0.0
    %673 = vmatprep.subr.mxu0 0.0
    %674 = vmatpush1.msra.mxu0 0.0
    %675 = vmatprep.subr.mxu0 0.0
    %676 = vmatpush1.msra.mxu0 0.0
    %677 = vmatprep.subr.mxu0 0.0
    %678 = vmatpush1.msra.mxu0 0.0
    %679 = vmatprep.subr.mxu0 0.0
    %680 = vmatpush1.msra.mxu0 0.0
    %681 = vmatprep.subr.mxu0 0.0
    %682 = vmatpush1.msra.mxu0 0.0
    %683 = vmatprep.subr.mxu0 0.0
    %684 = vmatpush1.msra.mxu0 0.0
    %685 = vmatprep.subr.mxu0 0.0
    %686 = vmatpush1.msra.mxu0 0.0
    %687 = vmatprep.subr.mxu0 0.0
    %688 = vmatpush1.msra.mxu0 0.0
    %689 = vmatprep.subr.mxu0 0.0
    %690 = vmatpush1.msra.mxu0 0.0
    %691 = vmatprep.subr.mxu0 0.0
    %692 = vmatpush1.msra.mxu0 0.0
    %693 = vmatprep.subr.mxu0 0.0
    %694 = vmatpush1.msra.mxu0 0.0
    %695 = vmatprep.subr.mxu0 0.0
    %696 = vmatpush1.msra.mxu0 0.0
    %697 = vmatprep.subr.mxu0 0.0
    %698 = vmatpush1.msra.mxu0 0.0
    %699 = vmatprep.subr.mxu0 0.0
    %700 = vmatpush1.msra.mxu0 0.0
    %701 = vmatprep.subr.mxu0 0.0
    %702 = vmatpush1.msra.mxu0 0.0
    %703 = vmatprep.subr.mxu0 0.0
    %704 = vmatpush1.msra.mxu0 0.0
    %705 = vmatprep.subr.mxu0 0.0
    %706 = vmatpush1.msra.mxu0 0.0
    %707 = vmatprep.subr.mxu0 0.0
    %708 = vmatpush1.msra.mxu0 0.0
    %709 = vmatprep.subr.mxu0 0.0
    %710 = vmatpush1.msra.mxu0 0.0
    %711 = vmatprep.subr.mxu0 0.0
    %712 = vmatpush1.msra.mxu0 0.0
    %713 = vmatprep.subr.mxu0 0.0
    %714 = vmatpush1.msra.mxu0 0.0
    %715 = vmatprep.subr.mxu0 0.0
    %716 = vmatpush1.msra.mxu0 0.0
    %717 = vmatprep.subr.mxu0 0.0
    %718 = vmatpush1.msra.mxu0 0.0
    %719 = vmatprep.subr.mxu0 0.0
    %720 = vmatpush1.msra.mxu0 0.0
    %721 = vmatprep.mubr.f32.mxu0 0.0
    %722 = vmatmul.mubr.f32.gmra.mrb[0].mxu0 %v584
    %v723 = vpop.f32.mrb[0].mxu0
    %v724 = vadd.f32 %v79, %v723
    %v725 = vpop.f32.mrb[0].mxu0
    %726 = vdwg.mxu0
    %v727 = vld [vmem:[#allocation8] sm:$0xff]
    %v728 = vld [vmem:[#allocation8 + $0x8] sm:$0xff]
    %v729 = vld [vmem:[#allocation8 + $0x10] sm:$0xff]
    %v730 = vld [vmem:[#allocation8 + $0x18] sm:$0xff]
    %v731 = vld [vmem:[#allocation8 + $0x20] sm:$0xff]
    %v732 = vld [vmem:[#allocation8 + $0x28] sm:$0xff]
    %v733 = vld [vmem:[#allocation8 + $0x30] sm:$0xff]
    %v734 = vld [vmem:[#allocation8 + $0x38] sm:$0xff]
    %v735 = vld [vmem:[#allocation8 + $0x40] sm:$0xff]
    %v736 = vld [vmem:[#allocation8 + $0x48] sm:$0xff]
    %v737 = vld [vmem:[#allocation8 + $0x50] sm:$0xff]
    %v738 = vld [vmem:[#allocation8 + $0x58] sm:$0xff]
    %739 = vmatprep.subr.mxu0 %v728
    %740 = vmatpush1.msra.mxu0 %v727
    %741 = vmatprep.subr.mxu0 %v731
    %742 = vmatpush1.msra.mxu0 %v730
    %743 = vmatprep.subr.mxu0 %v734
    %744 = vmatpush1.msra.mxu0 %v733
    %745 = vmatprep.subr.mxu0 %v737
    %746 = vmatpush1.msra.mxu0 %v736
    %747 = vmatprep.subr.mxu0 0.0
    %748 = vmatpush1.msra.mxu0 0.0
    %749 = vmatprep.subr.mxu0 0.0
    %750 = vmatpush1.msra.mxu0 0.0
    %751 = vmatprep.subr.mxu0 0.0
    %752 = vmatpush1.msra.mxu0 0.0
    %753 = vmatprep.subr.mxu0 0.0
    %754 = vmatpush1.msra.mxu0 0.0
    %755 = vmatprep.subr.mxu0 0.0
    %756 = vmatpush1.msra.mxu0 0.0
    %757 = vmatprep.subr.mxu0 0.0
    %758 = vmatpush1.msra.mxu0 0.0
    %759 = vmatprep.subr.mxu0 0.0
    %760 = vmatpush1.msra.mxu0 0.0
    %761 = vmatprep.subr.mxu0 0.0
    %762 = vmatpush1.msra.mxu0 0.0
    %763 = vmatprep.subr.mxu0 0.0
    %764 = vmatpush1.msra.mxu0 0.0
    %765 = vmatprep.subr.mxu0 0.0
    %766 = vmatpush1.msra.mxu0 0.0
    %767 = vmatprep.subr.mxu0 0.0
    %768 = vmatpush1.msra.mxu0 0.0
    %769 = vmatprep.subr.mxu0 0.0
    %770 = vmatpush1.msra.mxu0 0.0
    %771 = vmatprep.subr.mxu0 0.0
    %772 = vmatpush1.msra.mxu0 0.0
    %773 = vmatprep.subr.mxu0 0.0
    %774 = vmatpush1.msra.mxu0 0.0
    %775 = vmatprep.subr.mxu0 0.0
    %776 = vmatpush1.msra.mxu0 0.0
    %777 = vmatprep.subr.mxu0 0.0
    %778 = vmatpush1.msra.mxu0 0.0
    %779 = vmatprep.subr.mxu0 0.0
    %780 = vmatpush1.msra.mxu0 0.0
    %781 = vmatprep.subr.mxu0 0.0
    %782 = vmatpush1.msra.mxu0 0.0
    %783 = vmatprep.subr.mxu0 0.0
    %784 = vmatpush1.msra.mxu0 0.0
    %785 = vmatprep.subr.mxu0 0.0
    %786 = vmatpush1.msra.mxu0 0.0
    %787 = vmatprep.subr.mxu0 0.0
    %788 = vmatpush1.msra.mxu0 0.0
    %789 = vmatprep.subr.mxu0 0.0
    %790 = vmatpush1.msra.mxu0 0.0
    %791 = vmatprep.subr.mxu0 0.0
    %792 = vmatpush1.msra.mxu0 0.0
    %793 = vmatprep.subr.mxu0 0.0
    %794 = vmatpush1.msra.mxu0 0.0
    %795 = vmatprep.subr.mxu0 0.0
    %796 = vmatpush1.msra.mxu0 0.0
    %797 = vmatprep.subr.mxu0 0.0
    %798 = vmatpush1.msra.mxu0 0.0
    %799 = vmatprep.subr.mxu0 0.0
    %800 = vmatpush1.msra.mxu0 0.0
    %801 = vmatprep.subr.mxu0 0.0
    %802 = vmatpush1.msra.mxu0 0.0
    %803 = vmatprep.mubr.f32.mxu0 0.0
    %804 = vmatmul.mubr.f32.gmra.mrb[0].mxu0 %v407
    %v805 = vpop.f32.mrb[0].mxu0
    %v806 = vadd.f32 0.0, %v805
    %v807 = vpop.f32.mrb[0].mxu0
    %v808 = vadd.f32 0.0, %v807
    %809 = vdwg.mxu0
    %810 = vmatprep.subr.mxu0 0.0
    %811 = vmatpush1.msra.mxu0 %v729
    %812 = vmatprep.subr.mxu0 0.0
    %813 = vmatpush1.msra.mxu0 %v732
    %814 = vmatprep.subr.mxu0 0.0
    %815 = vmatpush1.msra.mxu0 %v735
    %816 = vmatprep.subr.mxu0 0.0
    %817 = vmatpush1.msra.mxu0 %v738
    %818 = vmatprep.subr.mxu0 0.0
    %819 = vmatpush1.msra.mxu0 0.0
    %820 = vmatprep.subr.mxu0 0.0
    %821 = vmatpush1.msra.mxu0 0.0
    %822 = vmatprep.subr.mxu0 0.0
    %823 = vmatpush1.msra.mxu0 0.0
    %824 = vmatprep.subr.mxu0 0.0
    %825 = vmatpush1.msra.mxu0 0.0
    %826 = vmatprep.subr.mxu0 0.0
    %827 = vmatpush1.msra.mxu0 0.0
    %828 = vmatprep.subr.mxu0 0.0
    %829 = vmatpush1.msra.mxu0 0.0
    %830 = vmatprep.subr.mxu0 0.0
    %831 = vmatpush1.msra.mxu0 0.0
    %832 = vmatprep.subr.mxu0 0.0
    %833 = vmatpush1.msra.mxu0 0.0
    %834 = vmatprep.subr.mxu0 0.0
    %835 = vmatpush1.msra.mxu0 0.0
    %836 = vmatprep.subr.mxu0 0.0
    %837 = vmatpush1.msra.mxu0 0.0
    %838 = vmatprep.subr.mxu0 0.0
    %839 = vmatpush1.msra.mxu0 0.0
    %840 = vmatprep.subr.mxu0 0.0
    %841 = vmatpush1.msra.mxu0 0.0
    %842 = vmatprep.subr.mxu0 0.0
    %843 = vmatpush1.msra.mxu0 0.0
    %844 = vmatprep.subr.mxu0 0.0
    %845 = vmatpush1.msra.mxu0 0.0
    %846 = vmatprep.subr.mxu0 0.0
    %847 = vmatpush1.msra.mxu0 0.0
    %848 = vmatprep.subr.mxu0 0.0
    %849 = vmatpush1.msra.mxu0 0.0
    %850 = vmatprep.subr.mxu0 0.0
    %851 = vmatpush1.msra.mxu0 0.0
    %852 = vmatprep.subr.mxu0 0.0
    %853 = vmatpush1.msra.mxu0 0.0
    %854 = vmatprep.subr.mxu0 0.0
    %855 = vmatpush1.msra.mxu0 0.0
    %856 = vmatprep.subr.mxu0 0.0
    %857 = vmatpush1.msra.mxu0 0.0
    %858 = vmatprep.subr.mxu0 0.0
    %859 = vmatpush1.msra.mxu0 0.0
    %860 = vmatprep.subr.mxu0 0.0
    %861 = vmatpush1.msra.mxu0 0.0
    %862 = vmatprep.subr.mxu0 0.0
    %863 = vmatpush1.msra.mxu0 0.0
    %864 = vmatprep.subr.mxu0 0.0
    %865 = vmatpush1.msra.mxu0 0.0
    %866 = vmatprep.subr.mxu0 0.0
    %867 = vmatpush1.msra.mxu0 0.0
    %868 = vmatprep.subr.mxu0 0.0
    %869 = vmatpush1.msra.mxu0 0.0
    %870 = vmatprep.subr.mxu0 0.0
    %871 = vmatpush1.msra.mxu0 0.0
    %872 = vmatprep.subr.mxu0 0.0
    %873 = vmatpush1.msra.mxu0 0.0
    %874 = vmatprep.mubr.f32.mxu0 0.0
    %875 = vmatmul.mubr.f32.gmra.mrb[0].mxu0 %v407
    %v876 = vpop.f32.mrb[0].mxu0
    %v877 = vadd.f32 0.0, %v876
    %v878 = vpop.f32.mrb[0].mxu0
    %879 = vdwg.mxu0
    %v880 = vadd.f32 %v653, %v806
    %v881 = vadd.f32 %v655, %v808
    %v882 = vxor.u32 %v880, 2147483648
    %v883 = vmul.f32 %v882, 1.442695
    %v884 = vpow.pop %v883
    %v885 = vadd.f32 %v884, 1.0
    %v886 = vrcp.pop %v885
    %v887 = vmul.f32 1.0, %v886
    %v888 = vxor.u32 %v881, 2147483648
    %v889 = vmul.f32 %v888, 1.442695
    %v890 = vpow.pop %v889
    %v891 = vadd.f32 %v890, 1.0
    %v892 = vrcp.pop %v891
    %v893 = vmul.f32 1.0, %v892
    %v894 = vadd.f32 %v877, %v84
    %v895 = vmul.f32 %v887, %v894
    %v896 = vadd.f32 %v724, %v895
    %v897 = vtanh.pop %v896
    %v898 = vsub.f32 0.0, %v897
    %v899 = vmul.f32 %v893, %v898
    %v900 = vadd.f32 %v897, %v899
    %v901 = vld [vmem:[#allocation2 + $0x18] sm:$0xff]
    %v902 = vld [vmem:[#allocation2 + $0x20] sm:$0xff]
    %v903 = vld [vmem:[#allocation2 + $0x28] sm:$0xff]
    %904 = vmatprep.subr.mxu0 %v394
    %905 = vmatpush1.msra.mxu0 %v393
    %906 = vmatprep.subr.mxu0 %v397
    %907 = vmatpush1.msra.mxu0 %v396
    %908 = vmatprep.subr.mxu0 %v400
    %909 = vmatpush1.msra.mxu0 %v399
    %910 = vmatprep.subr.mxu0 %v403
    %911 = vmatpush1.msra.mxu0 %v402
    %912 = vmatprep.subr.mxu0 0.0
    %913 = vmatpush1.msra.mxu0 0.0
    %914 = vmatprep.subr.mxu0 0.0
    %915 = vmatpush1.msra.mxu0 0.0
    %916 = vmatprep.subr.mxu0 0.0
    %917 = vmatpush1.msra.mxu0 0.0
    %918 = vmatprep.subr.mxu0 0.0
    %919 = vmatpush1.msra.mxu0 0.0
    %920 = vmatprep.subr.mxu0 0.0
    %921 = vmatpush1.msra.mxu0 0.0
    %922 = vmatprep.subr.mxu0 0.0
    %923 = vmatpush1.msra.mxu0 0.0
    %924 = vmatprep.subr.mxu0 0.0
    %925 = vmatpush1.msra.mxu0 0.0
    %926 = vmatprep.subr.mxu0 0.0
    %927 = vmatpush1.msra.mxu0 0.0
    %928 = vmatprep.subr.mxu0 0.0
    %929 = vmatpush1.msra.mxu0 0.0
    %930 = vmatprep.subr.mxu0 0.0
    %931 = vmatpush1.msra.mxu0 0.0
    %932 = vmatprep.subr.mxu0 0.0
    %933 = vmatpush1.msra.mxu0 0.0
    %934 = vmatprep.subr.mxu0 0.0
    %935 = vmatpush1.msra.mxu0 0.0
    %936 = vmatprep.subr.mxu0 0.0
    %937 = vmatpush1.msra.mxu0 0.0
    %938 = vmatprep.subr.mxu0 0.0
    %939 = vmatpush1.msra.mxu0 0.0
    %940 = vmatprep.subr.mxu0 0.0
    %941 = vmatpush1.msra.mxu0 0.0
    %942 = vmatprep.subr.mxu0 0.0
    %943 = vmatpush1.msra.mxu0 0.0
    %944 = vmatprep.subr.mxu0 0.0
    %945 = vmatpush1.msra.mxu0 0.0
    %946 = vmatprep.subr.mxu0 0.0
    %947 = vmatpush1.msra.mxu0 0.0
    %948 = vmatprep.subr.mxu0 0.0
    %949 = vmatpush1.msra.mxu0 0.0
    %950 = vmatprep.subr.mxu0 0.0
    %951 = vmatpush1.msra.mxu0 0.0
    %952 = vmatprep.subr.mxu0 0.0
    %953 = vmatpush1.msra.mxu0 0.0
    %954 = vmatprep.subr.mxu0 0.0
    %955 = vmatpush1.msra.mxu0 0.0
    %956 = vmatprep.subr.mxu0 0.0
    %957 = vmatpush1.msra.mxu0 0.0
    %958 = vmatprep.subr.mxu0 0.0
    %959 = vmatpush1.msra.mxu0 0.0
    %960 = vmatprep.subr.mxu0 0.0
    %961 = vmatpush1.msra.mxu0 0.0
    %962 = vmatprep.subr.mxu0 0.0
    %963 = vmatpush1.msra.mxu0 0.0
    %964 = vmatprep.subr.mxu0 0.0
    %965 = vmatpush1.msra.mxu0 0.0
    %966 = vmatprep.subr.mxu0 0.0
    %967 = vmatpush1.msra.mxu0 0.0
    %968 = vmatprep.mubr.f32.mxu0 0.0
    %969 = vmatmul.mubr.f32.gmra.mrb[0].mxu0 %v584
    %v970 = vpop.f32.mrb[0].mxu0
    %v971 = vadd.f32 0.0, %v970
    %v972 = vpop.f32.mrb[0].mxu0
    %v973 = vadd.f32 0.0, %v972
    %974 = vdwg.mxu0
    %975 = vmatprep.subr.mxu0 0.0
    %976 = vmatpush1.msra.mxu0 %v395
    %977 = vmatprep.subr.mxu0 0.0
    %978 = vmatpush1.msra.mxu0 %v398
    %979 = vmatprep.subr.mxu0 0.0
    %980 = vmatpush1.msra.mxu0 %v401
    %981 = vmatprep.subr.mxu0 0.0
    %982 = vmatpush1.msra.mxu0 %v404
    %983 = vmatprep.subr.mxu0 0.0
    %984 = vmatpush1.msra.mxu0 0.0
    %985 = vmatprep.subr.mxu0 0.0
    %986 = vmatpush1.msra.mxu0 0.0
    %987 = vmatprep.subr.mxu0 0.0
    %988 = vmatpush1.msra.mxu0 0.0
    %989 = vmatprep.subr.mxu0 0.0
    %990 = vmatpush1.msra.mxu0 0.0
    %991 = vmatprep.subr.mxu0 0.0
    %992 = vmatpush1.msra.mxu0 0.0
    %993 = vmatprep.subr.mxu0 0.0
    %994 = vmatpush1.msra.mxu0 0.0
    %995 = vmatprep.subr.mxu0 0.0
    %996 = vmatpush1.msra.mxu0 0.0
    %997 = vmatprep.subr.mxu0 0.0
    %998 = vmatpush1.msra.mxu0 0.0
    %999 = vmatprep.subr.mxu0 0.0
    %1000 = vmatpush1.msra.mxu0 0.0
    %1001 = vmatprep.subr.mxu0 0.0
    %1002 = vmatpush1.msra.mxu0 0.0
    %1003 = vmatprep.subr.mxu0 0.0
    %1004 = vmatpush1.msra.mxu0 0.0
    %1005 = vmatprep.subr.mxu0 0.0
    %1006 = vmatpush1.msra.mxu0 0.0
    %1007 = vmatprep.subr.mxu0 0.0
    %1008 = vmatpush1.msra.mxu0 0.0
    %1009 = vmatprep.subr.mxu0 0.0
    %1010 = vmatpush1.msra.mxu0 0.0
    %1011 = vmatprep.subr.mxu0 0.0
    %1012 = vmatpush1.msra.mxu0 0.0
    %1013 = vmatprep.subr.mxu0 0.0
    %1014 = vmatpush1.msra.mxu0 0.0
    %1015 = vmatprep.subr.mxu0 0.0
    %1016 = vmatpush1.msra.mxu0 0.0
    %1017 = vmatprep.subr.mxu0 0.0
    %1018 = vmatpush1.msra.mxu0 0.0
    %1019 = vmatprep.subr.mxu0 0.0
    %1020 = vmatpush1.msra.mxu0 0.0
    %1021 = vmatprep.subr.mxu0 0.0
    %1022 = vmatpush1.msra.mxu0 0.0
    %1023 = vmatprep.subr.mxu0 0.0
    %1024 = vmatpush1.msra.mxu0 0.0
    %1025 = vmatprep.subr.mxu0 0.0
    %1026 = vmatpush1.msra.mxu0 0.0
    %1027 = vmatprep.subr.mxu0 0.0
    %1028 = vmatpush1.msra.mxu0 0.0
    %1029 = vmatprep.subr.mxu0 0.0
    %1030 = vmatpush1.msra.mxu0 0.0
    %1031 = vmatprep.subr.mxu0 0.0
    %1032 = vmatpush1.msra.mxu0 0.0
    %1033 = vmatprep.subr.mxu0 0.0
    %1034 = vmatpush1.msra.mxu0 0.0
    %1035 = vmatprep.subr.mxu0 0.0
    %1036 = vmatpush1.msra.mxu0 0.0
    %1037 = vmatprep.subr.mxu0 0.0
    %1038 = vmatpush1.msra.mxu0 0.0
    %1039 = vmatprep.mubr.f32.mxu0 0.0
    %1040 = vmatmul.mubr.f32.gmra.mrb[0].mxu0 %v584
    %v1041 = vpop.f32.mrb[0].mxu0
    %v1042 = vadd.f32 0.0, %v1041
    %v1043 = vpop.f32.mrb[0].mxu0
    %1044 = vdwg.mxu0
    %v1045 = vadd.f32 %v901, %v971
    %v1046 = vadd.f32 %v902, %v973
    %v1047 = vxor.u32 %v1045, 2147483648
    %v1048 = vmul.f32 %v1047, 1.442695
    %v1049 = vpow.pop %v1048
    %v1050 = vadd.f32 %v1049, 1.0
    %v1051 = vrcp.pop %v1050
    %v1052 = vmul.f32 1.0, %v1051
    %v1053 = vxor.u32 %v1046, 2147483648
    %v1054 = vmul.f32 %v1053, 1.442695
    %v1055 = vpow.pop %v1054
    %v1056 = vadd.f32 %v1055, 1.0
    %v1057 = vrcp.pop %v1056
    %v1058 = vmul.f32 1.0, %v1057
    %v1059 = vadd.f32 %v1042, %v83
    %v1060 = vmul.f32 %v1052, %v1059
    %v1061 = vadd.f32 %v903, %v1060
    %v1062 = vtanh.pop %v1061
    %v1063 = vsub.f32 %v570, %v1062
    %v1064 = vmul.f32 %v1058, %v1063
    %v1065 = vadd.f32 %v1062, %v1064
    %v1067 = vsel %vm405, %v1065, 0
    %1069 = vmatprep.subr.mxu0 %v572
    %1070 = vmatpush1.msra.mxu0 %v571
    %1071 = vmatprep.subr.mxu0 %v575
    %1072 = vmatpush1.msra.mxu0 %v574
    %1073 = vmatprep.subr.mxu0 %v578
    %1074 = vmatpush1.msra.mxu0 %v577
    %1075 = vmatprep.subr.mxu0 %v581
    %1076 = vmatpush1.msra.mxu0 %v580
    %1077 = vmatprep.subr.mxu0 0.0
    %1078 = vmatpush1.msra.mxu0 0.0
    %1079 = vmatprep.subr.mxu0 0.0
    %1080 = vmatpush1.msra.mxu0 0.0
    %1081 = vmatprep.subr.mxu0 0.0
    %1082 = vmatpush1.msra.mxu0 0.0
    %1083 = vmatprep.subr.mxu0 0.0
    %1084 = vmatpush1.msra.mxu0 0.0
    %1085 = vmatprep.subr.mxu0 0.0
    %1086 = vmatpush1.msra.mxu0 0.0
    %1087 = vmatprep.subr.mxu0 0.0
    %1088 = vmatpush1.msra.mxu0 0.0
    %1089 = vmatprep.subr.mxu0 0.0
    %1090 = vmatpush1.msra.mxu0 0.0
    %1091 = vmatprep.subr.mxu0 0.0
    %1092 = vmatpush1.msra.mxu0 0.0
    %1093 = vmatprep.subr.mxu0 0.0
    %1094 = vmatpush1.msra.mxu0 0.0
    %1095 = vmatprep.subr.mxu0 0.0
    %1096 = vmatpush1.msra.mxu0 0.0
    %1097 = vmatprep.subr.mxu0 0.0
    %1098 = vmatpush1.msra.mxu0 0.0
    %1099 = vmatprep.subr.mxu0 0.0
    %1100 = vmatpush1.msra.mxu0 0.0
    %1101 = vmatprep.subr.mxu0 0.0
    %1102 = vmatpush1.msra.mxu0 0.0
    %1103 = vmatprep.subr.mxu0 0.0
    %1104 = vmatpush1.msra.mxu0 0.0
    %1105 = vmatprep.subr.mxu0 0.0
    %1106 = vmatpush1.msra.mxu0 0.0
    %1107 = vmatprep.subr.mxu0 0.0
    %1108 = vmatpush1.msra.mxu0 0.0
    %1109 = vmatprep.subr.mxu0 0.0
    %1110 = vmatpush1.msra.mxu0 0.0
    %1111 = vmatprep.subr.mxu0 0.0
    %1112 = vmatpush1.msra.mxu0 0.0
    %1113 = vmatprep.subr.mxu0 0.0
    %1114 = vmatpush1.msra.mxu0 0.0
    %1115 = vmatprep.subr.mxu0 0.0
    %1116 = vmatpush1.msra.mxu0 0.0
    %1117 = vmatprep.subr.mxu0 0.0
    %1118 = vmatpush1.msra.mxu0 0.0
    %1119 = vmatprep.subr.mxu0 0.0
    %1120 = vmatpush1.msra.mxu0 0.0
    %1121 = vmatprep.subr.mxu0 0.0
    %1122 = vmatpush1.msra.mxu0 0.0
    %1123 = vmatprep.subr.mxu0 0.0
    %1124 = vmatpush1.msra.mxu0 0.0
    %1125 = vmatprep.subr.mxu0 0.0
    %1126 = vmatpush1.msra.mxu0 0.0
    %1127 = vmatprep.subr.mxu0 0.0
    %1128 = vmatpush1.msra.mxu0 0.0
    %1129 = vmatprep.subr.mxu0 0.0
    %1130 = vmatpush1.msra.mxu0 0.0
    %1131 = vmatprep.subr.mxu0 0.0
    %1132 = vmatpush1.msra.mxu0 0.0
    %1133 = vmatprep.mubr.f32.mxu0 0.0
    %1134 = vmatmul.mubr.f32.gmra.mrb[0].mxu0 %v1067
    %v1135 = vpop.f32.mrb[0].mxu0
    %v1136 = vadd.f32 %v71, %v1135
    %v1137 = vpop.f32.mrb[0].mxu0
    %v1138 = vadd.f32 %v75, %v1137
    %1139 = vdwg.mxu0
    %1140 = vmatprep.subr.mxu0 0.0
    %1141 = vmatpush1.msra.mxu0 %v573
    %1142 = vmatprep.subr.mxu0 0.0
    %1143 = vmatpush1.msra.mxu0 %v576
    %1144 = vmatprep.subr.mxu0 0.0
    %1145 = vmatpush1.msra.mxu0 %v579
    %1146 = vmatprep.subr.mxu0 0.0
    %1147 = vmatpush1.msra.mxu0 %v582
    %1148 = vmatprep.subr.mxu0 0.0
    %1149 = vmatpush1.msra.mxu0 0.0
    %1150 = vmatprep.subr.mxu0 0.0
    %1151 = vmatpush1.msra.mxu0 0.0
    %1152 = vmatprep.subr.mxu0 0.0
    %1153 = vmatpush1.msra.mxu0 0.0
    %1154 = vmatprep.subr.mxu0 0.0
    %1155 = vmatpush1.msra.mxu0 0.0
    %1156 = vmatprep.subr.mxu0 0.0
    %1157 = vmatpush1.msra.mxu0 0.0
    %1158 = vmatprep.subr.mxu0 0.0
    %1159 = vmatpush1.msra.mxu0 0.0
    %1160 = vmatprep.subr.mxu0 0.0
    %1161 = vmatpush1.msra.mxu0 0.0
    %1162 = vmatprep.subr.mxu0 0.0
    %1163 = vmatpush1.msra.mxu0 0.0
    %1164 = vmatprep.subr.mxu0 0.0
    %1165 = vmatpush1.msra.mxu0 0.0
    %1166 = vmatprep.subr.mxu0 0.0
    %1167 = vmatpush1.msra.mxu0 0.0
    %1168 = vmatprep.subr.mxu0 0.0
    %1169 = vmatpush1.msra.mxu0 0.0
    %1170 = vmatprep.subr.mxu0 0.0
    %1171 = vmatpush1.msra.mxu0 0.0
    %1172 = vmatprep.subr.mxu0 0.0
    %1173 = vmatpush1.msra.mxu0 0.0
    %1174 = vmatprep.subr.mxu0 0.0
    %1175 = vmatpush1.msra.mxu0 0.0
    %1176 = vmatprep.subr.mxu0 0.0
    %1177 = vmatpush1.msra.mxu0 0.0
    %1178 = vmatprep.subr.mxu0 0.0
    %1179 = vmatpush1.msra.mxu0 0.0
    %1180 = vmatprep.subr.mxu0 0.0
    %1181 = vmatpush1.msra.mxu0 0.0
    %1182 = vmatprep.subr.mxu0 0.0
    %1183 = vmatpush1.msra.mxu0 0.0
    %1184 = vmatprep.subr.mxu0 0.0
    %1185 = vmatpush1.msra.mxu0 0.0
    %1186 = vmatprep.subr.mxu0 0.0
    %1187 = vmatpush1.msra.mxu0 0.0
    %1188 = vmatprep.subr.mxu0 0.0
    %1189 = vmatpush1.msra.mxu0 0.0
    %1190 = vmatprep.subr.mxu0 0.0
    %1191 = vmatpush1.msra.mxu0 0.0
    %1192 = vmatprep.subr.mxu0 0.0
    %1193 = vmatpush1.msra.mxu0 0.0
    %1194 = vmatprep.subr.mxu0 0.0
    %1195 = vmatpush1.msra.mxu0 0.0
    %1196 = vmatprep.subr.mxu0 0.0
    %1197 = vmatpush1.msra.mxu0 0.0
    %1198 = vmatprep.subr.mxu0 0.0
    %1199 = vmatpush1.msra.mxu0 0.0
    %1200 = vmatprep.subr.mxu0 0.0
    %1201 = vmatpush1.msra.mxu0 0.0
    %1202 = vmatprep.subr.mxu0 0.0
    %1203 = vmatpush1.msra.mxu0 0.0
    %1204 = vmatprep.mubr.f32.mxu0 0.0
    %1205 = vmatmul.mubr.f32.gmra.mrb[0].mxu0 %v1067
    %v1206 = vpop.f32.mrb[0].mxu0
    %v1207 = vadd.f32 %v79, %v1206
    %v1208 = vpop.f32.mrb[0].mxu0
    %1209 = vdwg.mxu0
    %v1211 = vsel %vm405, %v900, 0
    %1213 = vmatprep.subr.mxu0 %v728
    %1214 = vmatpush1.msra.mxu0 %v727
    %1215 = vmatprep.subr.mxu0 %v731
    %1216 = vmatpush1.msra.mxu0 %v730
    %1217 = vmatprep.subr.mxu0 %v734
    %1218 = vmatpush1.msra.mxu0 %v733
    %1219 = vmatprep.subr.mxu0 %v737
    %1220 = vmatpush1.msra.mxu0 %v736
    %1221 = vmatprep.subr.mxu0 0.0
    %1222 = vmatpush1.msra.mxu0 0.0
    %1223 = vmatprep.subr.mxu0 0.0
    %1224 = vmatpush1.msra.mxu0 0.0
    %1225 = vmatprep.subr.mxu0 0.0
    %1226 = vmatpush1.msra.mxu0 0.0
    %1227 = vmatprep.subr.mxu0 0.0
    %1228 = vmatpush1.msra.mxu0 0.0
    %1229 = vmatprep.subr.mxu0 0.0
    %1230 = vmatpush1.msra.mxu0 0.0
    %1231 = vmatprep.subr.mxu0 0.0
    %1232 = vmatpush1.msra.mxu0 0.0
    %1233 = vmatprep.subr.mxu0 0.0
    %1234 = vmatpush1.msra.mxu0 0.0
    %1235 = vmatprep.subr.mxu0 0.0
    %1236 = vmatpush1.msra.mxu0 0.0
    %1237 = vmatprep.subr.mxu0 0.0
    %1238 = vmatpush1.msra.mxu0 0.0
    %1239 = vmatprep.subr.mxu0 0.0
    %1240 = vmatpush1.msra.mxu0 0.0
    %1241 = vmatprep.subr.mxu0 0.0
    %1242 = vmatpush1.msra.mxu0 0.0
    %1243 = vmatprep.subr.mxu0 0.0
    %1244 = vmatpush1.msra.mxu0 0.0
    %1245 = vmatprep.subr.mxu0 0.0
    %1246 = vmatpush1.msra.mxu0 0.0
    %1247 = vmatprep.subr.mxu0 0.0
    %1248 = vmatpush1.msra.mxu0 0.0
    %1249 = vmatprep.subr.mxu0 0.0
    %1250 = vmatpush1.msra.mxu0 0.0
    %1251 = vmatprep.subr.mxu0 0.0
    %1252 = vmatpush1.msra.mxu0 0.0
    %1253 = vmatprep.subr.mxu0 0.0
    %1254 = vmatpush1.msra.mxu0 0.0
    %1255 = vmatprep.subr.mxu0 0.0
    %1256 = vmatpush1.msra.mxu0 0.0
    %1257 = vmatprep.subr.mxu0 0.0
    %1258 = vmatpush1.msra.mxu0 0.0
    %1259 = vmatprep.subr.mxu0 0.0
    %1260 = vmatpush1.msra.mxu0 0.0
    %1261 = vmatprep.subr.mxu0 0.0
    %1262 = vmatpush1.msra.mxu0 0.0
    %1263 = vmatprep.subr.mxu0 0.0
    %1264 = vmatpush1.msra.mxu0 0.0
    %1265 = vmatprep.subr.mxu0 0.0
    %1266 = vmatpush1.msra.mxu0 0.0
    %1267 = vmatprep.subr.mxu0 0.0
    %1268 = vmatpush1.msra.mxu0 0.0
    %1269 = vmatprep.subr.mxu0 0.0
    %1270 = vmatpush1.msra.mxu0 0.0
    %1271 = vmatprep.subr.mxu0 0.0
    %1272 = vmatpush1.msra.mxu0 0.0
    %1273 = vmatprep.subr.mxu0 0.0
    %1274 = vmatpush1.msra.mxu0 0.0
    %1275 = vmatprep.subr.mxu0 0.0
    %1276 = vmatpush1.msra.mxu0 0.0
    %1277 = vmatprep.mubr.f32.mxu0 0.0
    %1278 = vmatmul.mubr.f32.gmra.mrb[0].mxu0 %v1211
    %v1279 = vpop.f32.mrb[0].mxu0
    %v1280 = vadd.f32 0.0, %v1279
    %v1281 = vpop.f32.mrb[0].mxu0
    %v1282 = vadd.f32 0.0, %v1281
    %1283 = vdwg.mxu0
    %1284 = vmatprep.subr.mxu0 0.0
    %1285 = vmatpush1.msra.mxu0 %v729
    %1286 = vmatprep.subr.mxu0 0.0
    %1287 = vmatpush1.msra.mxu0 %v732
    %1288 = vmatprep.subr.mxu0 0.0
    %1289 = vmatpush1.msra.mxu0 %v735
    %1290 = vmatprep.subr.mxu0 0.0
    %1291 = vmatpush1.msra.mxu0 %v738
    %1292 = vmatprep.subr.mxu0 0.0
    %1293 = vmatpush1.msra.mxu0 0.0
    %1294 = vmatprep.subr.mxu0 0.0
    %1295 = vmatpush1.msra.mxu0 0.0
    %1296 = vmatprep.subr.mxu0 0.0
    %1297 = vmatpush1.msra.mxu0 0.0
    %1298 = vmatprep.subr.mxu0 0.0
    %1299 = vmatpush1.msra.mxu0 0.0
    %1300 = vmatprep.subr.mxu0 0.0
    %1301 = vmatpush1.msra.mxu0 0.0
    %1302 = vmatprep.subr.mxu0 0.0
    %1303 = vmatpush1.msra.mxu0 0.0
    %1304 = vmatprep.subr.mxu0 0.0
    %1305 = vmatpush1.msra.mxu0 0.0
    %1306 = vmatprep.subr.mxu0 0.0
    %1307 = vmatpush1.msra.mxu0 0.0
    %1308 = vmatprep.subr.mxu0 0.0
    %1309 = vmatpush1.msra.mxu0 0.0
    %1310 = vmatprep.subr.mxu0 0.0
    %1311 = vmatpush1.msra.mxu0 0.0
    %1312 = vmatprep.subr.mxu0 0.0
    %1313 = vmatpush1.msra.mxu0 0.0
    %1314 = vmatprep.subr.mxu0 0.0
    %1315 = vmatpush1.msra.mxu0 0.0
    %1316 = vmatprep.subr.mxu0 0.0
    %1317 = vmatpush1.msra.mxu0 0.0
    %1318 = vmatprep.subr.mxu0 0.0
    %1319 = vmatpush1.msra.mxu0 0.0
    %1320 = vmatprep.subr.mxu0 0.0
    %1321 = vmatpush1.msra.mxu0 0.0
    %1322 = vmatprep.subr.mxu0 0.0
    %1323 = vmatpush1.msra.mxu0 0.0
    %1324 = vmatprep.subr.mxu0 0.0
    %1325 = vmatpush1.msra.mxu0 0.0
    %1326 = vmatprep.subr.mxu0 0.0
    %1327 = vmatpush1.msra.mxu0 0.0
    %1328 = vmatprep.subr.mxu0 0.0
    %1329 = vmatpush1.msra.mxu0 0.0
    %1330 = vmatprep.subr.mxu0 0.0
    %1331 = vmatpush1.msra.mxu0 0.0
    %1332 = vmatprep.subr.mxu0 0.0
    %1333 = vmatpush1.msra.mxu0 0.0
    %1334 = vmatprep.subr.mxu0 0.0
    %1335 = vmatpush1.msra.mxu0 0.0
    %1336 = vmatprep.subr.mxu0 0.0
    %1337 = vmatpush1.msra.mxu0 0.0
    %1338 = vmatprep.subr.mxu0 0.0
    %1339 = vmatpush1.msra.mxu0 0.0
    %1340 = vmatprep.subr.mxu0 0.0
    %1341 = vmatpush1.msra.mxu0 0.0
    %1342 = vmatprep.subr.mxu0 0.0
    %1343 = vmatpush1.msra.mxu0 0.0
    %1344 = vmatprep.subr.mxu0 0.0
    %1345 = vmatpush1.msra.mxu0 0.0
    %1346 = vmatprep.subr.mxu0 0.0
    %1347 = vmatpush1.msra.mxu0 0.0
    %1348 = vmatprep.mubr.f32.mxu0 0.0
    %1349 = vmatmul.mubr.f32.gmra.mrb[0].mxu0 %v1211
    %v1350 = vpop.f32.mrb[0].mxu0
    %v1351 = vadd.f32 0.0, %v1350
    %v1352 = vpop.f32.mrb[0].mxu0
    %1353 = vdwg.mxu0
    %v1354 = vadd.f32 %v1136, %v1280
    %v1355 = vadd.f32 %v1138, %v1282
    %v1356 = vxor.u32 %v1354, 2147483648
    %v1357 = vmul.f32 %v1356, 1.442695
    %v1358 = vpow.pop %v1357
    %v1359 = vadd.f32 %v1358, 1.0
    %v1360 = vrcp.pop %v1359
    %v1361 = vmul.f32 1.0, %v1360
    %v1362 = vxor.u32 %v1355, 2147483648
    %v1363 = vmul.f32 %v1362, 1.442695
    %v1364 = vpow.pop %v1363
    %v1365 = vadd.f32 %v1364, 1.0
    %v1366 = vrcp.pop %v1365
    %v1367 = vmul.f32 1.0, %v1366
    %v1368 = vadd.f32 %v1351, %v84
    %v1369 = vmul.f32 %v1361, %v1368
    %v1370 = vadd.f32 %v1207, %v1369
    %v1371 = vtanh.pop %v1370
    %v1372 = vsub.f32 %v900, %v1371
    %v1373 = vmul.f32 %v1367, %v1372
    %v1374 = vadd.f32 %v1371, %v1373
    %v1375 = vld [vmem:[#allocation2 + $0x30] sm:$0xff]
    %v1376 = vld [vmem:[#allocation2 + $0x38] sm:$0xff]
    %v1377 = vld [vmem:[#allocation2 + $0x40] sm:$0xff]
    %1378 = vmatprep.subr.mxu0 %v394
    %1379 = vmatpush1.msra.mxu0 %v393
    %1380 = vmatprep.subr.mxu0 %v397
    %1381 = vmatpush1.msra.mxu0 %v396
    %1382 = vmatprep.subr.mxu0 %v400
    %1383 = vmatpush1.msra.mxu0 %v399
    %1384 = vmatprep.subr.mxu0 %v403
    %1385 = vmatpush1.msra.mxu0 %v402
    %1386 = vmatprep.subr.mxu0 0.0
    %1387 = vmatpush1.msra.mxu0 0.0
    %1388 = vmatprep.subr.mxu0 0.0
    %1389 = vmatpush1.msra.mxu0 0.0
    %1390 = vmatprep.subr.mxu0 0.0
    %1391 = vmatpush1.msra.mxu0 0.0
    %1392 = vmatprep.subr.mxu0 0.0
    %1393 = vmatpush1.msra.mxu0 0.0
    %1394 = vmatprep.subr.mxu0 0.0
    %1395 = vmatpush1.msra.mxu0 0.0
    %1396 = vmatprep.subr.mxu0 0.0
    %1397 = vmatpush1.msra.mxu0 0.0
    %1398 = vmatprep.subr.mxu0 0.0
    %1399 = vmatpush1.msra.mxu0 0.0
    %1400 = vmatprep.subr.mxu0 0.0
    %1401 = vmatpush1.msra.mxu0 0.0
    %1402 = vmatprep.subr.mxu0 0.0
    %1403 = vmatpush1.msra.mxu0 0.0
    %1404 = vmatprep.subr.mxu0 0.0
    %1405 = vmatpush1.msra.mxu0 0.0
    %1406 = vmatprep.subr.mxu0 0.0
    %1407 = vmatpush1.msra.mxu0 0.0
    %1408 = vmatprep.subr.mxu0 0.0
    %1409 = vmatpush1.msra.mxu0 0.0
    %1410 = vmatprep.subr.mxu0 0.0
    %1411 = vmatpush1.msra.mxu0 0.0
    %1412 = vmatprep.subr.mxu0 0.0
    %1413 = vmatpush1.msra.mxu0 0.0
    %1414 = vmatprep.subr.mxu0 0.0
    %1415 = vmatpush1.msra.mxu0 0.0
    %1416 = vmatprep.subr.mxu0 0.0
    %1417 = vmatpush1.msra.mxu0 0.0
    %1418 = vmatprep.subr.mxu0 0.0
    %1419 = vmatpush1.msra.mxu0 0.0
    %1420 = vmatprep.subr.mxu0 0.0
    %1421 = vmatpush1.msra.mxu0 0.0
    %1422 = vmatprep.subr.mxu0 0.0
    %1423 = vmatpush1.msra.mxu0 0.0
    %1424 = vmatprep.subr.mxu0 0.0
    %1425 = vmatpush1.msra.mxu0 0.0
    %1426 = vmatprep.subr.mxu0 0.0
    %1427 = vmatpush1.msra.mxu0 0.0
    %1428 = vmatprep.subr.mxu0 0.0
    %1429 = vmatpush1.msra.mxu0 0.0
    %1430 = vmatprep.subr.mxu0 0.0
    %1431 = vmatpush1.msra.mxu0 0.0
    %1432 = vmatprep.subr.mxu0 0.0
    %1433 = vmatpush1.msra.mxu0 0.0
    %1434 = vmatprep.subr.mxu0 0.0
    %1435 = vmatpush1.msra.mxu0 0.0
    %1436 = vmatprep.subr.mxu0 0.0
    %1437 = vmatpush1.msra.mxu0 0.0
    %1438 = vmatprep.subr.mxu0 0.0
    %1439 = vmatpush1.msra.mxu0 0.0
    %1440 = vmatprep.subr.mxu0 0.0
    %1441 = vmatpush1.msra.mxu0 0.0
    %1442 = vmatprep.mubr.f32.mxu0 0.0
    %1443 = vmatmul.mubr.f32.gmra.mrb[0].mxu0 %v1067
    %v1444 = vpop.f32.mrb[0].mxu0
    %v1445 = vadd.f32 0.0, %v1444
    %v1446 = vpop.f32.mrb[0].mxu0
    %v1447 = vadd.f32 0.0, %v1446
    %1448 = vdwg.mxu0
    %1449 = vmatprep.subr.mxu0 0.0
    %1450 = vmatpush1.msra.mxu0 %v395
    %1451 = vmatprep.subr.mxu0 0.0
    %1452 = vmatpush1.msra.mxu0 %v398
    %1453 = vmatprep.subr.mxu0 0.0
    %1454 = vmatpush1.msra.mxu0 %v401
    %1455 = vmatprep.subr.mxu0 0.0
    %1456 = vmatpush1.msra.mxu0 %v404
    %1457 = vmatprep.subr.mxu0 0.0
    %1458 = vmatpush1.msra.mxu0 0.0
    %1459 = vmatprep.subr.mxu0 0.0
    %1460 = vmatpush1.msra.mxu0 0.0
    %1461 = vmatprep.subr.mxu0 0.0
    %1462 = vmatpush1.msra.mxu0 0.0
    %1463 = vmatprep.subr.mxu0 0.0
    %1464 = vmatpush1.msra.mxu0 0.0
    %1465 = vmatprep.subr.mxu0 0.0
    %1466 = vmatpush1.msra.mxu0 0.0
    %1467 = vmatprep.subr.mxu0 0.0
    %1468 = vmatpush1.msra.mxu0 0.0
    %1469 = vmatprep.subr.mxu0 0.0
    %1470 = vmatpush1.msra.mxu0 0.0
    %1471 = vmatprep.subr.mxu0 0.0
    %1472 = vmatpush1.msra.mxu0 0.0
    %1473 = vmatprep.subr.mxu0 0.0
    %1474 = vmatpush1.msra.mxu0 0.0
    %1475 = vmatprep.subr.mxu0 0.0
    %1476 = vmatpush1.msra.mxu0 0.0
    %1477 = vmatprep.subr.mxu0 0.0
    %1478 = vmatpush1.msra.mxu0 0.0
    %1479 = vmatprep.subr.mxu0 0.0
    %1480 = vmatpush1.msra.mxu0 0.0
    %1481 = vmatprep.subr.mxu0 0.0
    %1482 = vmatpush1.msra.mxu0 0.0
    %1483 = vmatprep.subr.mxu0 0.0
    %1484 = vmatpush1.msra.mxu0 0.0
    %1485 = vmatprep.subr.mxu0 0.0
    %1486 = vmatpush1.msra.mxu0 0.0
    %1487 = vmatprep.subr.mxu0 0.0
    %1488 = vmatpush1.msra.mxu0 0.0
    %1489 = vmatprep.subr.mxu0 0.0
    %1490 = vmatpush1.msra.mxu0 0.0
    %1491 = vmatprep.subr.mxu0 0.0
    %1492 = vmatpush1.msra.mxu0 0.0
    %1493 = vmatprep.subr.mxu0 0.0
    %1494 = vmatpush1.msra.mxu0 0.0
    %1495 = vmatprep.subr.mxu0 0.0
    %1496 = vmatpush1.msra.mxu0 0.0
    %1497 = vmatprep.subr.mxu0 0.0
    %1498 = vmatpush1.msra.mxu0 0.0
    %1499 = vmatprep.subr.mxu0 0.0
    %1500 = vmatpush1.msra.mxu0 0.0
    %1501 = vmatprep.subr.mxu0 0.0
    %1502 = vmatpush1.msra.mxu0 0.0
    %1503 = vmatprep.subr.mxu0 0.0
    %1504 = vmatpush1.msra.mxu0 0.0
    %1505 = vmatprep.subr.mxu0 0.0
    %1506 = vmatpush1.msra.mxu0 0.0
    %1507 = vmatprep.subr.mxu0 0.0
    %1508 = vmatpush1.msra.mxu0 0.0
    %1509 = vmatprep.subr.mxu0 0.0
    %1510 = vmatpush1.msra.mxu0 0.0
    %1511 = vmatprep.subr.mxu0 0.0
    %1512 = vmatpush1.msra.mxu0 0.0
    %1513 = vmatprep.mubr.f32.mxu0 0.0
    %1514 = vmatmul.mubr.f32.gmra.mrb[0].mxu0 %v1067
    %v1515 = vpop.f32.mrb[0].mxu0
    %v1516 = vadd.f32 0.0, %v1515
    %v1517 = vpop.f32.mrb[0].mxu0
    %1518 = vdwg.mxu0
    %v1519 = vadd.f32 %v1375, %v1445
    %v1520 = vadd.f32 %v1376, %v1447
    %v1521 = vxor.u32 %v1519, 2147483648
    %v1522 = vmul.f32 %v1521, 1.442695
    %v1523 = vpow.pop %v1522
    %v1524 = vadd.f32 %v1523, 1.0
    %v1525 = vrcp.pop %v1524
    %v1526 = vmul.f32 1.0, %v1525
    %v1527 = vxor.u32 %v1520, 2147483648
    %v1528 = vmul.f32 %v1527, 1.442695
    %v1529 = vpow.pop %v1528
    %v1530 = vadd.f32 %v1529, 1.0
    %v1531 = vrcp.pop %v1530
    %v1532 = vmul.f32 1.0, %v1531
    %v1533 = vadd.f32 %v1516, %v83
    %v1534 = vmul.f32 %v1526, %v1533
    %v1535 = vadd.f32 %v1377, %v1534
    %v1536 = vtanh.pop %v1535
    %v1537 = vsub.f32 %v1065, %v1536
    %v1538 = vmul.f32 %v1532, %v1537
    %v1539 = vadd.f32 %v1536, %v1538
    %v1541 = vsel %vm405, %v1539, 0
    %1543 = vmatprep.subr.mxu0 %v572
    %1544 = vmatpush1.msra.mxu0 %v571
    %1545 = vmatprep.subr.mxu0 %v575
    %1546 = vmatpush1.msra.mxu0 %v574
    %1547 = vmatprep.subr.mxu0 %v578
    %1548 = vmatpush1.msra.mxu0 %v577
    %1549 = vmatprep.subr.mxu0 %v581
    %1550 = vmatpush1.msra.mxu0 %v580
    %1551 = vmatprep.subr.mxu0 0.0
    %1552 = vmatpush1.msra.mxu0 0.0
    %1553 = vmatprep.subr.mxu0 0.0
    %1554 = vmatpush1.msra.mxu0 0.0
    %1555 = vmatprep.subr.mxu0 0.0
    %1556 = vmatpush1.msra.mxu0 0.0
    %1557 = vmatprep.subr.mxu0 0.0
    %1558 = vmatpush1.msra.mxu0 0.0
    %1559 = vmatprep.subr.mxu0 0.0
    %1560 = vmatpush1.msra.mxu0 0.0
    %1561 = vmatprep.subr.mxu0 0.0
    %1562 = vmatpush1.msra.mxu0 0.0
    %1563 = vmatprep.subr.mxu0 0.0
    %1564 = vmatpush1.msra.mxu0 0.0
    %1565 = vmatprep.subr.mxu0 0.0
    %1566 = vmatpush1.msra.mxu0 0.0
    %1567 = vmatprep.subr.mxu0 0.0
    %1568 = vmatpush1.msra.mxu0 0.0
    %1569 = vmatprep.subr.mxu0 0.0
    %1570 = vmatpush1.msra.mxu0 0.0
    %1571 = vmatprep.subr.mxu0 0.0
    %1572 = vmatpush1.msra.mxu0 0.0
    %1573 = vmatprep.subr.mxu0 0.0
    %1574 = vmatpush1.msra.mxu0 0.0
    %1575 = vmatprep.subr.mxu0 0.0
    %1576 = vmatpush1.msra.mxu0 0.0
    %1577 = vmatprep.subr.mxu0 0.0
    %1578 = vmatpush1.msra.mxu0 0.0
    %1579 = vmatprep.subr.mxu0 0.0
    %1580 = vmatpush1.msra.mxu0 0.0
    %1581 = vmatprep.subr.mxu0 0.0
    %1582 = vmatpush1.msra.mxu0 0.0
    %1583 = vmatprep.subr.mxu0 0.0
    %1584 = vmatpush1.msra.mxu0 0.0
    %1585 = vmatprep.subr.mxu0 0.0
    %1586 = vmatpush1.msra.mxu0 0.0
    %1587 = vmatprep.subr.mxu0 0.0
    %1588 = vmatpush1.msra.mxu0 0.0
    %1589 = vmatprep.subr.mxu0 0.0
    %1590 = vmatpush1.msra.mxu0 0.0
    %1591 = vmatprep.subr.mxu0 0.0
    %1592 = vmatpush1.msra.mxu0 0.0
    %1593 = vmatprep.subr.mxu0 0.0
    %1594 = vmatpush1.msra.mxu0 0.0
    %1595 = vmatprep.subr.mxu0 0.0
    %1596 = vmatpush1.msra.mxu0 0.0
    %1597 = vmatprep.subr.mxu0 0.0
    %1598 = vmatpush1.msra.mxu0 0.0
    %1599 = vmatprep.subr.mxu0 0.0
    %1600 = vmatpush1.msra.mxu0 0.0
    %1601 = vmatprep.subr.mxu0 0.0
    %1602 = vmatpush1.msra.mxu0 0.0
    %1603 = vmatprep.subr.mxu0 0.0
    %1604 = vmatpush1.msra.mxu0 0.0
    %1605 = vmatprep.subr.mxu0 0.0
    %1606 = vmatpush1.msra.mxu0 0.0
    %1607 = vmatprep.mubr.f32.mxu0 0.0
    %1608 = vmatmul.mubr.f32.gmra.mrb[0].mxu0 %v1541
    %v1609 = vpop.f32.mrb[0].mxu0
    %v1610 = vadd.f32 %v71, %v1609
    %v1611 = vpop.f32.mrb[0].mxu0
    %v1612 = vadd.f32 %v75, %v1611
    %1613 = vdwg.mxu0
    %1614 = vmatprep.subr.mxu0 0.0
    %1615 = vmatpush1.msra.mxu0 %v573
    %1616 = vmatprep.subr.mxu0 0.0
    %1617 = vmatpush1.msra.mxu0 %v576
    %1618 = vmatprep.subr.mxu0 0.0
    %1619 = vmatpush1.msra.mxu0 %v579
    %1620 = vmatprep.subr.mxu0 0.0
    %1621 = vmatpush1.msra.mxu0 %v582
    %1622 = vmatprep.subr.mxu0 0.0
    %1623 = vmatpush1.msra.mxu0 0.0
    %1624 = vmatprep.subr.mxu0 0.0
    %1625 = vmatpush1.msra.mxu0 0.0
    %1626 = vmatprep.subr.mxu0 0.0
    %1627 = vmatpush1.msra.mxu0 0.0
    %1628 = vmatprep.subr.mxu0 0.0
    %1629 = vmatpush1.msra.mxu0 0.0
    %1630 = vmatprep.subr.mxu0 0.0
    %1631 = vmatpush1.msra.mxu0 0.0
    %1632 = vmatprep.subr.mxu0 0.0
    %1633 = vmatpush1.msra.mxu0 0.0
    %1634 = vmatprep.subr.mxu0 0.0
    %1635 = vmatpush1.msra.mxu0 0.0
    %1636 = vmatprep.subr.mxu0 0.0
    %1637 = vmatpush1.msra.mxu0 0.0
    %1638 = vmatprep.subr.mxu0 0.0
    %1639 = vmatpush1.msra.mxu0 0.0
    %1640 = vmatprep.subr.mxu0 0.0
    %1641 = vmatpush1.msra.mxu0 0.0
    %1642 = vmatprep.subr.mxu0 0.0
    %1643 = vmatpush1.msra.mxu0 0.0
    %1644 = vmatprep.subr.mxu0 0.0
    %1645 = vmatpush1.msra.mxu0 0.0
    %1646 = vmatprep.subr.mxu0 0.0
    %1647 = vmatpush1.msra.mxu0 0.0
    %1648 = vmatprep.subr.mxu0 0.0
    %1649 = vmatpush1.msra.mxu0 0.0
    %1650 = vmatprep.subr.mxu0 0.0
    %1651 = vmatpush1.msra.mxu0 0.0
    %1652 = vmatprep.subr.mxu0 0.0
    %1653 = vmatpush1.msra.mxu0 0.0
    %1654 = vmatprep.subr.mxu0 0.0
    %1655 = vmatpush1.msra.mxu0 0.0
    %1656 = vmatprep.subr.mxu0 0.0
    %1657 = vmatpush1.msra.mxu0 0.0
    %1658 = vmatprep.subr.mxu0 0.0
    %1659 = vmatpush1.msra.mxu0 0.0
    %1660 = vmatprep.subr.mxu0 0.0
    %1661 = vmatpush1.msra.mxu0 0.0
    %1662 = vmatprep.subr.mxu0 0.0
    %1663 = vmatpush1.msra.mxu0 0.0
    %1664 = vmatprep.subr.mxu0 0.0
    %1665 = vmatpush1.msra.mxu0 0.0
    %1666 = vmatprep.subr.mxu0 0.0
    %1667 = vmatpush1.msra.mxu0 0.0
    %1668 = vmatprep.subr.mxu0 0.0
    %1669 = vmatpush1.msra.mxu0 0.0
    %1670 = vmatprep.subr.mxu0 0.0
    %1671 = vmatpush1.msra.mxu0 0.0
    %1672 = vmatprep.subr.mxu0 0.0
    %1673 = vmatpush1.msra.mxu0 0.0
    %1674 = vmatprep.subr.mxu0 0.0
    %1675 = vmatpush1.msra.mxu0 0.0
    %1676 = vmatprep.subr.mxu0 0.0
    %1677 = vmatpush1.msra.mxu0 0.0
    %1678 = vmatprep.mubr.f32.mxu0 0.0
    %1679 = vmatmul.mubr.f32.gmra.mrb[0].mxu0 %v1541
    %v1680 = vpop.f32.mrb[0].mxu0
    %v1681 = vadd.f32 %v79, %v1680
    %v1682 = vpop.f32.mrb[0].mxu0
    %1683 = vdwg.mxu0
    %v1685 = vsel %vm405, %v1374, 0
    %1687 = vmatprep.subr.mxu0 %v728
    %1688 = vmatpush1.msra.mxu0 %v727
    %1689 = vmatprep.subr.mxu0 %v731
    %1690 = vmatpush1.msra.mxu0 %v730
    %1691 = vmatprep.subr.mxu0 %v734
    %1692 = vmatpush1.msra.mxu0 %v733
    %1693 = vmatprep.subr.mxu0 %v737
    %1694 = vmatpush1.msra.mxu0 %v736
    %1695 = vmatprep.subr.mxu0 0.0
    %1696 = vmatpush1.msra.mxu0 0.0
    %1697 = vmatprep.subr.mxu0 0.0
    %1698 = vmatpush1.msra.mxu0 0.0
    %1699 = vmatprep.subr.mxu0 0.0
    %1700 = vmatpush1.msra.mxu0 0.0
    %1701 = vmatprep.subr.mxu0 0.0
    %1702 = vmatpush1.msra.mxu0 0.0
    %1703 = vmatprep.subr.mxu0 0.0
    %1704 = vmatpush1.msra.mxu0 0.0
    %1705 = vmatprep.subr.mxu0 0.0
    %1706 = vmatpush1.msra.mxu0 0.0
    %1707 = vmatprep.subr.mxu0 0.0
    %1708 = vmatpush1.msra.mxu0 0.0
    %1709 = vmatprep.subr.mxu0 0.0
    %1710 = vmatpush1.msra.mxu0 0.0
    %1711 = vmatprep.subr.mxu0 0.0
    %1712 = vmatpush1.msra.mxu0 0.0
    %1713 = vmatprep.subr.mxu0 0.0
    %1714 = vmatpush1.msra.mxu0 0.0
    %1715 = vmatprep.subr.mxu0 0.0
    %1716 = vmatpush1.msra.mxu0 0.0
    %1717 = vmatprep.subr.mxu0 0.0
    %1718 = vmatpush1.msra.mxu0 0.0
    %1719 = vmatprep.subr.mxu0 0.0
    %1720 = vmatpush1.msra.mxu0 0.0
    %1721 = vmatprep.subr.mxu0 0.0
    %1722 = vmatpush1.msra.mxu0 0.0
    %1723 = vmatprep.subr.mxu0 0.0
    %1724 = vmatpush1.msra.mxu0 0.0
    %1725 = vmatprep.subr.mxu0 0.0
    %1726 = vmatpush1.msra.mxu0 0.0
    %1727 = vmatprep.subr.mxu0 0.0
    %1728 = vmatpush1.msra.mxu0 0.0
    %1729 = vmatprep.subr.mxu0 0.0
    %1730 = vmatpush1.msra.mxu0 0.0
    %1731 = vmatprep.subr.mxu0 0.0
    %1732 = vmatpush1.msra.mxu0 0.0
    %1733 = vmatprep.subr.mxu0 0.0
    %1734 = vmatpush1.msra.mxu0 0.0
    %1735 = vmatprep.subr.mxu0 0.0
    %1736 = vmatpush1.msra.mxu0 0.0
    %1737 = vmatprep.subr.mxu0 0.0
    %1738 = vmatpush1.msra.mxu0 0.0
    %1739 = vmatprep.subr.mxu0 0.0
    %1740 = vmatpush1.msra.mxu0 0.0
    %1741 = vmatprep.subr.mxu0 0.0
    %1742 = vmatpush1.msra.mxu0 0.0
    %1743 = vmatprep.subr.mxu0 0.0
    %1744 = vmatpush1.msra.mxu0 0.0
    %1745 = vmatprep.subr.mxu0 0.0
    %1746 = vmatpush1.msra.mxu0 0.0
    %1747 = vmatprep.subr.mxu0 0.0
    %1748 = vmatpush1.msra.mxu0 0.0
    %1749 = vmatprep.subr.mxu0 0.0
    %1750 = vmatpush1.msra.mxu0 0.0
    %1751 = vmatprep.mubr.f32.mxu0 0.0
    %1752 = vmatmul.mubr.f32.gmra.mrb[0].mxu0 %v1685
    %v1753 = vpop.f32.mrb[0].mxu0
    %v1754 = vadd.f32 0.0, %v1753
    %v1755 = vpop.f32.mrb[0].mxu0
    %v1756 = vadd.f32 0.0, %v1755
    %1757 = vdwg.mxu0
    %1758 = vmatprep.subr.mxu0 0.0
    %1759 = vmatpush1.msra.mxu0 %v729
    %1760 = vmatprep.subr.mxu0 0.0
    %1761 = vmatpush1.msra.mxu0 %v732
    %1762 = vmatprep.subr.mxu0 0.0
    %1763 = vmatpush1.msra.mxu0 %v735
    %1764 = vmatprep.subr.mxu0 0.0
    %1765 = vmatpush1.msra.mxu0 %v738
    %1766 = vmatprep.subr.mxu0 0.0
    %1767 = vmatpush1.msra.mxu0 0.0
    %1768 = vmatprep.subr.mxu0 0.0
    %1769 = vmatpush1.msra.mxu0 0.0
    %1770 = vmatprep.subr.mxu0 0.0
    %1771 = vmatpush1.msra.mxu0 0.0
    %1772 = vmatprep.subr.mxu0 0.0
    %1773 = vmatpush1.msra.mxu0 0.0
    %1774 = vmatprep.subr.mxu0 0.0
    %1775 = vmatpush1.msra.mxu0 0.0
    %1776 = vmatprep.subr.mxu0 0.0
    %1777 = vmatpush1.msra.mxu0 0.0
    %1778 = vmatprep.subr.mxu0 0.0
    %1779 = vmatpush1.msra.mxu0 0.0
    %1780 = vmatprep.subr.mxu0 0.0
    %1781 = vmatpush1.msra.mxu0 0.0
    %1782 = vmatprep.subr.mxu0 0.0
    %1783 = vmatpush1.msra.mxu0 0.0
    %1784 = vmatprep.subr.mxu0 0.0
    %1785 = vmatpush1.msra.mxu0 0.0
    %1786 = vmatprep.subr.mxu0 0.0
    %1787 = vmatpush1.msra.mxu0 0.0
    %1788 = vmatprep.subr.mxu0 0.0
    %1789 = vmatpush1.msra.mxu0 0.0
    %1790 = vmatprep.subr.mxu0 0.0
    %1791 = vmatpush1.msra.mxu0 0.0
    %1792 = vmatprep.subr.mxu0 0.0
    %1793 = vmatpush1.msra.mxu0 0.0
    %1794 = vmatprep.subr.mxu0 0.0
    %1795 = vmatpush1.msra.mxu0 0.0
    %1796 = vmatprep.subr.mxu0 0.0
    %1797 = vmatpush1.msra.mxu0 0.0
    %1798 = vmatprep.subr.mxu0 0.0
    %1799 = vmatpush1.msra.mxu0 0.0
    %1800 = vmatprep.subr.mxu0 0.0
    %1801 = vmatpush1.msra.mxu0 0.0
    %1802 = vmatprep.subr.mxu0 0.0
    %1803 = vmatpush1.msra.mxu0 0.0
    %1804 = vmatprep.subr.mxu0 0.0
    %1805 = vmatpush1.msra.mxu0 0.0
    %1806 = vmatprep.subr.mxu0 0.0
    %1807 = vmatpush1.msra.mxu0 0.0
    %1808 = vmatprep.subr.mxu0 0.0
    %1809 = vmatpush1.msra.mxu0 0.0
    %1810 = vmatprep.subr.mxu0 0.0
    %1811 = vmatpush1.msra.mxu0 0.0
    %1812 = vmatprep.subr.mxu0 0.0
    %1813 = vmatpush1.msra.mxu0 0.0
    %1814 = vmatprep.subr.mxu0 0.0
    %1815 = vmatpush1.msra.mxu0 0.0
    %1816 = vmatprep.subr.mxu0 0.0
    %1817 = vmatpush1.msra.mxu0 0.0
    %1818 = vmatprep.subr.mxu0 0.0
    %1819 = vmatpush1.msra.mxu0 0.0
    %1820 = vmatprep.subr.mxu0 0.0
    %1821 = vmatpush1.msra.mxu0 0.0
    %1822 = vmatprep.mubr.f32.mxu0 0.0
    %1823 = vmatmul.mubr.f32.gmra.mrb[0].mxu0 %v1685
    %v1824 = vpop.f32.mrb[0].mxu0
    %v1825 = vadd.f32 0.0, %v1824
    %v1826 = vpop.f32.mrb[0].mxu0
    %1827 = vdwg.mxu0
    %v1828 = vadd.f32 %v1610, %v1754
    %v1829 = vadd.f32 %v1612, %v1756
    %v1830 = vxor.u32 %v1828, 2147483648
    %v1831 = vmul.f32 %v1830, 1.442695
    %v1832 = vpow.pop %v1831
    %v1833 = vadd.f32 %v1832, 1.0
    %v1834 = vrcp.pop %v1833
    %v1835 = vmul.f32 1.0, %v1834
    %v1836 = vxor.u32 %v1829, 2147483648
    %v1837 = vmul.f32 %v1836, 1.442695
    %v1838 = vpow.pop %v1837
    %v1839 = vadd.f32 %v1838, 1.0
    %v1840 = vrcp.pop %v1839
    %v1841 = vmul.f32 1.0, %v1840
    %v1842 = vadd.f32 %v1825, %v84
    %v1843 = vmul.f32 %v1835, %v1842
    %v1844 = vadd.f32 %v1681, %v1843
    %v1845 = vtanh.pop %v1844
    %v1846 = vsub.f32 %v1374, %v1845
    %v1847 = vmul.f32 %v1841, %v1846
    %v1848 = vadd.f32 %v1845, %v1847
    %v1849 = vld [vmem:[#allocation2 + $0x48] sm:$0xff]
    %v1850 = vld [vmem:[#allocation2 + $0x50] sm:$0xff]
    %v1851 = vld [vmem:[#allocation2 + $0x58] sm:$0xff]
    %1852 = vmatprep.subr.mxu0 %v394
    %1853 = vmatpush1.msra.mxu0 %v393
    %1854 = vmatprep.subr.mxu0 %v397
    %1855 = vmatpush1.msra.mxu0 %v396
    %1856 = vmatprep.subr.mxu0 %v400
    %1857 = vmatpush1.msra.mxu0 %v399
    %1858 = vmatprep.subr.mxu0 %v403
    %1859 = vmatpush1.msra.mxu0 %v402
    %1860 = vmatprep.subr.mxu0 0.0
    %1861 = vmatpush1.msra.mxu0 0.0
    %1862 = vmatprep.subr.mxu0 0.0
    %1863 = vmatpush1.msra.mxu0 0.0
    %1864 = vmatprep.subr.mxu0 0.0
    %1865 = vmatpush1.msra.mxu0 0.0
    %1866 = vmatprep.subr.mxu0 0.0
    %1867 = vmatpush1.msra.mxu0 0.0
    %1868 = vmatprep.subr.mxu0 0.0
    %1869 = vmatpush1.msra.mxu0 0.0
    %1870 = vmatprep.subr.mxu0 0.0
    %1871 = vmatpush1.msra.mxu0 0.0
    %1872 = vmatprep.subr.mxu0 0.0
    %1873 = vmatpush1.msra.mxu0 0.0
    %1874 = vmatprep.subr.mxu0 0.0
    %1875 = vmatpush1.msra.mxu0 0.0
    %1876 = vmatprep.subr.mxu0 0.0
    %1877 = vmatpush1.msra.mxu0 0.0
    %1878 = vmatprep.subr.mxu0 0.0
    %1879 = vmatpush1.msra.mxu0 0.0
    %1880 = vmatprep.subr.mxu0 0.0
    %1881 = vmatpush1.msra.mxu0 0.0
    %1882 = vmatprep.subr.mxu0 0.0
    %1883 = vmatpush1.msra.mxu0 0.0
    %1884 = vmatprep.subr.mxu0 0.0
    %1885 = vmatpush1.msra.mxu0 0.0
    %1886 = vmatprep.subr.mxu0 0.0
    %1887 = vmatpush1.msra.mxu0 0.0
    %1888 = vmatprep.subr.mxu0 0.0
    %1889 = vmatpush1.msra.mxu0 0.0
    %1890 = vmatprep.subr.mxu0 0.0
    %1891 = vmatpush1.msra.mxu0 0.0
    %1892 = vmatprep.subr.mxu0 0.0
    %1893 = vmatpush1.msra.mxu0 0.0
    %1894 = vmatprep.subr.mxu0 0.0
    %1895 = vmatpush1.msra.mxu0 0.0
    %1896 = vmatprep.subr.mxu0 0.0
    %1897 = vmatpush1.msra.mxu0 0.0
    %1898 = vmatprep.subr.mxu0 0.0
    %1899 = vmatpush1.msra.mxu0 0.0
    %1900 = vmatprep.subr.mxu0 0.0
    %1901 = vmatpush1.msra.mxu0 0.0
    %1902 = vmatprep.subr.mxu0 0.0
    %1903 = vmatpush1.msra.mxu0 0.0
    %1904 = vmatprep.subr.mxu0 0.0
    %1905 = vmatpush1.msra.mxu0 0.0
    %1906 = vmatprep.subr.mxu0 0.0
    %1907 = vmatpush1.msra.mxu0 0.0
    %1908 = vmatprep.subr.mxu0 0.0
    %1909 = vmatpush1.msra.mxu0 0.0
    %1910 = vmatprep.subr.mxu0 0.0
    %1911 = vmatpush1.msra.mxu0 0.0
    %1912 = vmatprep.subr.mxu0 0.0
    %1913 = vmatpush1.msra.mxu0 0.0
    %1914 = vmatprep.subr.mxu0 0.0
    %1915 = vmatpush1.msra.mxu0 0.0
    %1916 = vmatprep.mubr.f32.mxu0 0.0
    %1917 = vmatmul.mubr.f32.gmra.mrb[0].mxu0 %v1541
    %v1918 = vpop.f32.mrb[0].mxu0
    %v1919 = vadd.f32 0.0, %v1918
    %v1920 = vpop.f32.mrb[0].mxu0
    %v1921 = vadd.f32 0.0, %v1920
    %1922 = vdwg.mxu0
    %1923 = vmatprep.subr.mxu0 0.0
    %1924 = vmatpush1.msra.mxu0 %v395
    %1925 = vmatprep.subr.mxu0 0.0
    %1926 = vmatpush1.msra.mxu0 %v398
    %1927 = vmatprep.subr.mxu0 0.0
    %1928 = vmatpush1.msra.mxu0 %v401
    %1929 = vmatprep.subr.mxu0 0.0
    %1930 = vmatpush1.msra.mxu0 %v404
    %1931 = vmatprep.subr.mxu0 0.0
    %1932 = vmatpush1.msra.mxu0 0.0
    %1933 = vmatprep.subr.mxu0 0.0
    %1934 = vmatpush1.msra.mxu0 0.0
    %1935 = vmatprep.subr.mxu0 0.0
    %1936 = vmatpush1.msra.mxu0 0.0
    %1937 = vmatprep.subr.mxu0 0.0
    %1938 = vmatpush1.msra.mxu0 0.0
    %1939 = vmatprep.subr.mxu0 0.0
    %1940 = vmatpush1.msra.mxu0 0.0
    %1941 = vmatprep.subr.mxu0 0.0
    %1942 = vmatpush1.msra.mxu0 0.0
    %1943 = vmatprep.subr.mxu0 0.0
    %1944 = vmatpush1.msra.mxu0 0.0
    %1945 = vmatprep.subr.mxu0 0.0
    %1946 = vmatpush1.msra.mxu0 0.0
    %1947 = vmatprep.subr.mxu0 0.0
    %1948 = vmatpush1.msra.mxu0 0.0
    %1949 = vmatprep.subr.mxu0 0.0
    %1950 = vmatpush1.msra.mxu0 0.0
    %1951 = vmatprep.subr.mxu0 0.0
    %1952 = vmatpush1.msra.mxu0 0.0
    %1953 = vmatprep.subr.mxu0 0.0
    %1954 = vmatpush1.msra.mxu0 0.0
    %1955 = vmatprep.subr.mxu0 0.0
    %1956 = vmatpush1.msra.mxu0 0.0
    %1957 = vmatprep.subr.mxu0 0.0
    %1958 = vmatpush1.msra.mxu0 0.0
    %1959 = vmatprep.subr.mxu0 0.0
    %1960 = vmatpush1.msra.mxu0 0.0
    %1961 = vmatprep.subr.mxu0 0.0
    %1962 = vmatpush1.msra.mxu0 0.0
    %1963 = vmatprep.subr.mxu0 0.0
    %1964 = vmatpush1.msra.mxu0 0.0
    %1965 = vmatprep.subr.mxu0 0.0
    %1966 = vmatpush1.msra.mxu0 0.0
    %1967 = vmatprep.subr.mxu0 0.0
    %1968 = vmatpush1.msra.mxu0 0.0
    %1969 = vmatprep.subr.mxu0 0.0
    %1970 = vmatpush1.msra.mxu0 0.0
    %1971 = vmatprep.subr.mxu0 0.0
    %1972 = vmatpush1.msra.mxu0 0.0
    %1973 = vmatprep.subr.mxu0 0.0
    %1974 = vmatpush1.msra.mxu0 0.0
    %1975 = vmatprep.subr.mxu0 0.0
    %1976 = vmatpush1.msra.mxu0 0.0
    %1977 = vmatprep.subr.mxu0 0.0
    %1978 = vmatpush1.msra.mxu0 0.0
    %1979 = vmatprep.subr.mxu0 0.0
    %1980 = vmatpush1.msra.mxu0 0.0
    %1981 = vmatprep.subr.mxu0 0.0
    %1982 = vmatpush1.msra.mxu0 0.0
    %1983 = vmatprep.subr.mxu0 0.0
    %1984 = vmatpush1.msra.mxu0 0.0
    %1985 = vmatprep.subr.mxu0 0.0
    %1986 = vmatpush1.msra.mxu0 0.0
    %1987 = vmatprep.mubr.f32.mxu0 0.0
    %1988 = vmatmul.mubr.f32.gmra.mrb[0].mxu0 %v1541
    %v1989 = vpop.f32.mrb[0].mxu0
    %v1990 = vadd.f32 0.0, %v1989
    %v1991 = vpop.f32.mrb[0].mxu0
    %1992 = vdwg.mxu0
    %v1993 = vadd.f32 %v1849, %v1919
    %v1994 = vadd.f32 %v1850, %v1921
    %v1995 = vxor.u32 %v1993, 2147483648
    %v1996 = vmul.f32 %v1995, 1.442695
    %v1997 = vpow.pop %v1996
    %v1998 = vadd.f32 %v1997, 1.0
    %v1999 = vrcp.pop %v1998
    %v2000 = vmul.f32 1.0, %v1999
    %v2001 = vxor.u32 %v1994, 2147483648
    %v2002 = vmul.f32 %v2001, 1.442695
    %v2003 = vpow.pop %v2002
    %v2004 = vadd.f32 %v2003, 1.0
    %v2005 = vrcp.pop %v2004
    %v2006 = vmul.f32 1.0, %v2005
    %v2007 = vadd.f32 %v1990, %v83
    %v2008 = vmul.f32 %v2000, %v2007
    %v2009 = vadd.f32 %v1851, %v2008
    %v2010 = vtanh.pop %v2009
    %v2011 = vsub.f32 %v1539, %v2010
    %v2012 = vmul.f32 %v2006, %v2011
    %v2013 = vadd.f32 %v2010, %v2012
    %v2015 = vsel %vm405, %v2013, 0
    %2017 = vmatprep.subr.mxu0 %v572
    %2018 = vmatpush1.msra.mxu0 %v571
    %2019 = vmatprep.subr.mxu0 %v575
    %2020 = vmatpush1.msra.mxu0 %v574
    %2021 = vmatprep.subr.mxu0 %v578
    %2022 = vmatpush1.msra.mxu0 %v577
    %2023 = vmatprep.subr.mxu0 %v581
    %2024 = vmatpush1.msra.mxu0 %v580
    %2025 = vmatprep.subr.mxu0 0.0
    %2026 = vmatpush1.msra.mxu0 0.0
    %2027 = vmatprep.subr.mxu0 0.0
    %2028 = vmatpush1.msra.mxu0 0.0
    %2029 = vmatprep.subr.mxu0 0.0
    %2030 = vmatpush1.msra.mxu0 0.0
    %2031 = vmatprep.subr.mxu0 0.0
    %2032 = vmatpush1.msra.mxu0 0.0
    %2033 = vmatprep.subr.mxu0 0.0
    %2034 = vmatpush1.msra.mxu0 0.0
    %2035 = vmatprep.subr.mxu0 0.0
    %2036 = vmatpush1.msra.mxu0 0.0
    %2037 = vmatprep.subr.mxu0 0.0
    %2038 = vmatpush1.msra.mxu0 0.0
    %2039 = vmatprep.subr.mxu0 0.0
    %2040 = vmatpush1.msra.mxu0 0.0
    %2041 = vmatprep.subr.mxu0 0.0
    %2042 = vmatpush1.msra.mxu0 0.0
    %2043 = vmatprep.subr.mxu0 0.0
    %2044 = vmatpush1.msra.mxu0 0.0
    %2045 = vmatprep.subr.mxu0 0.0
    %2046 = vmatpush1.msra.mxu0 0.0
    %2047 = vmatprep.subr.mxu0 0.0
    %2048 = vmatpush1.msra.mxu0 0.0
    %2049 = vmatprep.subr.mxu0 0.0
    %2050 = vmatpush1.msra.mxu0 0.0
    %2051 = vmatprep.subr.mxu0 0.0
    %2052 = vmatpush1.msra.mxu0 0.0
    %2053 = vmatprep.subr.mxu0 0.0
    %2054 = vmatpush1.msra.mxu0 0.0
    %2055 = vmatprep.subr.mxu0 0.0
    %2056 = vmatpush1.msra.mxu0 0.0
    %2057 = vmatprep.subr.mxu0 0.0
    %2058 = vmatpush1.msra.mxu0 0.0
    %2059 = vmatprep.subr.mxu0 0.0
    %2060 = vmatpush1.msra.mxu0 0.0
    %2061 = vmatprep.subr.mxu0 0.0
    %2062 = vmatpush1.msra.mxu0 0.0
    %2063 = vmatprep.subr.mxu0 0.0
    %2064 = vmatpush1.msra.mxu0 0.0
    %2065 = vmatprep.subr.mxu0 0.0
    %2066 = vmatpush1.msra.mxu0 0.0
    %2067 = vmatprep.subr.mxu0 0.0
    %2068 = vmatpush1.msra.mxu0 0.0
    %2069 = vmatprep.subr.mxu0 0.0
    %2070 = vmatpush1.msra.mxu0 0.0
    %2071 = vmatprep.subr.mxu0 0.0
    %2072 = vmatpush1.msra.mxu0 0.0
    %2073 = vmatprep.subr.mxu0 0.0
    %2074 = vmatpush1.msra.mxu0 0.0
    %2075 = vmatprep.subr.mxu0 0.0
    %2076 = vmatpush1.msra.mxu0 0.0
    %2077 = vmatprep.subr.mxu0 0.0
    %2078 = vmatpush1.msra.mxu0 0.0
    %2079 = vmatprep.subr.mxu0 0.0
    %2080 = vmatpush1.msra.mxu0 0.0
    %2081 = vmatprep.mubr.f32.mxu0 0.0
    %2082 = vmatmul.mubr.f32.gmra.mrb[0].mxu0 %v2015
    %v2083 = vpop.f32.mrb[0].mxu0
    %v2084 = vadd.f32 %v71, %v2083
    %v2085 = vpop.f32.mrb[0].mxu0
    %v2086 = vadd.f32 %v75, %v2085
    %2087 = vdwg.mxu0
    %2088 = vmatprep.subr.mxu0 0.0
    %2089 = vmatpush1.msra.mxu0 %v573
    %2090 = vmatprep.subr.mxu0 0.0
    %2091 = vmatpush1.msra.mxu0 %v576
    %2092 = vmatprep.subr.mxu0 0.0
    %2093 = vmatpush1.msra.mxu0 %v579
    %2094 = vmatprep.subr.mxu0 0.0
    %2095 = vmatpush1.msra.mxu0 %v582
    %2096 = vmatprep.subr.mxu0 0.0
    %2097 = vmatpush1.msra.mxu0 0.0
    %2098 = vmatprep.subr.mxu0 0.0
    %2099 = vmatpush1.msra.mxu0 0.0
    %2100 = vmatprep.subr.mxu0 0.0
    %2101 = vmatpush1.msra.mxu0 0.0
    %2102 = vmatprep.subr.mxu0 0.0
    %2103 = vmatpush1.msra.mxu0 0.0
    %2104 = vmatprep.subr.mxu0 0.0
    %2105 = vmatpush1.msra.mxu0 0.0
    %2106 = vmatprep.subr.mxu0 0.0
    %2107 = vmatpush1.msra.mxu0 0.0
    %2108 = vmatprep.subr.mxu0 0.0
    %2109 = vmatpush1.msra.mxu0 0.0
    %2110 = vmatprep.subr.mxu0 0.0
    %2111 = vmatpush1.msra.mxu0 0.0
    %2112 = vmatprep.subr.mxu0 0.0
    %2113 = vmatpush1.msra.mxu0 0.0
    %2114 = vmatprep.subr.mxu0 0.0
    %2115 = vmatpush1.msra.mxu0 0.0
    %2116 = vmatprep.subr.mxu0 0.0
    %2117 = vmatpush1.msra.mxu0 0.0
    %2118 = vmatprep.subr.mxu0 0.0
    %2119 = vmatpush1.msra.mxu0 0.0
    %2120 = vmatprep.subr.mxu0 0.0
    %2121 = vmatpush1.msra.mxu0 0.0
    %2122 = vmatprep.subr.mxu0 0.0
    %2123 = vmatpush1.msra.mxu0 0.0
    %2124 = vmatprep.subr.mxu0 0.0
    %2125 = vmatpush1.msra.mxu0 0.0
    %2126 = vmatprep.subr.mxu0 0.0
    %2127 = vmatpush1.msra.mxu0 0.0
    %2128 = vmatprep.subr.mxu0 0.0
    %2129 = vmatpush1.msra.mxu0 0.0
    %2130 = vmatprep.subr.mxu0 0.0
    %2131 = vmatpush1.msra.mxu0 0.0
    %2132 = vmatprep.subr.mxu0 0.0
    %2133 = vmatpush1.msra.mxu0 0.0
    %2134 = vmatprep.subr.mxu0 0.0
    %2135 = vmatpush1.msra.mxu0 0.0
    %2136 = vmatprep.subr.mxu0 0.0
    %2137 = vmatpush1.msra.mxu0 0.0
    %2138 = vmatprep.subr.mxu0 0.0
    %2139 = vmatpush1.msra.mxu0 0.0
    %2140 = vmatprep.subr.mxu0 0.0
    %2141 = vmatpush1.msra.mxu0 0.0
    %2142 = vmatprep.subr.mxu0 0.0
    %2143 = vmatpush1.msra.mxu0 0.0
    %2144 = vmatprep.subr.mxu0 0.0
    %2145 = vmatpush1.msra.mxu0 0.0
    %2146 = vmatprep.subr.mxu0 0.0
    %2147 = vmatpush1.msra.mxu0 0.0
    %2148 = vmatprep.subr.mxu0 0.0
    %2149 = vmatpush1.msra.mxu0 0.0
    %2150 = vmatprep.subr.mxu0 0.0
    %2151 = vmatpush1.msra.mxu0 0.0
    %2152 = vmatprep.mubr.f32.mxu0 0.0
    %2153 = vmatmul.mubr.f32.gmra.mrb[0].mxu0 %v2015
    %v2154 = vpop.f32.mrb[0].mxu0
    %v2155 = vadd.f32 %v79, %v2154
    %v2156 = vpop.f32.mrb[0].mxu0
    %2157 = vdwg.mxu0
    %v2159 = vsel %vm405, %v1848, 0
    %2161 = vmatprep.subr.mxu0 %v728
    %2162 = vmatpush1.msra.mxu0 %v727
    %2163 = vmatprep.subr.mxu0 %v731
    %2164 = vmatpush1.msra.mxu0 %v730
    %2165 = vmatprep.subr.mxu0 %v734
    %2166 = vmatpush1.msra.mxu0 %v733
    %2167 = vmatprep.subr.mxu0 %v737
    %2168 = vmatpush1.msra.mxu0 %v736
    %2169 = vmatprep.subr.mxu0 0.0
    %2170 = vmatpush1.msra.mxu0 0.0
    %2171 = vmatprep.subr.mxu0 0.0
    %2172 = vmatpush1.msra.mxu0 0.0
    %2173 = vmatprep.subr.mxu0 0.0
    %2174 = vmatpush1.msra.mxu0 0.0
    %2175 = vmatprep.subr.mxu0 0.0
    %2176 = vmatpush1.msra.mxu0 0.0
    %2177 = vmatprep.subr.mxu0 0.0
    %2178 = vmatpush1.msra.mxu0 0.0
    %2179 = vmatprep.subr.mxu0 0.0
    %2180 = vmatpush1.msra.mxu0 0.0
    %2181 = vmatprep.subr.mxu0 0.0
    %2182 = vmatpush1.msra.mxu0 0.0
    %2183 = vmatprep.subr.mxu0 0.0
    %2184 = vmatpush1.msra.mxu0 0.0
    %2185 = vmatprep.subr.mxu0 0.0
    %2186 = vmatpush1.msra.mxu0 0.0
    %2187 = vmatprep.subr.mxu0 0.0
    %2188 = vmatpush1.msra.mxu0 0.0
    %2189 = vmatprep.subr.mxu0 0.0
    %2190 = vmatpush1.msra.mxu0 0.0
    %2191 = vmatprep.subr.mxu0 0.0
    %2192 = vmatpush1.msra.mxu0 0.0
    %2193 = vmatprep.subr.mxu0 0.0
    %2194 = vmatpush1.msra.mxu0 0.0
    %2195 = vmatprep.subr.mxu0 0.0
    %2196 = vmatpush1.msra.mxu0 0.0
    %2197 = vmatprep.subr.mxu0 0.0
    %2198 = vmatpush1.msra.mxu0 0.0
    %2199 = vmatprep.subr.mxu0 0.0
    %2200 = vmatpush1.msra.mxu0 0.0
    %2201 = vmatprep.subr.mxu0 0.0
    %2202 = vmatpush1.msra.mxu0 0.0
    %2203 = vmatprep.subr.mxu0 0.0
    %2204 = vmatpush1.msra.mxu0 0.0
    %2205 = vmatprep.subr.mxu0 0.0
    %2206 = vmatpush1.msra.mxu0 0.0
    %2207 = vmatprep.subr.mxu0 0.0
    %2208 = vmatpush1.msra.mxu0 0.0
    %2209 = vmatprep.subr.mxu0 0.0
    %2210 = vmatpush1.msra.mxu0 0.0
    %2211 = vmatprep.subr.mxu0 0.0
    %2212 = vmatpush1.msra.mxu0 0.0
    %2213 = vmatprep.subr.mxu0 0.0
    %2214 = vmatpush1.msra.mxu0 0.0
    %2215 = vmatprep.subr.mxu0 0.0
    %2216 = vmatpush1.msra.mxu0 0.0
    %2217 = vmatprep.subr.mxu0 0.0
    %2218 = vmatpush1.msra.mxu0 0.0
    %2219 = vmatprep.subr.mxu0 0.0
    %2220 = vmatpush1.msra.mxu0 0.0
    %2221 = vmatprep.subr.mxu0 0.0
    %2222 = vmatpush1.msra.mxu0 0.0
    %2223 = vmatprep.subr.mxu0 0.0
    %2224 = vmatpush1.msra.mxu0 0.0
    %2225 = vmatprep.mubr.f32.mxu0 0.0
    %2226 = vmatmul.mubr.f32.gmra.mrb[0].mxu0 %v2159
    %v2227 = vpop.f32.mrb[0].mxu0
    %v2228 = vadd.f32 0.0, %v2227
    %v2229 = vpop.f32.mrb[0].mxu0
    %v2230 = vadd.f32 0.0, %v2229
    %2231 = vdwg.mxu0
    %2232 = vmatprep.subr.mxu0 0.0
    %2233 = vmatpush1.msra.mxu0 %v729
    %2234 = vmatprep.subr.mxu0 0.0
    %2235 = vmatpush1.msra.mxu0 %v732
    %2236 = vmatprep.subr.mxu0 0.0
    %2237 = vmatpush1.msra.mxu0 %v735
    %2238 = vmatprep.subr.mxu0 0.0
    %2239 = vmatpush1.msra.mxu0 %v738
    %2240 = vmatprep.subr.mxu0 0.0
    %2241 = vmatpush1.msra.mxu0 0.0
    %2242 = vmatprep.subr.mxu0 0.0
    %2243 = vmatpush1.msra.mxu0 0.0
    %2244 = vmatprep.subr.mxu0 0.0
    %2245 = vmatpush1.msra.mxu0 0.0
    %2246 = vmatprep.subr.mxu0 0.0
    %2247 = vmatpush1.msra.mxu0 0.0
    %2248 = vmatprep.subr.mxu0 0.0
    %2249 = vmatpush1.msra.mxu0 0.0
    %2250 = vmatprep.subr.mxu0 0.0
    %2251 = vmatpush1.msra.mxu0 0.0
    %2252 = vmatprep.subr.mxu0 0.0
    %2253 = vmatpush1.msra.mxu0 0.0
    %2254 = vmatprep.subr.mxu0 0.0
    %2255 = vmatpush1.msra.mxu0 0.0
    %2256 = vmatprep.subr.mxu0 0.0
    %2257 = vmatpush1.msra.mxu0 0.0
    %2258 = vmatprep.subr.mxu0 0.0
    %2259 = vmatpush1.msra.mxu0 0.0
    %2260 = vmatprep.subr.mxu0 0.0
    %2261 = vmatpush1.msra.mxu0 0.0
    %2262 = vmatprep.subr.mxu0 0.0
    %2263 = vmatpush1.msra.mxu0 0.0
    %2264 = vmatprep.subr.mxu0 0.0
    %2265 = vmatpush1.msra.mxu0 0.0
    %2266 = vmatprep.subr.mxu0 0.0
    %2267 = vmatpush1.msra.mxu0 0.0
    %2268 = vmatprep.subr.mxu0 0.0
    %2269 = vmatpush1.msra.mxu0 0.0
    %2270 = vmatprep.subr.mxu0 0.0
    %2271 = vmatpush1.msra.mxu0 0.0
    %2272 = vmatprep.subr.mxu0 0.0
    %2273 = vmatpush1.msra.mxu0 0.0
    %2274 = vmatprep.subr.mxu0 0.0
    %2275 = vmatpush1.msra.mxu0 0.0
    %2276 = vmatprep.subr.mxu0 0.0
    %2277 = vmatpush1.msra.mxu0 0.0
    %2278 = vmatprep.subr.mxu0 0.0
    %2279 = vmatpush1.msra.mxu0 0.0
    %2280 = vmatprep.subr.mxu0 0.0
    %2281 = vmatpush1.msra.mxu0 0.0
    %2282 = vmatprep.subr.mxu0 0.0
    %2283 = vmatpush1.msra.mxu0 0.0
    %2284 = vmatprep.subr.mxu0 0.0
    %2285 = vmatpush1.msra.mxu0 0.0
    %2286 = vmatprep.subr.mxu0 0.0
    %2287 = vmatpush1.msra.mxu0 0.0
    %2288 = vmatprep.subr.mxu0 0.0
    %2289 = vmatpush1.msra.mxu0 0.0
    %2290 = vmatprep.subr.mxu0 0.0
    %2291 = vmatpush1.msra.mxu0 0.0
    %2292 = vmatprep.subr.mxu0 0.0
    %2293 = vmatpush1.msra.mxu0 0.0
    %2294 = vmatprep.subr.mxu0 0.0
    %2295 = vmatpush1.msra.mxu0 0.0
    %2296 = vmatprep.mubr.f32.mxu0 0.0
    %2297 = vmatmul.mubr.f32.gmra.mrb[0].mxu0 %v2159
    %v2298 = vpop.f32.mrb[0].mxu0
    %v2299 = vadd.f32 0.0, %v2298
    %v2300 = vpop.f32.mrb[0].mxu0
    %2301 = vdwg.mxu0
    %v2302 = vadd.f32 %v2084, %v2228
    %v2303 = vadd.f32 %v2086, %v2230
    %v2304 = vxor.u32 %v2302, 2147483648
    %v2305 = vmul.f32 %v2304, 1.442695
    %v2306 = vpow.pop %v2305
    %v2307 = vadd.f32 %v2306, 1.0
    %v2308 = vrcp.pop %v2307
    %v2309 = vmul.f32 1.0, %v2308
    %v2310 = vxor.u32 %v2303, 2147483648
    %v2311 = vmul.f32 %v2310, 1.442695
    %v2312 = vpow.pop %v2311
    %v2313 = vadd.f32 %v2312, 1.0
    %v2314 = vrcp.pop %v2313
    %v2315 = vmul.f32 1.0, %v2314
    %v2316 = vadd.f32 %v2299, %v84
    %v2317 = vmul.f32 %v2309, %v2316
    %v2318 = vadd.f32 %v2155, %v2317
    %v2319 = vtanh.pop %v2318
    %v2320 = vsub.f32 %v1848, %v2319
    %v2321 = vmul.f32 %v2315, %v2320
    %v2322 = vadd.f32 %v2319, %v2321
    %v2323 = vld [vmem:[#allocation2 + $0x60] sm:$0xff]
    %v2324 = vld [vmem:[#allocation2 + $0x68] sm:$0xff]
    %v2325 = vld [vmem:[#allocation2 + $0x70] sm:$0xff]
    %2326 = vmatprep.subr.mxu0 %v394
    %2327 = vmatpush1.msra.mxu0 %v393
    %2328 = vmatprep.subr.mxu0 %v397
    %2329 = vmatpush1.msra.mxu0 %v396
    %2330 = vmatprep.subr.mxu0 %v400
    %2331 = vmatpush1.msra.mxu0 %v399
    %2332 = vmatprep.subr.mxu0 %v403
    %2333 = vmatpush1.msra.mxu0 %v402
    %2334 = vmatprep.subr.mxu0 0.0
    %2335 = vmatpush1.msra.mxu0 0.0
    %2336 = vmatprep.subr.mxu0 0.0
    %2337 = vmatpush1.msra.mxu0 0.0
    %2338 = vmatprep.subr.mxu0 0.0
    %2339 = vmatpush1.msra.mxu0 0.0
    %2340 = vmatprep.subr.mxu0 0.0
    %2341 = vmatpush1.msra.mxu0 0.0
    %2342 = vmatprep.subr.mxu0 0.0
    %2343 = vmatpush1.msra.mxu0 0.0
    %2344 = vmatprep.subr.mxu0 0.0
    %2345 = vmatpush1.msra.mxu0 0.0
    %2346 = vmatprep.subr.mxu0 0.0
    %2347 = vmatpush1.msra.mxu0 0.0
    %2348 = vmatprep.subr.mxu0 0.0
    %2349 = vmatpush1.msra.mxu0 0.0
    %2350 = vmatprep.subr.mxu0 0.0
    %2351 = vmatpush1.msra.mxu0 0.0
    %2352 = vmatprep.subr.mxu0 0.0
    %2353 = vmatpush1.msra.mxu0 0.0
    %2354 = vmatprep.subr.mxu0 0.0
    %2355 = vmatpush1.msra.mxu0 0.0
    %2356 = vmatprep.subr.mxu0 0.0
    %2357 = vmatpush1.msra.mxu0 0.0
    %2358 = vmatprep.subr.mxu0 0.0
    %2359 = vmatpush1.msra.mxu0 0.0
    %2360 = vmatprep.subr.mxu0 0.0
    %2361 = vmatpush1.msra.mxu0 0.0
    %2362 = vmatprep.subr.mxu0 0.0
    %2363 = vmatpush1.msra.mxu0 0.0
    %2364 = vmatprep.subr.mxu0 0.0
    %2365 = vmatpush1.msra.mxu0 0.0
    %2366 = vmatprep.subr.mxu0 0.0
    %2367 = vmatpush1.msra.mxu0 0.0
    %2368 = vmatprep.subr.mxu0 0.0
    %2369 = vmatpush1.msra.mxu0 0.0
    %2370 = vmatprep.subr.mxu0 0.0
    %2371 = vmatpush1.msra.mxu0 0.0
    %2372 = vmatprep.subr.mxu0 0.0
    %2373 = vmatpush1.msra.mxu0 0.0
    %2374 = vmatprep.subr.mxu0 0.0
    %2375 = vmatpush1.msra.mxu0 0.0
    %2376 = vmatprep.subr.mxu0 0.0
    %2377 = vmatpush1.msra.mxu0 0.0
    %2378 = vmatprep.subr.mxu0 0.0
    %2379 = vmatpush1.msra.mxu0 0.0
    %2380 = vmatprep.subr.mxu0 0.0
    %2381 = vmatpush1.msra.mxu0 0.0
    %2382 = vmatprep.subr.mxu0 0.0
    %2383 = vmatpush1.msra.mxu0 0.0
    %2384 = vmatprep.subr.mxu0 0.0
    %2385 = vmatpush1.msra.mxu0 0.0
    %2386 = vmatprep.subr.mxu0 0.0
    %2387 = vmatpush1.msra.mxu0 0.0
    %2388 = vmatprep.subr.mxu0 0.0
    %2389 = vmatpush1.msra.mxu0 0.0
    %2390 = vmatprep.mubr.f32.mxu0 0.0
    %2391 = vmatmul.mubr.f32.gmra.mrb[0].mxu0 %v2015
    %v2392 = vpop.f32.mrb[0].mxu0
    %v2393 = vadd.f32 0.0, %v2392
    %v2394 = vpop.f32.mrb[0].mxu0
    %v2395 = vadd.f32 0.0, %v2394
    %2396 = vdwg.mxu0
    %2397 = vmatprep.subr.mxu0 0.0
    %2398 = vmatpush1.msra.mxu0 %v395
    %2399 = vmatprep.subr.mxu0 0.0
    %2400 = vmatpush1.msra.mxu0 %v398
    %2401 = vmatprep.subr.mxu0 0.0
    %2402 = vmatpush1.msra.mxu0 %v401
    %2403 = vmatprep.subr.mxu0 0.0
    %2404 = vmatpush1.msra.mxu0 %v404
    %2405 = vmatprep.subr.mxu0 0.0
    %2406 = vmatpush1.msra.mxu0 0.0
    %2407 = vmatprep.subr.mxu0 0.0
    %2408 = vmatpush1.msra.mxu0 0.0
    %2409 = vmatprep.subr.mxu0 0.0
    %2410 = vmatpush1.msra.mxu0 0.0
    %2411 = vmatprep.subr.mxu0 0.0
    %2412 = vmatpush1.msra.mxu0 0.0
    %2413 = vmatprep.subr.mxu0 0.0
    %2414 = vmatpush1.msra.mxu0 0.0
    %2415 = vmatprep.subr.mxu0 0.0
    %2416 = vmatpush1.msra.mxu0 0.0
    %2417 = vmatprep.subr.mxu0 0.0
    %2418 = vmatpush1.msra.mxu0 0.0
    %2419 = vmatprep.subr.mxu0 0.0
    %2420 = vmatpush1.msra.mxu0 0.0
    %2421 = vmatprep.subr.mxu0 0.0
    %2422 = vmatpush1.msra.mxu0 0.0
    %2423 = vmatprep.subr.mxu0 0.0
    %2424 = vmatpush1.msra.mxu0 0.0
    %2425 = vmatprep.subr.mxu0 0.0
    %2426 = vmatpush1.msra.mxu0 0.0
    %2427 = vmatprep.subr.mxu0 0.0
    %2428 = vmatpush1.msra.mxu0 0.0
    %2429 = vmatprep.subr.mxu0 0.0
    %2430 = vmatpush1.msra.mxu0 0.0
    %2431 = vmatprep.subr.mxu0 0.0
    %2432 = vmatpush1.msra.mxu0 0.0
    %2433 = vmatprep.subr.mxu0 0.0
    %2434 = vmatpush1.msra.mxu0 0.0
    %2435 = vmatprep.subr.mxu0 0.0
    %2436 = vmatpush1.msra.mxu0 0.0
    %2437 = vmatprep.subr.mxu0 0.0
    %2438 = vmatpush1.msra.mxu0 0.0
    %2439 = vmatprep.subr.mxu0 0.0
    %2440 = vmatpush1.msra.mxu0 0.0
    %2441 = vmatprep.subr.mxu0 0.0
    %2442 = vmatpush1.msra.mxu0 0.0
    %2443 = vmatprep.subr.mxu0 0.0
    %2444 = vmatpush1.msra.mxu0 0.0
    %2445 = vmatprep.subr.mxu0 0.0
    %2446 = vmatpush1.msra.mxu0 0.0
    %2447 = vmatprep.subr.mxu0 0.0
    %2448 = vmatpush1.msra.mxu0 0.0
    %2449 = vmatprep.subr.mxu0 0.0
    %2450 = vmatpush1.msra.mxu0 0.0
    %2451 = vmatprep.subr.mxu0 0.0
    %2452 = vmatpush1.msra.mxu0 0.0
    %2453 = vmatprep.subr.mxu0 0.0
    %2454 = vmatpush1.msra.mxu0 0.0
    %2455 = vmatprep.subr.mxu0 0.0
    %2456 = vmatpush1.msra.mxu0 0.0
    %2457 = vmatprep.subr.mxu0 0.0
    %2458 = vmatpush1.msra.mxu0 0.0
    %2459 = vmatprep.subr.mxu0 0.0
    %2460 = vmatpush1.msra.mxu0 0.0
    %2461 = vmatprep.mubr.f32.mxu0 0.0
    %2462 = vmatmul.mubr.f32.gmra.mrb[0].mxu0 %v2015
    %v2463 = vpop.f32.mrb[0].mxu0
    %v2464 = vadd.f32 0.0, %v2463
    %v2465 = vpop.f32.mrb[0].mxu0
    %2466 = vdwg.mxu0
    %v2467 = vadd.f32 %v2323, %v2393
    %v2468 = vadd.f32 %v2324, %v2395
    %v2469 = vxor.u32 %v2467, 2147483648
    %v2470 = vmul.f32 %v2469, 1.442695
    %v2471 = vpow.pop %v2470
    %v2472 = vadd.f32 %v2471, 1.0
    %v2473 = vrcp.pop %v2472
    %v2474 = vmul.f32 1.0, %v2473
    %v2475 = vxor.u32 %v2468, 2147483648
    %v2476 = vmul.f32 %v2475, 1.442695
    %v2477 = vpow.pop %v2476
    %v2478 = vadd.f32 %v2477, 1.0
    %v2479 = vrcp.pop %v2478
    %v2480 = vmul.f32 1.0, %v2479
    %v2481 = vadd.f32 %v2464, %v83
    %v2482 = vmul.f32 %v2474, %v2481
    %v2483 = vadd.f32 %v2325, %v2482
    %v2484 = vtanh.pop %v2483
    %v2485 = vsub.f32 %v2013, %v2484
    %v2486 = vmul.f32 %v2480, %v2485
    %v2487 = vadd.f32 %v2484, %v2486
    %v2489 = vsel %vm405, %v2487, 0
    %2491 = vmatprep.subr.mxu0 %v572
    %2492 = vmatpush1.msra.mxu0 %v571
    %2493 = vmatprep.subr.mxu0 %v575
    %2494 = vmatpush1.msra.mxu0 %v574
    %2495 = vmatprep.subr.mxu0 %v578
    %2496 = vmatpush1.msra.mxu0 %v577
    %2497 = vmatprep.subr.mxu0 %v581
    %2498 = vmatpush1.msra.mxu0 %v580
    %2499 = vmatprep.subr.mxu0 0.0
    %2500 = vmatpush1.msra.mxu0 0.0
    %2501 = vmatprep.subr.mxu0 0.0
    %2502 = vmatpush1.msra.mxu0 0.0
    %2503 = vmatprep.subr.mxu0 0.0
    %2504 = vmatpush1.msra.mxu0 0.0
    %2505 = vmatprep.subr.mxu0 0.0
    %2506 = vmatpush1.msra.mxu0 0.0
    %2507 = vmatprep.subr.mxu0 0.0
    %2508 = vmatpush1.msra.mxu0 0.0
    %2509 = vmatprep.subr.mxu0 0.0
    %2510 = vmatpush1.msra.mxu0 0.0
    %2511 = vmatprep.subr.mxu0 0.0
    %2512 = vmatpush1.msra.mxu0 0.0
    %2513 = vmatprep.subr.mxu0 0.0
    %2514 = vmatpush1.msra.mxu0 0.0
    %2515 = vmatprep.subr.mxu0 0.0
    %2516 = vmatpush1.msra.mxu0 0.0
    %2517 = vmatprep.subr.mxu0 0.0
    %2518 = vmatpush1.msra.mxu0 0.0
    %2519 = vmatprep.subr.mxu0 0.0
    %2520 = vmatpush1.msra.mxu0 0.0
    %2521 = vmatprep.subr.mxu0 0.0
    %2522 = vmatpush1.msra.mxu0 0.0
    %2523 = vmatprep.subr.mxu0 0.0
    %2524 = vmatpush1.msra.mxu0 0.0
    %2525 = vmatprep.subr.mxu0 0.0
    %2526 = vmatpush1.msra.mxu0 0.0
    %2527 = vmatprep.subr.mxu0 0.0
    %2528 = vmatpush1.msra.mxu0 0.0
    %2529 = vmatprep.subr.mxu0 0.0
    %2530 = vmatpush1.msra.mxu0 0.0
    %2531 = vmatprep.subr.mxu0 0.0
    %2532 = vmatpush1.msra.mxu0 0.0
    %2533 = vmatprep.subr.mxu0 0.0
    %2534 = vmatpush1.msra.mxu0 0.0
    %2535 = vmatprep.subr.mxu0 0.0
    %2536 = vmatpush1.msra.mxu0 0.0
    %2537 = vmatprep.subr.mxu0 0.0
    %2538 = vmatpush1.msra.mxu0 0.0
    %2539 = vmatprep.subr.mxu0 0.0
    %2540 = vmatpush1.msra.mxu0 0.0
    %2541 = vmatprep.subr.mxu0 0.0
    %2542 = vmatpush1.msra.mxu0 0.0
    %2543 = vmatprep.subr.mxu0 0.0
    %2544 = vmatpush1.msra.mxu0 0.0
    %2545 = vmatprep.subr.mxu0 0.0
    %2546 = vmatpush1.msra.mxu0 0.0
    %2547 = vmatprep.subr.mxu0 0.0
    %2548 = vmatpush1.msra.mxu0 0.0
    %2549 = vmatprep.subr.mxu0 0.0
    %2550 = vmatpush1.msra.mxu0 0.0
    %2551 = vmatprep.subr.mxu0 0.0
    %2552 = vmatpush1.msra.mxu0 0.0
    %2553 = vmatprep.subr.mxu0 0.0
    %2554 = vmatpush1.msra.mxu0 0.0
    %2555 = vmatprep.mubr.f32.mxu0 0.0
    %2556 = vmatmul.mubr.f32.gmra.mrb[0].mxu0 %v2489
    %v2557 = vpop.f32.mrb[0].mxu0
    %v2558 = vadd.f32 %v71, %v2557
    %v2559 = vpop.f32.mrb[0].mxu0
    %v2560 = vadd.f32 %v75, %v2559
    %2561 = vdwg.mxu0
    %2562 = vmatprep.subr.mxu0 0.0
    %2563 = vmatpush1.msra.mxu0 %v573
    %2564 = vmatprep.subr.mxu0 0.0
    %2565 = vmatpush1.msra.mxu0 %v576
    %2566 = vmatprep.subr.mxu0 0.0
    %2567 = vmatpush1.msra.mxu0 %v579
    %2568 = vmatprep.subr.mxu0 0.0
    %2569 = vmatpush1.msra.mxu0 %v582
    %2570 = vmatprep.subr.mxu0 0.0
    %2571 = vmatpush1.msra.mxu0 0.0
    %2572 = vmatprep.subr.mxu0 0.0
    %2573 = vmatpush1.msra.mxu0 0.0
    %2574 = vmatprep.subr.mxu0 0.0
    %2575 = vmatpush1.msra.mxu0 0.0
    %2576 = vmatprep.subr.mxu0 0.0
    %2577 = vmatpush1.msra.mxu0 0.0
    %2578 = vmatprep.subr.mxu0 0.0
    %2579 = vmatpush1.msra.mxu0 0.0
    %2580 = vmatprep.subr.mxu0 0.0
    %2581 = vmatpush1.msra.mxu0 0.0
    %2582 = vmatprep.subr.mxu0 0.0
    %2583 = vmatpush1.msra.mxu0 0.0
    %2584 = vmatprep.subr.mxu0 0.0
    %2585 = vmatpush1.msra.mxu0 0.0
    %2586 = vmatprep.subr.mxu0 0.0
    %2587 = vmatpush1.msra.mxu0 0.0
    %2588 = vmatprep.subr.mxu0 0.0
    %2589 = vmatpush1.msra.mxu0 0.0
    %2590 = vmatprep.subr.mxu0 0.0
    %2591 = vmatpush1.msra.mxu0 0.0
    %2592 = vmatprep.subr.mxu0 0.0
    %2593 = vmatpush1.msra.mxu0 0.0
    %2594 = vmatprep.subr.mxu0 0.0
    %2595 = vmatpush1.msra.mxu0 0.0
    %2596 = vmatprep.subr.mxu0 0.0
    %2597 = vmatpush1.msra.mxu0 0.0
    %2598 = vmatprep.subr.mxu0 0.0
    %2599 = vmatpush1.msra.mxu0 0.0
    %2600 = vmatprep.subr.mxu0 0.0
    %2601 = vmatpush1.msra.mxu0 0.0
    %2602 = vmatprep.subr.mxu0 0.0
    %2603 = vmatpush1.msra.mxu0 0.0
    %2604 = vmatprep.subr.mxu0 0.0
    %2605 = vmatpush1.msra.mxu0 0.0
    %2606 = vmatprep.subr.mxu0 0.0
    %2607 = vmatpush1.msra.mxu0 0.0
    %2608 = vmatprep.subr.mxu0 0.0
    %2609 = vmatpush1.msra.mxu0 0.0
    %2610 = vmatprep.subr.mxu0 0.0
    %2611 = vmatpush1.msra.mxu0 0.0
    %2612 = vmatprep.subr.mxu0 0.0
    %2613 = vmatpush1.msra.mxu0 0.0
    %2614 = vmatprep.subr.mxu0 0.0
    %2615 = vmatpush1.msra.mxu0 0.0
    %2616 = vmatprep.subr.mxu0 0.0
    %2617 = vmatpush1.msra.mxu0 0.0
    %2618 = vmatprep.subr.mxu0 0.0
    %2619 = vmatpush1.msra.mxu0 0.0
    %2620 = vmatprep.subr.mxu0 0.0
    %2621 = vmatpush1.msra.mxu0 0.0
    %2622 = vmatprep.subr.mxu0 0.0
    %2623 = vmatpush1.msra.mxu0 0.0
    %2624 = vmatprep.subr.mxu0 0.0
    %2625 = vmatpush1.msra.mxu0 0.0
    %2626 = vmatprep.mubr.f32.mxu0 0.0
    %2627 = vmatmul.mubr.f32.gmra.mrb[0].mxu0 %v2489
    %v2628 = vpop.f32.mrb[0].mxu0
    %v2629 = vadd.f32 %v79, %v2628
    %v2630 = vpop.f32.mrb[0].mxu0
    %2631 = vdwg.mxu0
    %v2633 = vsel %vm405, %v2322, 0
    %2635 = vmatprep.subr.mxu0 %v728
    %2636 = vmatpush1.msra.mxu0 %v727
    %2637 = vmatprep.subr.mxu0 %v731
    %2638 = vmatpush1.msra.mxu0 %v730
    %2639 = vmatprep.subr.mxu0 %v734
    %2640 = vmatpush1.msra.mxu0 %v733
    %2641 = vmatprep.subr.mxu0 %v737
    %2642 = vmatpush1.msra.mxu0 %v736
    %2643 = vmatprep.subr.mxu0 0.0
    %2644 = vmatpush1.msra.mxu0 0.0
    %2645 = vmatprep.subr.mxu0 0.0
    %2646 = vmatpush1.msra.mxu0 0.0
    %2647 = vmatprep.subr.mxu0 0.0
    %2648 = vmatpush1.msra.mxu0 0.0
    %2649 = vmatprep.subr.mxu0 0.0
    %2650 = vmatpush1.msra.mxu0 0.0
    %2651 = vmatprep.subr.mxu0 0.0
    %2652 = vmatpush1.msra.mxu0 0.0
    %2653 = vmatprep.subr.mxu0 0.0
    %2654 = vmatpush1.msra.mxu0 0.0
    %2655 = vmatprep.subr.mxu0 0.0
    %2656 = vmatpush1.msra.mxu0 0.0
    %2657 = vmatprep.subr.mxu0 0.0
    %2658 = vmatpush1.msra.mxu0 0.0
    %2659 = vmatprep.subr.mxu0 0.0
    %2660 = vmatpush1.msra.mxu0 0.0
    %2661 = vmatprep.subr.mxu0 0.0
    %2662 = vmatpush1.msra.mxu0 0.0
    %2663 = vmatprep.subr.mxu0 0.0
    %2664 = vmatpush1.msra.mxu0 0.0
    %2665 = vmatprep.subr.mxu0 0.0
    %2666 = vmatpush1.msra.mxu0 0.0
    %2667 = vmatprep.subr.mxu0 0.0
    %2668 = vmatpush1.msra.mxu0 0.0
    %2669 = vmatprep.subr.mxu0 0.0
    %2670 = vmatpush1.msra.mxu0 0.0
    %2671 = vmatprep.subr.mxu0 0.0
    %2672 = vmatpush1.msra.mxu0 0.0
    %2673 = vmatprep.subr.mxu0 0.0
    %2674 = vmatpush1.msra.mxu0 0.0
    %2675 = vmatprep.subr.mxu0 0.0
    %2676 = vmatpush1.msra.mxu0 0.0
    %2677 = vmatprep.subr.mxu0 0.0
    %2678 = vmatpush1.msra.mxu0 0.0
    %2679 = vmatprep.subr.mxu0 0.0
    %2680 = vmatpush1.msra.mxu0 0.0
    %2681 = vmatprep.subr.mxu0 0.0
    %2682 = vmatpush1.msra.mxu0 0.0
    %2683 = vmatprep.subr.mxu0 0.0
    %2684 = vmatpush1.msra.mxu0 0.0
    %2685 = vmatprep.subr.mxu0 0.0
    %2686 = vmatpush1.msra.mxu0 0.0
    %2687 = vmatprep.subr.mxu0 0.0
    %2688 = vmatpush1.msra.mxu0 0.0
    %2689 = vmatprep.subr.mxu0 0.0
    %2690 = vmatpush1.msra.mxu0 0.0
    %2691 = vmatprep.subr.mxu0 0.0
    %2692 = vmatpush1.msra.mxu0 0.0
    %2693 = vmatprep.subr.mxu0 0.0
    %2694 = vmatpush1.msra.mxu0 0.0
    %2695 = vmatprep.subr.mxu0 0.0
    %2696 = vmatpush1.msra.mxu0 0.0
    %2697 = vmatprep.subr.mxu0 0.0
    %2698 = vmatpush1.msra.mxu0 0.0
    %2699 = vmatprep.mubr.f32.mxu0 0.0
    %2700 = vmatmul.mubr.f32.gmra.mrb[0].mxu0 %v2633
    %v2701 = vpop.f32.mrb[0].mxu0
    %v2702 = vadd.f32 0.0, %v2701
    %v2703 = vpop.f32.mrb[0].mxu0
    %v2704 = vadd.f32 0.0, %v2703
    %2705 = vdwg.mxu0
    %2706 = vmatprep.subr.mxu0 0.0
    %2707 = vmatpush1.msra.mxu0 %v729
    %2708 = vmatprep.subr.mxu0 0.0
    %2709 = vmatpush1.msra.mxu0 %v732
    %2710 = vmatprep.subr.mxu0 0.0
    %2711 = vmatpush1.msra.mxu0 %v735
    %2712 = vmatprep.subr.mxu0 0.0
    %2713 = vmatpush1.msra.mxu0 %v738
    %2714 = vmatprep.subr.mxu0 0.0
    %2715 = vmatpush1.msra.mxu0 0.0
    %2716 = vmatprep.subr.mxu0 0.0
    %2717 = vmatpush1.msra.mxu0 0.0
    %2718 = vmatprep.subr.mxu0 0.0
    %2719 = vmatpush1.msra.mxu0 0.0
    %2720 = vmatprep.subr.mxu0 0.0
    %2721 = vmatpush1.msra.mxu0 0.0
    %2722 = vmatprep.subr.mxu0 0.0
    %2723 = vmatpush1.msra.mxu0 0.0
    %2724 = vmatprep.subr.mxu0 0.0
    %2725 = vmatpush1.msra.mxu0 0.0
    %2726 = vmatprep.subr.mxu0 0.0
    %2727 = vmatpush1.msra.mxu0 0.0
    %2728 = vmatprep.subr.mxu0 0.0
    %2729 = vmatpush1.msra.mxu0 0.0
    %2730 = vmatprep.subr.mxu0 0.0
    %2731 = vmatpush1.msra.mxu0 0.0
    %2732 = vmatprep.subr.mxu0 0.0
    %2733 = vmatpush1.msra.mxu0 0.0
    %2734 = vmatprep.subr.mxu0 0.0
    %2735 = vmatpush1.msra.mxu0 0.0
    %2736 = vmatprep.subr.mxu0 0.0
    %2737 = vmatpush1.msra.mxu0 0.0
    %2738 = vmatprep.subr.mxu0 0.0
    %2739 = vmatpush1.msra.mxu0 0.0
    %2740 = vmatprep.subr.mxu0 0.0
    %2741 = vmatpush1.msra.mxu0 0.0
    %2742 = vmatprep.subr.mxu0 0.0
    %2743 = vmatpush1.msra.mxu0 0.0
    %2744 = vmatprep.subr.mxu0 0.0
    %2745 = vmatpush1.msra.mxu0 0.0
    %2746 = vmatprep.subr.mxu0 0.0
    %2747 = vmatpush1.msra.mxu0 0.0
    %2748 = vmatprep.subr.mxu0 0.0
    %2749 = vmatpush1.msra.mxu0 0.0
    %2750 = vmatprep.subr.mxu0 0.0
    %2751 = vmatpush1.msra.mxu0 0.0
    %2752 = vmatprep.subr.mxu0 0.0
    %2753 = vmatpush1.msra.mxu0 0.0
    %2754 = vmatprep.subr.mxu0 0.0
    %2755 = vmatpush1.msra.mxu0 0.0
    %2756 = vmatprep.subr.mxu0 0.0
    %2757 = vmatpush1.msra.mxu0 0.0
    %2758 = vmatprep.subr.mxu0 0.0
    %2759 = vmatpush1.msra.mxu0 0.0
    %2760 = vmatprep.subr.mxu0 0.0
    %2761 = vmatpush1.msra.mxu0 0.0
    %2762 = vmatprep.subr.mxu0 0.0
    %2763 = vmatpush1.msra.mxu0 0.0
    %2764 = vmatprep.subr.mxu0 0.0
    %2765 = vmatpush1.msra.mxu0 0.0
    %2766 = vmatprep.subr.mxu0 0.0
    %2767 = vmatpush1.msra.mxu0 0.0
    %2768 = vmatprep.subr.mxu0 0.0
    %2769 = vmatpush1.msra.mxu0 0.0
    %2770 = vmatprep.mubr.f32.mxu0 0.0
    %2771 = vmatmul.mubr.f32.gmra.mrb[0].mxu0 %v2633
    %v2772 = vpop.f32.mrb[0].mxu0
    %v2773 = vadd.f32 0.0, %v2772
    %v2774 = vpop.f32.mrb[0].mxu0
    %2775 = vdwg.mxu0
    %v2776 = vadd.f32 %v2558, %v2702
    %v2777 = vadd.f32 %v2560, %v2704
    %v2778 = vxor.u32 %v2776, 2147483648
    %v2779 = vmul.f32 %v2778, 1.442695
    %v2780 = vpow.pop %v2779
    %v2781 = vadd.f32 %v2780, 1.0
    %v2782 = vrcp.pop %v2781
    %v2783 = vmul.f32 1.0, %v2782
    %v2784 = vxor.u32 %v2777, 2147483648
    %v2785 = vmul.f32 %v2784, 1.442695
    %v2786 = vpow.pop %v2785
    %v2787 = vadd.f32 %v2786, 1.0
    %v2788 = vrcp.pop %v2787
    %v2789 = vmul.f32 1.0, %v2788
    %v2790 = vadd.f32 %v2773, %v84
    %v2791 = vmul.f32 %v2783, %v2790
    %v2792 = vadd.f32 %v2629, %v2791
    %v2793 = vtanh.pop %v2792
    %v2794 = vsub.f32 %v2322, %v2793
    %v2795 = vmul.f32 %v2789, %v2794
    %v2796 = vadd.f32 %v2793, %v2795
    %v2797 = vld [vmem:[#allocation2 + $0x78] sm:$0xff]
    %v2798 = vld [vmem:[#allocation2 + $0x80] sm:$0xff]
    %v2799 = vld [vmem:[#allocation2 + $0x88] sm:$0xff]
    %2800 = vmatprep.subr.mxu0 %v394
    %2801 = vmatpush1.msra.mxu0 %v393
    %2802 = vmatprep.subr.mxu0 %v397
    %2803 = vmatpush1.msra.mxu0 %v396
    %2804 = vmatprep.subr.mxu0 %v400
    %2805 = vmatpush1.msra.mxu0 %v399
    %2806 = vmatprep.subr.mxu0 %v403
    %2807 = vmatpush1.msra.mxu0 %v402
    %2808 = vmatprep.subr.mxu0 0.0
    %2809 = vmatpush1.msra.mxu0 0.0
    %2810 = vmatprep.subr.mxu0 0.0
    %2811 = vmatpush1.msra.mxu0 0.0
    %2812 = vmatprep.subr.mxu0 0.0
    %2813 = vmatpush1.msra.mxu0 0.0
    %2814 = vmatprep.subr.mxu0 0.0
    %2815 = vmatpush1.msra.mxu0 0.0
    %2816 = vmatprep.subr.mxu0 0.0
    %2817 = vmatpush1.msra.mxu0 0.0
    %2818 = vmatprep.subr.mxu0 0.0
    %2819 = vmatpush1.msra.mxu0 0.0
    %2820 = vmatprep.subr.mxu0 0.0
    %2821 = vmatpush1.msra.mxu0 0.0
    %2822 = vmatprep.subr.mxu0 0.0
    %2823 = vmatpush1.msra.mxu0 0.0
    %2824 = vmatprep.subr.mxu0 0.0
    %2825 = vmatpush1.msra.mxu0 0.0
    %2826 = vmatprep.subr.mxu0 0.0
    %2827 = vmatpush1.msra.mxu0 0.0
    %2828 = vmatprep.subr.mxu0 0.0
    %2829 = vmatpush1.msra.mxu0 0.0
    %2830 = vmatprep.subr.mxu0 0.0
    %2831 = vmatpush1.msra.mxu0 0.0
    %2832 = vmatprep.subr.mxu0 0.0
    %2833 = vmatpush1.msra.mxu0 0.0
    %2834 = vmatprep.subr.mxu0 0.0
    %2835 = vmatpush1.msra.mxu0 0.0
    %2836 = vmatprep.subr.mxu0 0.0
    %2837 = vmatpush1.msra.mxu0 0.0
    %2838 = vmatprep.subr.mxu0 0.0
    %2839 = vmatpush1.msra.mxu0 0.0
    %2840 = vmatprep.subr.mxu0 0.0
    %2841 = vmatpush1.msra.mxu0 0.0
    %2842 = vmatprep.subr.mxu0 0.0
    %2843 = vmatpush1.msra.mxu0 0.0
    %2844 = vmatprep.subr.mxu0 0.0
    %2845 = vmatpush1.msra.mxu0 0.0
    %2846 = vmatprep.subr.mxu0 0.0
    %2847 = vmatpush1.msra.mxu0 0.0
    %2848 = vmatprep.subr.mxu0 0.0
    %2849 = vmatpush1.msra.mxu0 0.0
    %2850 = vmatprep.subr.mxu0 0.0
    %2851 = vmatpush1.msra.mxu0 0.0
    %2852 = vmatprep.subr.mxu0 0.0
    %2853 = vmatpush1.msra.mxu0 0.0
    %2854 = vmatprep.subr.mxu0 0.0
    %2855 = vmatpush1.msra.mxu0 0.0
    %2856 = vmatprep.subr.mxu0 0.0
    %2857 = vmatpush1.msra.mxu0 0.0
    %2858 = vmatprep.subr.mxu0 0.0
    %2859 = vmatpush1.msra.mxu0 0.0
    %2860 = vmatprep.subr.mxu0 0.0
    %2861 = vmatpush1.msra.mxu0 0.0
    %2862 = vmatprep.subr.mxu0 0.0
    %2863 = vmatpush1.msra.mxu0 0.0
    %2864 = vmatprep.mubr.f32.mxu0 0.0
    %2865 = vmatmul.mubr.f32.gmra.mrb[0].mxu0 %v2489
    %v2866 = vpop.f32.mrb[0].mxu0
    %v2867 = vadd.f32 0.0, %v2866
    %v2868 = vpop.f32.mrb[0].mxu0
    %v2869 = vadd.f32 0.0, %v2868
    %2870 = vdwg.mxu0
    %2871 = vmatprep.subr.mxu0 0.0
    %2872 = vmatpush1.msra.mxu0 %v395
    %2873 = vmatprep.subr.mxu0 0.0
    %2874 = vmatpush1.msra.mxu0 %v398
    %2875 = vmatprep.subr.mxu0 0.0
    %2876 = vmatpush1.msra.mxu0 %v401
    %2877 = vmatprep.subr.mxu0 0.0
    %2878 = vmatpush1.msra.mxu0 %v404
    %2879 = vmatprep.subr.mxu0 0.0
    %2880 = vmatpush1.msra.mxu0 0.0
    %2881 = vmatprep.subr.mxu0 0.0
    %2882 = vmatpush1.msra.mxu0 0.0
    %2883 = vmatprep.subr.mxu0 0.0
    %2884 = vmatpush1.msra.mxu0 0.0
    %2885 = vmatprep.subr.mxu0 0.0
    %2886 = vmatpush1.msra.mxu0 0.0
    %2887 = vmatprep.subr.mxu0 0.0
    %2888 = vmatpush1.msra.mxu0 0.0
    %2889 = vmatprep.subr.mxu0 0.0
    %2890 = vmatpush1.msra.mxu0 0.0
    %2891 = vmatprep.subr.mxu0 0.0
    %2892 = vmatpush1.msra.mxu0 0.0
    %2893 = vmatprep.subr.mxu0 0.0
    %2894 = vmatpush1.msra.mxu0 0.0
    %2895 = vmatprep.subr.mxu0 0.0
    %2896 = vmatpush1.msra.mxu0 0.0
    %2897 = vmatprep.subr.mxu0 0.0
    %2898 = vmatpush1.msra.mxu0 0.0
    %2899 = vmatprep.subr.mxu0 0.0
    %2900 = vmatpush1.msra.mxu0 0.0
    %2901 = vmatprep.subr.mxu0 0.0
    %2902 = vmatpush1.msra.mxu0 0.0
    %2903 = vmatprep.subr.mxu0 0.0
    %2904 = vmatpush1.msra.mxu0 0.0
    %2905 = vmatprep.subr.mxu0 0.0
    %2906 = vmatpush1.msra.mxu0 0.0
    %2907 = vmatprep.subr.mxu0 0.0
    %2908 = vmatpush1.msra.mxu0 0.0
    %2909 = vmatprep.subr.mxu0 0.0
    %2910 = vmatpush1.msra.mxu0 0.0
    %2911 = vmatprep.subr.mxu0 0.0
    %2912 = vmatpush1.msra.mxu0 0.0
    %2913 = vmatprep.subr.mxu0 0.0
    %2914 = vmatpush1.msra.mxu0 0.0
    %2915 = vmatprep.subr.mxu0 0.0
    %2916 = vmatpush1.msra.mxu0 0.0
    %2917 = vmatprep.subr.mxu0 0.0
    %2918 = vmatpush1.msra.mxu0 0.0
    %2919 = vmatprep.subr.mxu0 0.0
    %2920 = vmatpush1.msra.mxu0 0.0
    %2921 = vmatprep.subr.mxu0 0.0
    %2922 = vmatpush1.msra.mxu0 0.0
    %2923 = vmatprep.subr.mxu0 0.0
    %2924 = vmatpush1.msra.mxu0 0.0
    %2925 = vmatprep.subr.mxu0 0.0
    %2926 = vmatpush1.msra.mxu0 0.0
    %2927 = vmatprep.subr.mxu0 0.0
    %2928 = vmatpush1.msra.mxu0 0.0
    %2929 = vmatprep.subr.mxu0 0.0
    %2930 = vmatpush1.msra.mxu0 0.0
    %2931 = vmatprep.subr.mxu0 0.0
    %2932 = vmatpush1.msra.mxu0 0.0
    %2933 = vmatprep.subr.mxu0 0.0
    %2934 = vmatpush1.msra.mxu0 0.0
    %2935 = vmatprep.mubr.f32.mxu0 0.0
    %2936 = vmatmul.mubr.f32.gmra.mrb[0].mxu0 %v2489
    %v2937 = vpop.f32.mrb[0].mxu0
    %v2938 = vadd.f32 0.0, %v2937
    %v2939 = vpop.f32.mrb[0].mxu0
    %2940 = vdwg.mxu0
    %v2941 = vadd.f32 %v2797, %v2867
    %v2942 = vadd.f32 %v2798, %v2869
    %v2943 = vxor.u32 %v2941, 2147483648
    %v2944 = vmul.f32 %v2943, 1.442695
    %v2945 = vpow.pop %v2944
    %v2946 = vadd.f32 %v2945, 1.0
    %v2947 = vrcp.pop %v2946
    %v2948 = vmul.f32 1.0, %v2947
    %v2949 = vxor.u32 %v2942, 2147483648
    %v2950 = vmul.f32 %v2949, 1.442695
    %v2951 = vpow.pop %v2950
    %v2952 = vadd.f32 %v2951, 1.0
    %v2953 = vrcp.pop %v2952
    %v2954 = vmul.f32 1.0, %v2953
    %v2955 = vadd.f32 %v2938, %v83
    %v2956 = vmul.f32 %v2948, %v2955
    %v2957 = vadd.f32 %v2799, %v2956
    %v2958 = vtanh.pop %v2957
    %v2959 = vsub.f32 %v2487, %v2958
    %v2960 = vmul.f32 %v2954, %v2959
    %v2961 = vadd.f32 %v2958, %v2960
    %v2963 = vsel %vm405, %v2961, 0
    %2965 = vmatprep.subr.mxu0 %v572
    %2966 = vmatpush1.msra.mxu0 %v571
    %2967 = vmatprep.subr.mxu0 %v575
    %2968 = vmatpush1.msra.mxu0 %v574
    %2969 = vmatprep.subr.mxu0 %v578
    %2970 = vmatpush1.msra.mxu0 %v577
    %2971 = vmatprep.subr.mxu0 %v581
    %2972 = vmatpush1.msra.mxu0 %v580
    %2973 = vmatprep.subr.mxu0 0.0
    %2974 = vmatpush1.msra.mxu0 0.0
    %2975 = vmatprep.subr.mxu0 0.0
    %2976 = vmatpush1.msra.mxu0 0.0
    %2977 = vmatprep.subr.mxu0 0.0
    %2978 = vmatpush1.msra.mxu0 0.0
    %2979 = vmatprep.subr.mxu0 0.0
    %2980 = vmatpush1.msra.mxu0 0.0
    %2981 = vmatprep.subr.mxu0 0.0
    %2982 = vmatpush1.msra.mxu0 0.0
    %2983 = vmatprep.subr.mxu0 0.0
    %2984 = vmatpush1.msra.mxu0 0.0
    %2985 = vmatprep.subr.mxu0 0.0
    %2986 = vmatpush1.msra.mxu0 0.0
    %2987 = vmatprep.subr.mxu0 0.0
    %2988 = vmatpush1.msra.mxu0 0.0
    %2989 = vmatprep.subr.mxu0 0.0
    %2990 = vmatpush1.msra.mxu0 0.0
    %2991 = vmatprep.subr.mxu0 0.0
    %2992 = vmatpush1.msra.mxu0 0.0
    %2993 = vmatprep.subr.mxu0 0.0
    %2994 = vmatpush1.msra.mxu0 0.0
    %2995 = vmatprep.subr.mxu0 0.0
    %2996 = vmatpush1.msra.mxu0 0.0
    %2997 = vmatprep.subr.mxu0 0.0
    %2998 = vmatpush1.msra.mxu0 0.0
    %2999 = vmatprep.subr.mxu0 0.0
    %3000 = vmatpush1.msra.mxu0 0.0
    %3001 = vmatprep.subr.mxu0 0.0
    %3002 = vmatpush1.msra.mxu0 0.0
    %3003 = vmatprep.subr.mxu0 0.0
    %3004 = vmatpush1.msra.mxu0 0.0
    %3005 = vmatprep.subr.mxu0 0.0
    %3006 = vmatpush1.msra.mxu0 0.0
    %3007 = vmatprep.subr.mxu0 0.0
    %3008 = vmatpush1.msra.mxu0 0.0
    %3009 = vmatprep.subr.mxu0 0.0
    %3010 = vmatpush1.msra.mxu0 0.0
    %3011 = vmatprep.subr.mxu0 0.0
    %3012 = vmatpush1.msra.mxu0 0.0
    %3013 = vmatprep.subr.mxu0 0.0
    %3014 = vmatpush1.msra.mxu0 0.0
    %3015 = vmatprep.subr.mxu0 0.0
    %3016 = vmatpush1.msra.mxu0 0.0
    %3017 = vmatprep.subr.mxu0 0.0
    %3018 = vmatpush1.msra.mxu0 0.0
    %3019 = vmatprep.subr.mxu0 0.0
    %3020 = vmatpush1.msra.mxu0 0.0
    %3021 = vmatprep.subr.mxu0 0.0
    %3022 = vmatpush1.msra.mxu0 0.0
    %3023 = vmatprep.subr.mxu0 0.0
    %3024 = vmatpush1.msra.mxu0 0.0
    %3025 = vmatprep.subr.mxu0 0.0
    %3026 = vmatpush1.msra.mxu0 0.0
    %3027 = vmatprep.subr.mxu0 0.0
    %3028 = vmatpush1.msra.mxu0 0.0
    %3029 = vmatprep.mubr.f32.mxu0 0.0
    %3030 = vmatmul.mubr.f32.gmra.mrb[0].mxu0 %v2963
    %v3031 = vpop.f32.mrb[0].mxu0
    %v3032 = vadd.f32 %v71, %v3031
    %v3033 = vpop.f32.mrb[0].mxu0
    %v3034 = vadd.f32 %v75, %v3033
    %3035 = vdwg.mxu0
    %3036 = vmatprep.subr.mxu0 0.0
    %3037 = vmatpush1.msra.mxu0 %v573
    %3038 = vmatprep.subr.mxu0 0.0
    %3039 = vmatpush1.msra.mxu0 %v576
    %3040 = vmatprep.subr.mxu0 0.0
    %3041 = vmatpush1.msra.mxu0 %v579
    %3042 = vmatprep.subr.mxu0 0.0
    %3043 = vmatpush1.msra.mxu0 %v582
    %3044 = vmatprep.subr.mxu0 0.0
    %3045 = vmatpush1.msra.mxu0 0.0
    %3046 = vmatprep.subr.mxu0 0.0
    %3047 = vmatpush1.msra.mxu0 0.0
    %3048 = vmatprep.subr.mxu0 0.0
    %3049 = vmatpush1.msra.mxu0 0.0
    %3050 = vmatprep.subr.mxu0 0.0
    %3051 = vmatpush1.msra.mxu0 0.0
    %3052 = vmatprep.subr.mxu0 0.0
    %3053 = vmatpush1.msra.mxu0 0.0
    %3054 = vmatprep.subr.mxu0 0.0
    %3055 = vmatpush1.msra.mxu0 0.0
    %3056 = vmatprep.subr.mxu0 0.0
    %3057 = vmatpush1.msra.mxu0 0.0
    %3058 = vmatprep.subr.mxu0 0.0
    %3059 = vmatpush1.msra.mxu0 0.0
    %3060 = vmatprep.subr.mxu0 0.0
    %3061 = vmatpush1.msra.mxu0 0.0
    %3062 = vmatprep.subr.mxu0 0.0
    %3063 = vmatpush1.msra.mxu0 0.0
    %3064 = vmatprep.subr.mxu0 0.0
    %3065 = vmatpush1.msra.mxu0 0.0
    %3066 = vmatprep.subr.mxu0 0.0
    %3067 = vmatpush1.msra.mxu0 0.0
    %3068 = vmatprep.subr.mxu0 0.0
    %3069 = vmatpush1.msra.mxu0 0.0
    %3070 = vmatprep.subr.mxu0 0.0
    %3071 = vmatpush1.msra.mxu0 0.0
    %3072 = vmatprep.subr.mxu0 0.0
    %3073 = vmatpush1.msra.mxu0 0.0
    %3074 = vmatprep.subr.mxu0 0.0
    %3075 = vmatpush1.msra.mxu0 0.0
    %3076 = vmatprep.subr.mxu0 0.0
    %3077 = vmatpush1.msra.mxu0 0.0
    %3078 = vmatprep.subr.mxu0 0.0
    %3079 = vmatpush1.msra.mxu0 0.0
    %3080 = vmatprep.subr.mxu0 0.0
    %3081 = vmatpush1.msra.mxu0 0.0
    %3082 = vmatprep.subr.mxu0 0.0
    %3083 = vmatpush1.msra.mxu0 0.0
    %3084 = vmatprep.subr.mxu0 0.0
    %3085 = vmatpush1.msra.mxu0 0.0
    %3086 = vmatprep.subr.mxu0 0.0
    %3087 = vmatpush1.msra.mxu0 0.0
    %3088 = vmatprep.subr.mxu0 0.0
    %3089 = vmatpush1.msra.mxu0 0.0
    %3090 = vmatprep.subr.mxu0 0.0
    %3091 = vmatpush1.msra.mxu0 0.0
    %3092 = vmatprep.subr.mxu0 0.0
    %3093 = vmatpush1.msra.mxu0 0.0
    %3094 = vmatprep.subr.mxu0 0.0
    %3095 = vmatpush1.msra.mxu0 0.0
    %3096 = vmatprep.subr.mxu0 0.0
    %3097 = vmatpush1.msra.mxu0 0.0
    %3098 = vmatprep.subr.mxu0 0.0
    %3099 = vmatpush1.msra.mxu0 0.0
    %3100 = vmatprep.mubr.f32.mxu0 0.0
    %3101 = vmatmul.mubr.f32.gmra.mrb[0].mxu0 %v2963
    %v3102 = vpop.f32.mrb[0].mxu0
    %v3103 = vadd.f32 %v79, %v3102
    %v3104 = vpop.f32.mrb[0].mxu0
    %3105 = vdwg.mxu0
    %v3107 = vsel %vm405, %v2796, 0
    %3109 = vmatprep.subr.mxu0 %v728
    %3110 = vmatpush1.msra.mxu0 %v727
    %3111 = vmatprep.subr.mxu0 %v731
    %3112 = vmatpush1.msra.mxu0 %v730
    %3113 = vmatprep.subr.mxu0 %v734
    %3114 = vmatpush1.msra.mxu0 %v733
    %3115 = vmatprep.subr.mxu0 %v737
    %3116 = vmatpush1.msra.mxu0 %v736
    %3117 = vmatprep.subr.mxu0 0.0
    %3118 = vmatpush1.msra.mxu0 0.0
    %3119 = vmatprep.subr.mxu0 0.0
    %3120 = vmatpush1.msra.mxu0 0.0
    %3121 = vmatprep.subr.mxu0 0.0
    %3122 = vmatpush1.msra.mxu0 0.0
    %3123 = vmatprep.subr.mxu0 0.0
    %3124 = vmatpush1.msra.mxu0 0.0
    %3125 = vmatprep.subr.mxu0 0.0
    %3126 = vmatpush1.msra.mxu0 0.0
    %3127 = vmatprep.subr.mxu0 0.0
    %3128 = vmatpush1.msra.mxu0 0.0
    %3129 = vmatprep.subr.mxu0 0.0
    %3130 = vmatpush1.msra.mxu0 0.0
    %3131 = vmatprep.subr.mxu0 0.0
    %3132 = vmatpush1.msra.mxu0 0.0
    %3133 = vmatprep.subr.mxu0 0.0
    %3134 = vmatpush1.msra.mxu0 0.0
    %3135 = vmatprep.subr.mxu0 0.0
    %3136 = vmatpush1.msra.mxu0 0.0
    %3137 = vmatprep.subr.mxu0 0.0
    %3138 = vmatpush1.msra.mxu0 0.0
    %3139 = vmatprep.subr.mxu0 0.0
    %3140 = vmatpush1.msra.mxu0 0.0
    %3141 = vmatprep.subr.mxu0 0.0
    %3142 = vmatpush1.msra.mxu0 0.0
    %3143 = vmatprep.subr.mxu0 0.0
    %3144 = vmatpush1.msra.mxu0 0.0
    %3145 = vmatprep.subr.mxu0 0.0
    %3146 = vmatpush1.msra.mxu0 0.0
    %3147 = vmatprep.subr.mxu0 0.0
    %3148 = vmatpush1.msra.mxu0 0.0
    %3149 = vmatprep.subr.mxu0 0.0
    %3150 = vmatpush1.msra.mxu0 0.0
    %3151 = vmatprep.subr.mxu0 0.0
    %3152 = vmatpush1.msra.mxu0 0.0
    %3153 = vmatprep.subr.mxu0 0.0
    %3154 = vmatpush1.msra.mxu0 0.0
    %3155 = vmatprep.subr.mxu0 0.0
    %3156 = vmatpush1.msra.mxu0 0.0
    %3157 = vmatprep.subr.mxu0 0.0
    %3158 = vmatpush1.msra.mxu0 0.0
    %3159 = vmatprep.subr.mxu0 0.0
    %3160 = vmatpush1.msra.mxu0 0.0
    %3161 = vmatprep.subr.mxu0 0.0
    %3162 = vmatpush1.msra.mxu0 0.0
    %3163 = vmatprep.subr.mxu0 0.0
    %3164 = vmatpush1.msra.mxu0 0.0
    %3165 = vmatprep.subr.mxu0 0.0
    %3166 = vmatpush1.msra.mxu0 0.0
    %3167 = vmatprep.subr.mxu0 0.0
    %3168 = vmatpush1.msra.mxu0 0.0
    %3169 = vmatprep.subr.mxu0 0.0
    %3170 = vmatpush1.msra.mxu0 0.0
    %3171 = vmatprep.subr.mxu0 0.0
    %3172 = vmatpush1.msra.mxu0 0.0
    %3173 = vmatprep.mubr.f32.mxu0 0.0
    %3174 = vmatmul.mubr.f32.gmra.mrb[0].mxu0 %v3107
    %v3175 = vpop.f32.mrb[0].mxu0
    %v3176 = vadd.f32 0.0, %v3175
    %v3177 = vpop.f32.mrb[0].mxu0
    %v3178 = vadd.f32 0.0, %v3177
    %3179 = vdwg.mxu0
    %3180 = vmatprep.subr.mxu0 0.0
    %3181 = vmatpush1.msra.mxu0 %v729
    %3182 = vmatprep.subr.mxu0 0.0
    %3183 = vmatpush1.msra.mxu0 %v732
    %3184 = vmatprep.subr.mxu0 0.0
    %3185 = vmatpush1.msra.mxu0 %v735
    %3186 = vmatprep.subr.mxu0 0.0
    %3187 = vmatpush1.msra.mxu0 %v738
    %3188 = vmatprep.subr.mxu0 0.0
    %3189 = vmatpush1.msra.mxu0 0.0
    %3190 = vmatprep.subr.mxu0 0.0
    %3191 = vmatpush1.msra.mxu0 0.0
    %3192 = vmatprep.subr.mxu0 0.0
    %3193 = vmatpush1.msra.mxu0 0.0
    %3194 = vmatprep.subr.mxu0 0.0
    %3195 = vmatpush1.msra.mxu0 0.0
    %3196 = vmatprep.subr.mxu0 0.0
    %3197 = vmatpush1.msra.mxu0 0.0
    %3198 = vmatprep.subr.mxu0 0.0
    %3199 = vmatpush1.msra.mxu0 0.0
    %3200 = vmatprep.subr.mxu0 0.0
    %3201 = vmatpush1.msra.mxu0 0.0
    %3202 = vmatprep.subr.mxu0 0.0
    %3203 = vmatpush1.msra.mxu0 0.0
    %3204 = vmatprep.subr.mxu0 0.0
    %3205 = vmatpush1.msra.mxu0 0.0
    %3206 = vmatprep.subr.mxu0 0.0
    %3207 = vmatpush1.msra.mxu0 0.0
    %3208 = vmatprep.subr.mxu0 0.0
    %3209 = vmatpush1.msra.mxu0 0.0
    %3210 = vmatprep.subr.mxu0 0.0
    %3211 = vmatpush1.msra.mxu0 0.0
    %3212 = vmatprep.subr.mxu0 0.0
    %3213 = vmatpush1.msra.mxu0 0.0
    %3214 = vmatprep.subr.mxu0 0.0
    %3215 = vmatpush1.msra.mxu0 0.0
    %3216 = vmatprep.subr.mxu0 0.0
    %3217 = vmatpush1.msra.mxu0 0.0
    %3218 = vmatprep.subr.mxu0 0.0
    %3219 = vmatpush1.msra.mxu0 0.0
    %3220 = vmatprep.subr.mxu0 0.0
    %3221 = vmatpush1.msra.mxu0 0.0
    %3222 = vmatprep.subr.mxu0 0.0
    %3223 = vmatpush1.msra.mxu0 0.0
    %3224 = vmatprep.subr.mxu0 0.0
    %3225 = vmatpush1.msra.mxu0 0.0
    %3226 = vmatprep.subr.mxu0 0.0
    %3227 = vmatpush1.msra.mxu0 0.0
    %3228 = vmatprep.subr.mxu0 0.0
    %3229 = vmatpush1.msra.mxu0 0.0
    %3230 = vmatprep.subr.mxu0 0.0
    %3231 = vmatpush1.msra.mxu0 0.0
    %3232 = vmatprep.subr.mxu0 0.0
    %3233 = vmatpush1.msra.mxu0 0.0
    %3234 = vmatprep.subr.mxu0 0.0
    %3235 = vmatpush1.msra.mxu0 0.0
    %3236 = vmatprep.subr.mxu0 0.0
    %3237 = vmatpush1.msra.mxu0 0.0
    %3238 = vmatprep.subr.mxu0 0.0
    %3239 = vmatpush1.msra.mxu0 0.0
    %3240 = vmatprep.subr.mxu0 0.0
    %3241 = vmatpush1.msra.mxu0 0.0
    %3242 = vmatprep.subr.mxu0 0.0
    %3243 = vmatpush1.msra.mxu0 0.0
    %3244 = vmatprep.mubr.f32.mxu0 0.0
    %3245 = vmatmul.mubr.f32.gmra.mrb[0].mxu0 %v3107
    %v3246 = vpop.f32.mrb[0].mxu0
    %v3247 = vadd.f32 0.0, %v3246
    %v3248 = vpop.f32.mrb[0].mxu0
    %3249 = vdwg.mxu0
    %v3250 = vadd.f32 %v3032, %v3176
    %v3251 = vadd.f32 %v3034, %v3178
    %v3252 = vxor.u32 %v3250, 2147483648
    %v3253 = vmul.f32 %v3252, 1.442695
    %v3254 = vpow.pop %v3253
    %v3255 = vadd.f32 %v3254, 1.0
    %v3256 = vrcp.pop %v3255
    %v3257 = vmul.f32 1.0, %v3256
    %v3258 = vxor.u32 %v3251, 2147483648
    %v3259 = vmul.f32 %v3258, 1.442695
    %v3260 = vpow.pop %v3259
    %v3261 = vadd.f32 %v3260, 1.0
    %v3262 = vrcp.pop %v3261
    %v3263 = vmul.f32 1.0, %v3262
    %v3264 = vadd.f32 %v3247, %v84
    %v3265 = vmul.f32 %v3257, %v3264
    %v3266 = vadd.f32 %v3103, %v3265
    %v3267 = vtanh.pop %v3266
    %v3268 = vsub.f32 %v2796, %v3267
    %v3269 = vmul.f32 %v3263, %v3268
    %v3270 = vadd.f32 %v3267, %v3269
    %v3271 = vld [vmem:[#allocation2 + $0x90] sm:$0xff]
    %v3272 = vld [vmem:[#allocation2 + $0x98] sm:$0xff]
    %v3273 = vld [vmem:[#allocation2 + $0xa0] sm:$0xff]
    %3274 = vmatprep.subr.mxu0 %v394
    %3275 = vmatpush1.msra.mxu0 %v393
    %3276 = vmatprep.subr.mxu0 %v397
    %3277 = vmatpush1.msra.mxu0 %v396
    %3278 = vmatprep.subr.mxu0 %v400
    %3279 = vmatpush1.msra.mxu0 %v399
    %3280 = vmatprep.subr.mxu0 %v403
    %3281 = vmatpush1.msra.mxu0 %v402
    %3282 = vmatprep.subr.mxu0 0.0
    %3283 = vmatpush1.msra.mxu0 0.0
    %3284 = vmatprep.subr.mxu0 0.0
    %3285 = vmatpush1.msra.mxu0 0.0
    %3286 = vmatprep.subr.mxu0 0.0
    %3287 = vmatpush1.msra.mxu0 0.0
    %3288 = vmatprep.subr.mxu0 0.0
    %3289 = vmatpush1.msra.mxu0 0.0
    %3290 = vmatprep.subr.mxu0 0.0
    %3291 = vmatpush1.msra.mxu0 0.0
    %3292 = vmatprep.subr.mxu0 0.0
    %3293 = vmatpush1.msra.mxu0 0.0
    %3294 = vmatprep.subr.mxu0 0.0
    %3295 = vmatpush1.msra.mxu0 0.0
    %3296 = vmatprep.subr.mxu0 0.0
    %3297 = vmatpush1.msra.mxu0 0.0
    %3298 = vmatprep.subr.mxu0 0.0
    %3299 = vmatpush1.msra.mxu0 0.0
    %3300 = vmatprep.subr.mxu0 0.0
    %3301 = vmatpush1.msra.mxu0 0.0
    %3302 = vmatprep.subr.mxu0 0.0
    %3303 = vmatpush1.msra.mxu0 0.0
    %3304 = vmatprep.subr.mxu0 0.0
    %3305 = vmatpush1.msra.mxu0 0.0
    %3306 = vmatprep.subr.mxu0 0.0
    %3307 = vmatpush1.msra.mxu0 0.0
    %3308 = vmatprep.subr.mxu0 0.0
    %3309 = vmatpush1.msra.mxu0 0.0
    %3310 = vmatprep.subr.mxu0 0.0
    %3311 = vmatpush1.msra.mxu0 0.0
    %3312 = vmatprep.subr.mxu0 0.0
    %3313 = vmatpush1.msra.mxu0 0.0
    %3314 = vmatprep.subr.mxu0 0.0
    %3315 = vmatpush1.msra.mxu0 0.0
    %3316 = vmatprep.subr.mxu0 0.0
    %3317 = vmatpush1.msra.mxu0 0.0
    %3318 = vmatprep.subr.mxu0 0.0
    %3319 = vmatpush1.msra.mxu0 0.0
    %3320 = vmatprep.subr.mxu0 0.0
    %3321 = vmatpush1.msra.mxu0 0.0
    %3322 = vmatprep.subr.mxu0 0.0
    %3323 = vmatpush1.msra.mxu0 0.0
    %3324 = vmatprep.subr.mxu0 0.0
    %3325 = vmatpush1.msra.mxu0 0.0
    %3326 = vmatprep.subr.mxu0 0.0
    %3327 = vmatpush1.msra.mxu0 0.0
    %3328 = vmatprep.subr.mxu0 0.0
    %3329 = vmatpush1.msra.mxu0 0.0
    %3330 = vmatprep.subr.mxu0 0.0
    %3331 = vmatpush1.msra.mxu0 0.0
    %3332 = vmatprep.subr.mxu0 0.0
    %3333 = vmatpush1.msra.mxu0 0.0
    %3334 = vmatprep.subr.mxu0 0.0
    %3335 = vmatpush1.msra.mxu0 0.0
    %3336 = vmatprep.subr.mxu0 0.0
    %3337 = vmatpush1.msra.mxu0 0.0
    %3338 = vmatprep.mubr.f32.mxu0 0.0
    %3339 = vmatmul.mubr.f32.gmra.mrb[0].mxu0 %v2963
    %v3340 = vpop.f32.mrb[0].mxu0
    %v3341 = vadd.f32 0.0, %v3340
    %v3342 = vpop.f32.mrb[0].mxu0
    %v3343 = vadd.f32 0.0, %v3342
    %3344 = vdwg.mxu0
    %3345 = vmatprep.subr.mxu0 0.0
    %3346 = vmatpush1.msra.mxu0 %v395
    %3347 = vmatprep.subr.mxu0 0.0
    %3348 = vmatpush1.msra.mxu0 %v398
    %3349 = vmatprep.subr.mxu0 0.0
    %3350 = vmatpush1.msra.mxu0 %v401
    %3351 = vmatprep.subr.mxu0 0.0
    %3352 = vmatpush1.msra.mxu0 %v404
    %3353 = vmatprep.subr.mxu0 0.0
    %3354 = vmatpush1.msra.mxu0 0.0
    %3355 = vmatprep.subr.mxu0 0.0
    %3356 = vmatpush1.msra.mxu0 0.0
    %3357 = vmatprep.subr.mxu0 0.0
    %3358 = vmatpush1.msra.mxu0 0.0
    %3359 = vmatprep.subr.mxu0 0.0
    %3360 = vmatpush1.msra.mxu0 0.0
    %3361 = vmatprep.subr.mxu0 0.0
    %3362 = vmatpush1.msra.mxu0 0.0
    %3363 = vmatprep.subr.mxu0 0.0
    %3364 = vmatpush1.msra.mxu0 0.0
    %3365 = vmatprep.subr.mxu0 0.0
    %3366 = vmatpush1.msra.mxu0 0.0
    %3367 = vmatprep.subr.mxu0 0.0
    %3368 = vmatpush1.msra.mxu0 0.0
    %3369 = vmatprep.subr.mxu0 0.0
    %3370 = vmatpush1.msra.mxu0 0.0
    %3371 = vmatprep.subr.mxu0 0.0
    %3372 = vmatpush1.msra.mxu0 0.0
    %3373 = vmatprep.subr.mxu0 0.0
    %3374 = vmatpush1.msra.mxu0 0.0
    %3375 = vmatprep.subr.mxu0 0.0
    %3376 = vmatpush1.msra.mxu0 0.0
    %3377 = vmatprep.subr.mxu0 0.0
    %3378 = vmatpush1.msra.mxu0 0.0
    %3379 = vmatprep.subr.mxu0 0.0
    %3380 = vmatpush1.msra.mxu0 0.0
    %3381 = vmatprep.subr.mxu0 0.0
    %3382 = vmatpush1.msra.mxu0 0.0
    %3383 = vmatprep.subr.mxu0 0.0
    %3384 = vmatpush1.msra.mxu0 0.0
    %3385 = vmatprep.subr.mxu0 0.0
    %3386 = vmatpush1.msra.mxu0 0.0
    %3387 = vmatprep.subr.mxu0 0.0
    %3388 = vmatpush1.msra.mxu0 0.0
    %3389 = vmatprep.subr.mxu0 0.0
    %3390 = vmatpush1.msra.mxu0 0.0
    %3391 = vmatprep.subr.mxu0 0.0
    %3392 = vmatpush1.msra.mxu0 0.0
    %3393 = vmatprep.subr.mxu0 0.0
    %3394 = vmatpush1.msra.mxu0 0.0
    %3395 = vmatprep.subr.mxu0 0.0
    %3396 = vmatpush1.msra.mxu0 0.0
    %3397 = vmatprep.subr.mxu0 0.0
    %3398 = vmatpush1.msra.mxu0 0.0
    %3399 = vmatprep.subr.mxu0 0.0
    %3400 = vmatpush1.msra.mxu0 0.0
    %3401 = vmatprep.subr.mxu0 0.0
    %3402 = vmatpush1.msra.mxu0 0.0
    %3403 = vmatprep.subr.mxu0 0.0
    %3404 = vmatpush1.msra.mxu0 0.0
    %3405 = vmatprep.subr.mxu0 0.0
    %3406 = vmatpush1.msra.mxu0 0.0
    %3407 = vmatprep.subr.mxu0 0.0
    %3408 = vmatpush1.msra.mxu0 0.0
    %3409 = vmatprep.mubr.f32.mxu0 0.0
    %3410 = vmatmul.mubr.f32.gmra.mrb[0].mxu0 %v2963
    %v3411 = vpop.f32.mrb[0].mxu0
    %v3412 = vadd.f32 0.0, %v3411
    %v3413 = vpop.f32.mrb[0].mxu0
    %3414 = vdwg.mxu0
    %v3415 = vadd.f32 %v3271, %v3341
    %v3416 = vadd.f32 %v3272, %v3343
    %v3417 = vxor.u32 %v3415, 2147483648
    %v3418 = vmul.f32 %v3417, 1.442695
    %v3419 = vpow.pop %v3418
    %v3420 = vadd.f32 %v3419, 1.0
    %v3421 = vrcp.pop %v3420
    %v3422 = vmul.f32 1.0, %v3421
    %v3423 = vxor.u32 %v3416, 2147483648
    %v3424 = vmul.f32 %v3423, 1.442695
    %v3425 = vpow.pop %v3424
    %v3426 = vadd.f32 %v3425, 1.0
    %v3427 = vrcp.pop %v3426
    %v3428 = vmul.f32 1.0, %v3427
    %v3429 = vadd.f32 %v3412, %v83
    %v3430 = vmul.f32 %v3422, %v3429
    %v3431 = vadd.f32 %v3273, %v3430
    %v3432 = vtanh.pop %v3431
    %v3433 = vsub.f32 %v2961, %v3432
    %v3434 = vmul.f32 %v3428, %v3433
    %v3435 = vadd.f32 %v3432, %v3434
    %v3437 = vsel %vm405, %v3435, 0
    %3439 = vmatprep.subr.mxu0 %v572
    %3440 = vmatpush1.msra.mxu0 %v571
    %3441 = vmatprep.subr.mxu0 %v575
    %3442 = vmatpush1.msra.mxu0 %v574
    %3443 = vmatprep.subr.mxu0 %v578
    %3444 = vmatpush1.msra.mxu0 %v577
    %3445 = vmatprep.subr.mxu0 %v581
    %3446 = vmatpush1.msra.mxu0 %v580
    %3447 = vmatprep.subr.mxu0 0.0
    %3448 = vmatpush1.msra.mxu0 0.0
    %3449 = vmatprep.subr.mxu0 0.0
    %3450 = vmatpush1.msra.mxu0 0.0
    %3451 = vmatprep.subr.mxu0 0.0
    %3452 = vmatpush1.msra.mxu0 0.0
    %3453 = vmatprep.subr.mxu0 0.0
    %3454 = vmatpush1.msra.mxu0 0.0
    %3455 = vmatprep.subr.mxu0 0.0
    %3456 = vmatpush1.msra.mxu0 0.0
    %3457 = vmatprep.subr.mxu0 0.0
    %3458 = vmatpush1.msra.mxu0 0.0
    %3459 = vmatprep.subr.mxu0 0.0
    %3460 = vmatpush1.msra.mxu0 0.0
    %3461 = vmatprep.subr.mxu0 0.0
    %3462 = vmatpush1.msra.mxu0 0.0
    %3463 = vmatprep.subr.mxu0 0.0
    %3464 = vmatpush1.msra.mxu0 0.0
    %3465 = vmatprep.subr.mxu0 0.0
    %3466 = vmatpush1.msra.mxu0 0.0
    %3467 = vmatprep.subr.mxu0 0.0
    %3468 = vmatpush1.msra.mxu0 0.0
    %3469 = vmatprep.subr.mxu0 0.0
    %3470 = vmatpush1.msra.mxu0 0.0
    %3471 = vmatprep.subr.mxu0 0.0
    %3472 = vmatpush1.msra.mxu0 0.0
    %3473 = vmatprep.subr.mxu0 0.0
    %3474 = vmatpush1.msra.mxu0 0.0
    %3475 = vmatprep.subr.mxu0 0.0
    %3476 = vmatpush1.msra.mxu0 0.0
    %3477 = vmatprep.subr.mxu0 0.0
    %3478 = vmatpush1.msra.mxu0 0.0
    %3479 = vmatprep.subr.mxu0 0.0
    %3480 = vmatpush1.msra.mxu0 0.0
    %3481 = vmatprep.subr.mxu0 0.0
    %3482 = vmatpush1.msra.mxu0 0.0
    %3483 = vmatprep.subr.mxu0 0.0
    %3484 = vmatpush1.msra.mxu0 0.0
    %3485 = vmatprep.subr.mxu0 0.0
    %3486 = vmatpush1.msra.mxu0 0.0
    %3487 = vmatprep.subr.mxu0 0.0
    %3488 = vmatpush1.msra.mxu0 0.0
    %3489 = vmatprep.subr.mxu0 0.0
    %3490 = vmatpush1.msra.mxu0 0.0
    %3491 = vmatprep.subr.mxu0 0.0
    %3492 = vmatpush1.msra.mxu0 0.0
    %3493 = vmatprep.subr.mxu0 0.0
    %3494 = vmatpush1.msra.mxu0 0.0
    %3495 = vmatprep.subr.mxu0 0.0
    %3496 = vmatpush1.msra.mxu0 0.0
    %3497 = vmatprep.subr.mxu0 0.0
    %3498 = vmatpush1.msra.mxu0 0.0
    %3499 = vmatprep.subr.mxu0 0.0
    %3500 = vmatpush1.msra.mxu0 0.0
    %3501 = vmatprep.subr.mxu0 0.0
    %3502 = vmatpush1.msra.mxu0 0.0
    %3503 = vmatprep.mubr.f32.mxu0 0.0
    %3504 = vmatmul.mubr.f32.gmra.mrb[0].mxu0 %v3437
    %v3505 = vpop.f32.mrb[0].mxu0
    %v3506 = vadd.f32 %v71, %v3505
    %v3507 = vpop.f32.mrb[0].mxu0
    %v3508 = vadd.f32 %v75, %v3507
    %3509 = vdwg.mxu0
    %3510 = vmatprep.subr.mxu0 0.0
    %3511 = vmatpush1.msra.mxu0 %v573
    %3512 = vmatprep.subr.mxu0 0.0
    %3513 = vmatpush1.msra.mxu0 %v576
    %3514 = vmatprep.subr.mxu0 0.0
    %3515 = vmatpush1.msra.mxu0 %v579
    %3516 = vmatprep.subr.mxu0 0.0
    %3517 = vmatpush1.msra.mxu0 %v582
    %3518 = vmatprep.subr.mxu0 0.0
    %3519 = vmatpush1.msra.mxu0 0.0
    %3520 = vmatprep.subr.mxu0 0.0
    %3521 = vmatpush1.msra.mxu0 0.0
    %3522 = vmatprep.subr.mxu0 0.0
    %3523 = vmatpush1.msra.mxu0 0.0
    %3524 = vmatprep.subr.mxu0 0.0
    %3525 = vmatpush1.msra.mxu0 0.0
    %3526 = vmatprep.subr.mxu0 0.0
    %3527 = vmatpush1.msra.mxu0 0.0
    %3528 = vmatprep.subr.mxu0 0.0
    %3529 = vmatpush1.msra.mxu0 0.0
    %3530 = vmatprep.subr.mxu0 0.0
    %3531 = vmatpush1.msra.mxu0 0.0
    %3532 = vmatprep.subr.mxu0 0.0
    %3533 = vmatpush1.msra.mxu0 0.0
    %3534 = vmatprep.subr.mxu0 0.0
    %3535 = vmatpush1.msra.mxu0 0.0
    %3536 = vmatprep.subr.mxu0 0.0
    %3537 = vmatpush1.msra.mxu0 0.0
    %3538 = vmatprep.subr.mxu0 0.0
    %3539 = vmatpush1.msra.mxu0 0.0
    %3540 = vmatprep.subr.mxu0 0.0
    %3541 = vmatpush1.msra.mxu0 0.0
    %3542 = vmatprep.subr.mxu0 0.0
    %3543 = vmatpush1.msra.mxu0 0.0
    %3544 = vmatprep.subr.mxu0 0.0
    %3545 = vmatpush1.msra.mxu0 0.0
    %3546 = vmatprep.subr.mxu0 0.0
    %3547 = vmatpush1.msra.mxu0 0.0
    %3548 = vmatprep.subr.mxu0 0.0
    %3549 = vmatpush1.msra.mxu0 0.0
    %3550 = vmatprep.subr.mxu0 0.0
    %3551 = vmatpush1.msra.mxu0 0.0
    %3552 = vmatprep.subr.mxu0 0.0
    %3553 = vmatpush1.msra.mxu0 0.0
    %3554 = vmatprep.subr.mxu0 0.0
    %3555 = vmatpush1.msra.mxu0 0.0
    %3556 = vmatprep.subr.mxu0 0.0
    %3557 = vmatpush1.msra.mxu0 0.0
    %3558 = vmatprep.subr.mxu0 0.0
    %3559 = vmatpush1.msra.mxu0 0.0
    %3560 = vmatprep.subr.mxu0 0.0
    %3561 = vmatpush1.msra.mxu0 0.0
    %3562 = vmatprep.subr.mxu0 0.0
    %3563 = vmatpush1.msra.mxu0 0.0
    %3564 = vmatprep.subr.mxu0 0.0
    %3565 = vmatpush1.msra.mxu0 0.0
    %3566 = vmatprep.subr.mxu0 0.0
    %3567 = vmatpush1.msra.mxu0 0.0
    %3568 = vmatprep.subr.mxu0 0.0
    %3569 = vmatpush1.msra.mxu0 0.0
    %3570 = vmatprep.subr.mxu0 0.0
    %3571 = vmatpush1.msra.mxu0 0.0
    %3572 = vmatprep.subr.mxu0 0.0
    %3573 = vmatpush1.msra.mxu0 0.0
    %3574 = vmatprep.mubr.f32.mxu0 0.0
    %3575 = vmatmul.mubr.f32.gmra.mrb[0].mxu0 %v3437
    %v3576 = vpop.f32.mrb[0].mxu0
    %v3577 = vadd.f32 %v79, %v3576
    %v3578 = vpop.f32.mrb[0].mxu0
    %3579 = vdwg.mxu0
    %v3581 = vsel %vm405, %v3270, 0
    %3583 = vmatprep.subr.mxu0 %v728
    %3584 = vmatpush1.msra.mxu0 %v727
    %3585 = vmatprep.subr.mxu0 %v731
    %3586 = vmatpush1.msra.mxu0 %v730
    %3587 = vmatprep.subr.mxu0 %v734
    %3588 = vmatpush1.msra.mxu0 %v733
    %3589 = vmatprep.subr.mxu0 %v737
    %3590 = vmatpush1.msra.mxu0 %v736
    %3591 = vmatprep.subr.mxu0 0.0
    %3592 = vmatpush1.msra.mxu0 0.0
    %3593 = vmatprep.subr.mxu0 0.0
    %3594 = vmatpush1.msra.mxu0 0.0
    %3595 = vmatprep.subr.mxu0 0.0
    %3596 = vmatpush1.msra.mxu0 0.0
    %3597 = vmatprep.subr.mxu0 0.0
    %3598 = vmatpush1.msra.mxu0 0.0
    %3599 = vmatprep.subr.mxu0 0.0
    %3600 = vmatpush1.msra.mxu0 0.0
    %3601 = vmatprep.subr.mxu0 0.0
    %3602 = vmatpush1.msra.mxu0 0.0
    %3603 = vmatprep.subr.mxu0 0.0
    %3604 = vmatpush1.msra.mxu0 0.0
    %3605 = vmatprep.subr.mxu0 0.0
    %3606 = vmatpush1.msra.mxu0 0.0
    %3607 = vmatprep.subr.mxu0 0.0
    %3608 = vmatpush1.msra.mxu0 0.0
    %3609 = vmatprep.subr.mxu0 0.0
    %3610 = vmatpush1.msra.mxu0 0.0
    %3611 = vmatprep.subr.mxu0 0.0
    %3612 = vmatpush1.msra.mxu0 0.0
    %3613 = vmatprep.subr.mxu0 0.0
    %3614 = vmatpush1.msra.mxu0 0.0
    %3615 = vmatprep.subr.mxu0 0.0
    %3616 = vmatpush1.msra.mxu0 0.0
    %3617 = vmatprep.subr.mxu0 0.0
    %3618 = vmatpush1.msra.mxu0 0.0
    %3619 = vmatprep.subr.mxu0 0.0
    %3620 = vmatpush1.msra.mxu0 0.0
    %3621 = vmatprep.subr.mxu0 0.0
    %3622 = vmatpush1.msra.mxu0 0.0
    %3623 = vmatprep.subr.mxu0 0.0
    %3624 = vmatpush1.msra.mxu0 0.0
    %3625 = vmatprep.subr.mxu0 0.0
    %3626 = vmatpush1.msra.mxu0 0.0
    %3627 = vmatprep.subr.mxu0 0.0
    %3628 = vmatpush1.msra.mxu0 0.0
    %3629 = vmatprep.subr.mxu0 0.0
    %3630 = vmatpush1.msra.mxu0 0.0
    %3631 = vmatprep.subr.mxu0 0.0
    %3632 = vmatpush1.msra.mxu0 0.0
    %3633 = vmatprep.subr.mxu0 0.0
    %3634 = vmatpush1.msra.mxu0 0.0
    %3635 = vmatprep.subr.mxu0 0.0
    %3636 = vmatpush1.msra.mxu0 0.0
    %3637 = vmatprep.subr.mxu0 0.0
    %3638 = vmatpush1.msra.mxu0 0.0
    %3639 = vmatprep.subr.mxu0 0.0
    %3640 = vmatpush1.msra.mxu0 0.0
    %3641 = vmatprep.subr.mxu0 0.0
    %3642 = vmatpush1.msra.mxu0 0.0
    %3643 = vmatprep.subr.mxu0 0.0
    %3644 = vmatpush1.msra.mxu0 0.0
    %3645 = vmatprep.subr.mxu0 0.0
    %3646 = vmatpush1.msra.mxu0 0.0
    %3647 = vmatprep.mubr.f32.mxu0 0.0
    %3648 = vmatmul.mubr.f32.gmra.mrb[0].mxu0 %v3581
    %v3649 = vpop.f32.mrb[0].mxu0
    %v3650 = vadd.f32 0.0, %v3649
    %v3651 = vpop.f32.mrb[0].mxu0
    %v3652 = vadd.f32 0.0, %v3651
    %3653 = vdwg.mxu0
    %3654 = vmatprep.subr.mxu0 0.0
    %3655 = vmatpush1.msra.mxu0 %v729
    %3656 = vmatprep.subr.mxu0 0.0
    %3657 = vmatpush1.msra.mxu0 %v732
    %3658 = vmatprep.subr.mxu0 0.0
    %3659 = vmatpush1.msra.mxu0 %v735
    %3660 = vmatprep.subr.mxu0 0.0
    %3661 = vmatpush1.msra.mxu0 %v738
    %3662 = vmatprep.subr.mxu0 0.0
    %3663 = vmatpush1.msra.mxu0 0.0
    %3664 = vmatprep.subr.mxu0 0.0
    %3665 = vmatpush1.msra.mxu0 0.0
    %3666 = vmatprep.subr.mxu0 0.0
    %3667 = vmatpush1.msra.mxu0 0.0
    %3668 = vmatprep.subr.mxu0 0.0
    %3669 = vmatpush1.msra.mxu0 0.0
    %3670 = vmatprep.subr.mxu0 0.0
    %3671 = vmatpush1.msra.mxu0 0.0
    %3672 = vmatprep.subr.mxu0 0.0
    %3673 = vmatpush1.msra.mxu0 0.0
    %3674 = vmatprep.subr.mxu0 0.0
    %3675 = vmatpush1.msra.mxu0 0.0
    %3676 = vmatprep.subr.mxu0 0.0
    %3677 = vmatpush1.msra.mxu0 0.0
    %3678 = vmatprep.subr.mxu0 0.0
    %3679 = vmatpush1.msra.mxu0 0.0
    %3680 = vmatprep.subr.mxu0 0.0
    %3681 = vmatpush1.msra.mxu0 0.0
    %3682 = vmatprep.subr.mxu0 0.0
    %3683 = vmatpush1.msra.mxu0 0.0
    %3684 = vmatprep.subr.mxu0 0.0
    %3685 = vmatpush1.msra.mxu0 0.0
    %3686 = vmatprep.subr.mxu0 0.0
    %3687 = vmatpush1.msra.mxu0 0.0
    %3688 = vmatprep.subr.mxu0 0.0
    %3689 = vmatpush1.msra.mxu0 0.0
    %3690 = vmatprep.subr.mxu0 0.0
    %3691 = vmatpush1.msra.mxu0 0.0
    %3692 = vmatprep.subr.mxu0 0.0
    %3693 = vmatpush1.msra.mxu0 0.0
    %3694 = vmatprep.subr.mxu0 0.0
    %3695 = vmatpush1.msra.mxu0 0.0
    %3696 = vmatprep.subr.mxu0 0.0
    %3697 = vmatpush1.msra.mxu0 0.0
    %3698 = vmatprep.subr.mxu0 0.0
    %3699 = vmatpush1.msra.mxu0 0.0
    %3700 = vmatprep.subr.mxu0 0.0
    %3701 = vmatpush1.msra.mxu0 0.0
    %3702 = vmatprep.subr.mxu0 0.0
    %3703 = vmatpush1.msra.mxu0 0.0
    %3704 = vmatprep.subr.mxu0 0.0
    %3705 = vmatpush1.msra.mxu0 0.0
    %3706 = vmatprep.subr.mxu0 0.0
    %3707 = vmatpush1.msra.mxu0 0.0
    %3708 = vmatprep.subr.mxu0 0.0
    %3709 = vmatpush1.msra.mxu0 0.0
    %3710 = vmatprep.subr.mxu0 0.0
    %3711 = vmatpush1.msra.mxu0 0.0
    %3712 = vmatprep.subr.mxu0 0.0
    %3713 = vmatpush1.msra.mxu0 0.0
    %3714 = vmatprep.subr.mxu0 0.0
    %3715 = vmatpush1.msra.mxu0 0.0
    %3716 = vmatprep.subr.mxu0 0.0
    %3717 = vmatpush1.msra.mxu0 0.0
    %3718 = vmatprep.mubr.f32.mxu0 0.0
    %3719 = vmatmul.mubr.f32.gmra.mrb[0].mxu0 %v3581
    %v3720 = vpop.f32.mrb[0].mxu0
    %v3721 = vadd.f32 0.0, %v3720
    %v3722 = vpop.f32.mrb[0].mxu0
    %3723 = vdwg.mxu0
    %v3724 = vadd.f32 %v3506, %v3650
    %v3725 = vadd.f32 %v3508, %v3652
    %v3726 = vxor.u32 %v3724, 2147483648
    %v3727 = vmul.f32 %v3726, 1.442695
    %v3728 = vpow.pop %v3727
    %v3729 = vadd.f32 %v3728, 1.0
    %v3730 = vrcp.pop %v3729
    %v3731 = vmul.f32 1.0, %v3730
    %v3732 = vxor.u32 %v3725, 2147483648
    %v3733 = vmul.f32 %v3732, 1.442695
    %v3734 = vpow.pop %v3733
    %v3735 = vadd.f32 %v3734, 1.0
    %v3736 = vrcp.pop %v3735
    %v3737 = vmul.f32 1.0, %v3736
    %v3738 = vadd.f32 %v3721, %v84
    %v3739 = vmul.f32 %v3731, %v3738
    %v3740 = vadd.f32 %v3577, %v3739
    %v3741 = vtanh.pop %v3740
    %v3742 = vsub.f32 %v3270, %v3741
    %v3743 = vmul.f32 %v3737, %v3742
    %v3744 = vadd.f32 %v3741, %v3743
    %v3745 = vld [vmem:[#allocation2 + $0xa8] sm:$0xff]
    %v3746 = vld [vmem:[#allocation2 + $0xb0] sm:$0xff]
    %v3747 = vld [vmem:[#allocation2 + $0xb8] sm:$0xff]
    %3748 = vmatprep.subr.mxu0 %v394
    %3749 = vmatpush1.msra.mxu0 %v393
    %3750 = vmatprep.subr.mxu0 %v397
    %3751 = vmatpush1.msra.mxu0 %v396
    %3752 = vmatprep.subr.mxu0 %v400
    %3753 = vmatpush1.msra.mxu0 %v399
    %3754 = vmatprep.subr.mxu0 %v403
    %3755 = vmatpush1.msra.mxu0 %v402
    %3756 = vmatprep.subr.mxu0 0.0
    %3757 = vmatpush1.msra.mxu0 0.0
    %3758 = vmatprep.subr.mxu0 0.0
    %3759 = vmatpush1.msra.mxu0 0.0
    %3760 = vmatprep.subr.mxu0 0.0
    %3761 = vmatpush1.msra.mxu0 0.0
    %3762 = vmatprep.subr.mxu0 0.0
    %3763 = vmatpush1.msra.mxu0 0.0
    %3764 = vmatprep.subr.mxu0 0.0
    %3765 = vmatpush1.msra.mxu0 0.0
    %3766 = vmatprep.subr.mxu0 0.0
    %3767 = vmatpush1.msra.mxu0 0.0
    %3768 = vmatprep.subr.mxu0 0.0
    %3769 = vmatpush1.msra.mxu0 0.0
    %3770 = vmatprep.subr.mxu0 0.0
    %3771 = vmatpush1.msra.mxu0 0.0
    %3772 = vmatprep.subr.mxu0 0.0
    %3773 = vmatpush1.msra.mxu0 0.0
    %3774 = vmatprep.subr.mxu0 0.0
    %3775 = vmatpush1.msra.mxu0 0.0
    %3776 = vmatprep.subr.mxu0 0.0
    %3777 = vmatpush1.msra.mxu0 0.0
    %3778 = vmatprep.subr.mxu0 0.0
    %3779 = vmatpush1.msra.mxu0 0.0
    %3780 = vmatprep.subr.mxu0 0.0
    %3781 = vmatpush1.msra.mxu0 0.0
    %3782 = vmatprep.subr.mxu0 0.0
    %3783 = vmatpush1.msra.mxu0 0.0
    %3784 = vmatprep.subr.mxu0 0.0
    %3785 = vmatpush1.msra.mxu0 0.0
    %3786 = vmatprep.subr.mxu0 0.0
    %3787 = vmatpush1.msra.mxu0 0.0
    %3788 = vmatprep.subr.mxu0 0.0
    %3789 = vmatpush1.msra.mxu0 0.0
    %3790 = vmatprep.subr.mxu0 0.0
    %3791 = vmatpush1.msra.mxu0 0.0
    %3792 = vmatprep.subr.mxu0 0.0
    %3793 = vmatpush1.msra.mxu0 0.0
    %3794 = vmatprep.subr.mxu0 0.0
    %3795 = vmatpush1.msra.mxu0 0.0
    %3796 = vmatprep.subr.mxu0 0.0
    %3797 = vmatpush1.msra.mxu0 0.0
    %3798 = vmatprep.subr.mxu0 0.0
    %3799 = vmatpush1.msra.mxu0 0.0
    %3800 = vmatprep.subr.mxu0 0.0
    %3801 = vmatpush1.msra.mxu0 0.0
    %3802 = vmatprep.subr.mxu0 0.0
    %3803 = vmatpush1.msra.mxu0 0.0
    %3804 = vmatprep.subr.mxu0 0.0
    %3805 = vmatpush1.msra.mxu0 0.0
    %3806 = vmatprep.subr.mxu0 0.0
    %3807 = vmatpush1.msra.mxu0 0.0
    %3808 = vmatprep.subr.mxu0 0.0
    %3809 = vmatpush1.msra.mxu0 0.0
    %3810 = vmatprep.subr.mxu0 0.0
    %3811 = vmatpush1.msra.mxu0 0.0
    %3812 = vmatprep.mubr.f32.mxu0 0.0
    %3813 = vmatmul.mubr.f32.gmra.mrb[0].mxu0 %v3437
    %v3814 = vpop.f32.mrb[0].mxu0
    %v3815 = vadd.f32 0.0, %v3814
    %v3816 = vpop.f32.mrb[0].mxu0
    %v3817 = vadd.f32 0.0, %v3816
    %3818 = vdwg.mxu0
    %3819 = vmatprep.subr.mxu0 0.0
    %3820 = vmatpush1.msra.mxu0 %v395
    %3821 = vmatprep.subr.mxu0 0.0
    %3822 = vmatpush1.msra.mxu0 %v398
    %3823 = vmatprep.subr.mxu0 0.0
    %3824 = vmatpush1.msra.mxu0 %v401
    %3825 = vmatprep.subr.mxu0 0.0
    %3826 = vmatpush1.msra.mxu0 %v404
    %3827 = vmatprep.subr.mxu0 0.0
    %3828 = vmatpush1.msra.mxu0 0.0
    %3829 = vmatprep.subr.mxu0 0.0
    %3830 = vmatpush1.msra.mxu0 0.0
    %3831 = vmatprep.subr.mxu0 0.0
    %3832 = vmatpush1.msra.mxu0 0.0
    %3833 = vmatprep.subr.mxu0 0.0
    %3834 = vmatpush1.msra.mxu0 0.0
    %3835 = vmatprep.subr.mxu0 0.0
    %3836 = vmatpush1.msra.mxu0 0.0
    %3837 = vmatprep.subr.mxu0 0.0
    %3838 = vmatpush1.msra.mxu0 0.0
    %3839 = vmatprep.subr.mxu0 0.0
    %3840 = vmatpush1.msra.mxu0 0.0
    %3841 = vmatprep.subr.mxu0 0.0
    %3842 = vmatpush1.msra.mxu0 0.0
    %3843 = vmatprep.subr.mxu0 0.0
    %3844 = vmatpush1.msra.mxu0 0.0
    %3845 = vmatprep.subr.mxu0 0.0
    %3846 = vmatpush1.msra.mxu0 0.0
    %3847 = vmatprep.subr.mxu0 0.0
    %3848 = vmatpush1.msra.mxu0 0.0
    %3849 = vmatprep.subr.mxu0 0.0
    %3850 = vmatpush1.msra.mxu0 0.0
    %3851 = vmatprep.subr.mxu0 0.0
    %3852 = vmatpush1.msra.mxu0 0.0
    %3853 = vmatprep.subr.mxu0 0.0
    %3854 = vmatpush1.msra.mxu0 0.0
    %3855 = vmatprep.subr.mxu0 0.0
    %3856 = vmatpush1.msra.mxu0 0.0
    %3857 = vmatprep.subr.mxu0 0.0
    %3858 = vmatpush1.msra.mxu0 0.0
    %3859 = vmatprep.subr.mxu0 0.0
    %3860 = vmatpush1.msra.mxu0 0.0
    %3861 = vmatprep.subr.mxu0 0.0
    %3862 = vmatpush1.msra.mxu0 0.0
    %3863 = vmatprep.subr.mxu0 0.0
    %3864 = vmatpush1.msra.mxu0 0.0
    %3865 = vmatprep.subr.mxu0 0.0
    %3866 = vmatpush1.msra.mxu0 0.0
    %3867 = vmatprep.subr.mxu0 0.0
    %3868 = vmatpush1.msra.mxu0 0.0
    %3869 = vmatprep.subr.mxu0 0.0
    %3870 = vmatpush1.msra.mxu0 0.0
    %3871 = vmatprep.subr.mxu0 0.0
    %3872 = vmatpush1.msra.mxu0 0.0
    %3873 = vmatprep.subr.mxu0 0.0
    %3874 = vmatpush1.msra.mxu0 0.0
    %3875 = vmatprep.subr.mxu0 0.0
    %3876 = vmatpush1.msra.mxu0 0.0
    %3877 = vmatprep.subr.mxu0 0.0
    %3878 = vmatpush1.msra.mxu0 0.0
    %3879 = vmatprep.subr.mxu0 0.0
    %3880 = vmatpush1.msra.mxu0 0.0
    %3881 = vmatprep.subr.mxu0 0.0
    %3882 = vmatpush1.msra.mxu0 0.0
    %3883 = vmatprep.mubr.f32.mxu0 0.0
    %3884 = vmatmul.mubr.f32.gmra.mrb[0].mxu0 %v3437
    %v3885 = vpop.f32.mrb[0].mxu0
    %v3886 = vadd.f32 0.0, %v3885
    %v3887 = vpop.f32.mrb[0].mxu0
    %3888 = vdwg.mxu0
    %v3889 = vadd.f32 %v3745, %v3815
    %v3890 = vadd.f32 %v3746, %v3817
    %v3891 = vxor.u32 %v3889, 2147483648
    %v3892 = vmul.f32 %v3891, 1.442695
    %v3893 = vpow.pop %v3892
    %v3894 = vadd.f32 %v3893, 1.0
    %v3895 = vrcp.pop %v3894
    %v3896 = vmul.f32 1.0, %v3895
    %v3897 = vxor.u32 %v3890, 2147483648
    %v3898 = vmul.f32 %v3897, 1.442695
    %v3899 = vpow.pop %v3898
    %v3900 = vadd.f32 %v3899, 1.0
    %v3901 = vrcp.pop %v3900
    %v3902 = vmul.f32 1.0, %v3901
    %v3903 = vadd.f32 %v3886, %v83
    %v3904 = vmul.f32 %v3896, %v3903
    %v3905 = vadd.f32 %v3747, %v3904
    %v3906 = vtanh.pop %v3905
    %v3907 = vsub.f32 %v3435, %v3906
    %v3908 = vmul.f32 %v3902, %v3907
    %v3909 = vadd.f32 %v3906, %v3908
    %v3911 = vsel %vm405, %v3909, 0
    %3913 = vmatprep.subr.mxu0 %v572
    %3914 = vmatpush1.msra.mxu0 %v571
    %3915 = vmatprep.subr.mxu0 %v575
    %3916 = vmatpush1.msra.mxu0 %v574
    %3917 = vmatprep.subr.mxu0 %v578
    %3918 = vmatpush1.msra.mxu0 %v577
    %3919 = vmatprep.subr.mxu0 %v581
    %3920 = vmatpush1.msra.mxu0 %v580
    %3921 = vmatprep.subr.mxu0 0.0
    %3922 = vmatpush1.msra.mxu0 0.0
    %3923 = vmatprep.subr.mxu0 0.0
    %3924 = vmatpush1.msra.mxu0 0.0
    %3925 = vmatprep.subr.mxu0 0.0
    %3926 = vmatpush1.msra.mxu0 0.0
    %3927 = vmatprep.subr.mxu0 0.0
    %3928 = vmatpush1.msra.mxu0 0.0
    %3929 = vmatprep.subr.mxu0 0.0
    %3930 = vmatpush1.msra.mxu0 0.0
    %3931 = vmatprep.subr.mxu0 0.0
    %3932 = vmatpush1.msra.mxu0 0.0
    %3933 = vmatprep.subr.mxu0 0.0
    %3934 = vmatpush1.msra.mxu0 0.0
    %3935 = vmatprep.subr.mxu0 0.0
    %3936 = vmatpush1.msra.mxu0 0.0
    %3937 = vmatprep.subr.mxu0 0.0
    %3938 = vmatpush1.msra.mxu0 0.0
    %3939 = vmatprep.subr.mxu0 0.0
    %3940 = vmatpush1.msra.mxu0 0.0
    %3941 = vmatprep.subr.mxu0 0.0
    %3942 = vmatpush1.msra.mxu0 0.0
    %3943 = vmatprep.subr.mxu0 0.0
    %3944 = vmatpush1.msra.mxu0 0.0
    %3945 = vmatprep.subr.mxu0 0.0
    %3946 = vmatpush1.msra.mxu0 0.0
    %3947 = vmatprep.subr.mxu0 0.0
    %3948 = vmatpush1.msra.mxu0 0.0
    %3949 = vmatprep.subr.mxu0 0.0
    %3950 = vmatpush1.msra.mxu0 0.0
    %3951 = vmatprep.subr.mxu0 0.0
    %3952 = vmatpush1.msra.mxu0 0.0
    %3953 = vmatprep.subr.mxu0 0.0
    %3954 = vmatpush1.msra.mxu0 0.0
    %3955 = vmatprep.subr.mxu0 0.0
    %3956 = vmatpush1.msra.mxu0 0.0
    %3957 = vmatprep.subr.mxu0 0.0
    %3958 = vmatpush1.msra.mxu0 0.0
    %3959 = vmatprep.subr.mxu0 0.0
    %3960 = vmatpush1.msra.mxu0 0.0
    %3961 = vmatprep.subr.mxu0 0.0
    %3962 = vmatpush1.msra.mxu0 0.0
    %3963 = vmatprep.subr.mxu0 0.0
    %3964 = vmatpush1.msra.mxu0 0.0
    %3965 = vmatprep.subr.mxu0 0.0
    %3966 = vmatpush1.msra.mxu0 0.0
    %3967 = vmatprep.subr.mxu0 0.0
    %3968 = vmatpush1.msra.mxu0 0.0
    %3969 = vmatprep.subr.mxu0 0.0
    %3970 = vmatpush1.msra.mxu0 0.0
    %3971 = vmatprep.subr.mxu0 0.0
    %3972 = vmatpush1.msra.mxu0 0.0
    %3973 = vmatprep.subr.mxu0 0.0
    %3974 = vmatpush1.msra.mxu0 0.0
    %3975 = vmatprep.subr.mxu0 0.0
    %3976 = vmatpush1.msra.mxu0 0.0
    %3977 = vmatprep.mubr.f32.mxu0 0.0
    %3978 = vmatmul.mubr.f32.gmra.mrb[0].mxu0 %v3911
    %v3979 = vpop.f32.mrb[0].mxu0
    %v3980 = vadd.f32 %v71, %v3979
    %v3981 = vpop.f32.mrb[0].mxu0
    %v3982 = vadd.f32 %v75, %v3981
    %3983 = vdwg.mxu0
    %3984 = vmatprep.subr.mxu0 0.0
    %3985 = vmatpush1.msra.mxu0 %v573
    %3986 = vmatprep.subr.mxu0 0.0
    %3987 = vmatpush1.msra.mxu0 %v576
    %3988 = vmatprep.subr.mxu0 0.0
    %3989 = vmatpush1.msra.mxu0 %v579
    %3990 = vmatprep.subr.mxu0 0.0
    %3991 = vmatpush1.msra.mxu0 %v582
    %3992 = vmatprep.subr.mxu0 0.0
    %3993 = vmatpush1.msra.mxu0 0.0
    %3994 = vmatprep.subr.mxu0 0.0
    %3995 = vmatpush1.msra.mxu0 0.0
    %3996 = vmatprep.subr.mxu0 0.0
    %3997 = vmatpush1.msra.mxu0 0.0
    %3998 = vmatprep.subr.mxu0 0.0
    %3999 = vmatpush1.msra.mxu0 0.0
    %4000 = vmatprep.subr.mxu0 0.0
    %4001 = vmatpush1.msra.mxu0 0.0
    %4002 = vmatprep.subr.mxu0 0.0
    %4003 = vmatpush1.msra.mxu0 0.0
    %4004 = vmatprep.subr.mxu0 0.0
    %4005 = vmatpush1.msra.mxu0 0.0
    %4006 = vmatprep.subr.mxu0 0.0
    %4007 = vmatpush1.msra.mxu0 0.0
    %4008 = vmatprep.subr.mxu0 0.0
    %4009 = vmatpush1.msra.mxu0 0.0
    %4010 = vmatprep.subr.mxu0 0.0
    %4011 = vmatpush1.msra.mxu0 0.0
    %4012 = vmatprep.subr.mxu0 0.0
    %4013 = vmatpush1.msra.mxu0 0.0
    %4014 = vmatprep.subr.mxu0 0.0
    %4015 = vmatpush1.msra.mxu0 0.0
    %4016 = vmatprep.subr.mxu0 0.0
    %4017 = vmatpush1.msra.mxu0 0.0
    %4018 = vmatprep.subr.mxu0 0.0
    %4019 = vmatpush1.msra.mxu0 0.0
    %4020 = vmatprep.subr.mxu0 0.0
    %4021 = vmatpush1.msra.mxu0 0.0
    %4022 = vmatprep.subr.mxu0 0.0
    %4023 = vmatpush1.msra.mxu0 0.0
    %4024 = vmatprep.subr.mxu0 0.0
    %4025 = vmatpush1.msra.mxu0 0.0
    %4026 = vmatprep.subr.mxu0 0.0
    %4027 = vmatpush1.msra.mxu0 0.0
    %4028 = vmatprep.subr.mxu0 0.0
    %4029 = vmatpush1.msra.mxu0 0.0
    %4030 = vmatprep.subr.mxu0 0.0
    %4031 = vmatpush1.msra.mxu0 0.0
    %4032 = vmatprep.subr.mxu0 0.0
    %4033 = vmatpush1.msra.mxu0 0.0
    %4034 = vmatprep.subr.mxu0 0.0
    %4035 = vmatpush1.msra.mxu0 0.0
    %4036 = vmatprep.subr.mxu0 0.0
    %4037 = vmatpush1.msra.mxu0 0.0
    %4038 = vmatprep.subr.mxu0 0.0
    %4039 = vmatpush1.msra.mxu0 0.0
    %4040 = vmatprep.subr.mxu0 0.0
    %4041 = vmatpush1.msra.mxu0 0.0
    %4042 = vmatprep.subr.mxu0 0.0
    %4043 = vmatpush1.msra.mxu0 0.0
    %4044 = vmatprep.subr.mxu0 0.0
    %4045 = vmatpush1.msra.mxu0 0.0
    %4046 = vmatprep.subr.mxu0 0.0
    %4047 = vmatpush1.msra.mxu0 0.0
    %4048 = vmatprep.mubr.f32.mxu0 0.0
    %4049 = vmatmul.mubr.f32.gmra.mrb[0].mxu0 %v3911
    %v4050 = vpop.f32.mrb[0].mxu0
    %v4051 = vadd.f32 %v79, %v4050
    %v4052 = vpop.f32.mrb[0].mxu0
    %4053 = vdwg.mxu0
    %v4055 = vsel %vm405, %v3744, 0
    %4057 = vmatprep.subr.mxu0 %v728
    %4058 = vmatpush1.msra.mxu0 %v727
    %4059 = vmatprep.subr.mxu0 %v731
    %4060 = vmatpush1.msra.mxu0 %v730
    %4061 = vmatprep.subr.mxu0 %v734
    %4062 = vmatpush1.msra.mxu0 %v733
    %4063 = vmatprep.subr.mxu0 %v737
    %4064 = vmatpush1.msra.mxu0 %v736
    %4065 = vmatprep.subr.mxu0 0.0
    %4066 = vmatpush1.msra.mxu0 0.0
    %4067 = vmatprep.subr.mxu0 0.0
    %4068 = vmatpush1.msra.mxu0 0.0
    %4069 = vmatprep.subr.mxu0 0.0
    %4070 = vmatpush1.msra.mxu0 0.0
    %4071 = vmatprep.subr.mxu0 0.0
    %4072 = vmatpush1.msra.mxu0 0.0
    %4073 = vmatprep.subr.mxu0 0.0
    %4074 = vmatpush1.msra.mxu0 0.0
    %4075 = vmatprep.subr.mxu0 0.0
    %4076 = vmatpush1.msra.mxu0 0.0
    %4077 = vmatprep.subr.mxu0 0.0
    %4078 = vmatpush1.msra.mxu0 0.0
    %4079 = vmatprep.subr.mxu0 0.0
    %4080 = vmatpush1.msra.mxu0 0.0
    %4081 = vmatprep.subr.mxu0 0.0
    %4082 = vmatpush1.msra.mxu0 0.0
    %4083 = vmatprep.subr.mxu0 0.0
    %4084 = vmatpush1.msra.mxu0 0.0
    %4085 = vmatprep.subr.mxu0 0.0
    %4086 = vmatpush1.msra.mxu0 0.0
    %4087 = vmatprep.subr.mxu0 0.0
    %4088 = vmatpush1.msra.mxu0 0.0
    %4089 = vmatprep.subr.mxu0 0.0
    %4090 = vmatpush1.msra.mxu0 0.0
    %4091 = vmatprep.subr.mxu0 0.0
    %4092 = vmatpush1.msra.mxu0 0.0
    %4093 = vmatprep.subr.mxu0 0.0
    %4094 = vmatpush1.msra.mxu0 0.0
    %4095 = vmatprep.subr.mxu0 0.0
    %4096 = vmatpush1.msra.mxu0 0.0
    %4097 = vmatprep.subr.mxu0 0.0
    %4098 = vmatpush1.msra.mxu0 0.0
    %4099 = vmatprep.subr.mxu0 0.0
    %4100 = vmatpush1.msra.mxu0 0.0
    %4101 = vmatprep.subr.mxu0 0.0
    %4102 = vmatpush1.msra.mxu0 0.0
    %4103 = vmatprep.subr.mxu0 0.0
    %4104 = vmatpush1.msra.mxu0 0.0
    %4105 = vmatprep.subr.mxu0 0.0
    %4106 = vmatpush1.msra.mxu0 0.0
    %4107 = vmatprep.subr.mxu0 0.0
    %4108 = vmatpush1.msra.mxu0 0.0
    %4109 = vmatprep.subr.mxu0 0.0
    %4110 = vmatpush1.msra.mxu0 0.0
    %4111 = vmatprep.subr.mxu0 0.0
    %4112 = vmatpush1.msra.mxu0 0.0
    %4113 = vmatprep.subr.mxu0 0.0
    %4114 = vmatpush1.msra.mxu0 0.0
    %4115 = vmatprep.subr.mxu0 0.0
    %4116 = vmatpush1.msra.mxu0 0.0
    %4117 = vmatprep.subr.mxu0 0.0
    %4118 = vmatpush1.msra.mxu0 0.0
    %4119 = vmatprep.subr.mxu0 0.0
    %4120 = vmatpush1.msra.mxu0 0.0
    %4121 = vmatprep.mubr.f32.mxu0 0.0
    %4122 = vmatmul.mubr.f32.gmra.mrb[0].mxu0 %v4055
    %v4123 = vpop.f32.mrb[0].mxu0
    %v4124 = vadd.f32 0.0, %v4123
    %v4125 = vpop.f32.mrb[0].mxu0
    %v4126 = vadd.f32 0.0, %v4125
    %4127 = vdwg.mxu0
    %4128 = vmatprep.subr.mxu0 0.0
    %4129 = vmatpush1.msra.mxu0 %v729
    %4130 = vmatprep.subr.mxu0 0.0
    %4131 = vmatpush1.msra.mxu0 %v732
    %4132 = vmatprep.subr.mxu0 0.0
    %4133 = vmatpush1.msra.mxu0 %v735
    %4134 = vmatprep.subr.mxu0 0.0
    %4135 = vmatpush1.msra.mxu0 %v738
    %4136 = vmatprep.subr.mxu0 0.0
    %4137 = vmatpush1.msra.mxu0 0.0
    %4138 = vmatprep.subr.mxu0 0.0
    %4139 = vmatpush1.msra.mxu0 0.0
    %4140 = vmatprep.subr.mxu0 0.0
    %4141 = vmatpush1.msra.mxu0 0.0
    %4142 = vmatprep.subr.mxu0 0.0
    %4143 = vmatpush1.msra.mxu0 0.0
    %4144 = vmatprep.subr.mxu0 0.0
    %4145 = vmatpush1.msra.mxu0 0.0
    %4146 = vmatprep.subr.mxu0 0.0
    %4147 = vmatpush1.msra.mxu0 0.0
    %4148 = vmatprep.subr.mxu0 0.0
    %4149 = vmatpush1.msra.mxu0 0.0
    %4150 = vmatprep.subr.mxu0 0.0
    %4151 = vmatpush1.msra.mxu0 0.0
    %4152 = vmatprep.subr.mxu0 0.0
    %4153 = vmatpush1.msra.mxu0 0.0
    %4154 = vmatprep.subr.mxu0 0.0
    %4155 = vmatpush1.msra.mxu0 0.0
    %4156 = vmatprep.subr.mxu0 0.0
    %4157 = vmatpush1.msra.mxu0 0.0
    %4158 = vmatprep.subr.mxu0 0.0
    %4159 = vmatpush1.msra.mxu0 0.0
    %4160 = vmatprep.subr.mxu0 0.0
    %4161 = vmatpush1.msra.mxu0 0.0
    %4162 = vmatprep.subr.mxu0 0.0
    %4163 = vmatpush1.msra.mxu0 0.0
    %4164 = vmatprep.subr.mxu0 0.0
    %4165 = vmatpush1.msra.mxu0 0.0
    %4166 = vmatprep.subr.mxu0 0.0
    %4167 = vmatpush1.msra.mxu0 0.0
    %4168 = vmatprep.subr.mxu0 0.0
    %4169 = vmatpush1.msra.mxu0 0.0
    %4170 = vmatprep.subr.mxu0 0.0
    %4171 = vmatpush1.msra.mxu0 0.0
    %4172 = vmatprep.subr.mxu0 0.0
    %4173 = vmatpush1.msra.mxu0 0.0
    %4174 = vmatprep.subr.mxu0 0.0
    %4175 = vmatpush1.msra.mxu0 0.0
    %4176 = vmatprep.subr.mxu0 0.0
    %4177 = vmatpush1.msra.mxu0 0.0
    %4178 = vmatprep.subr.mxu0 0.0
    %4179 = vmatpush1.msra.mxu0 0.0
    %4180 = vmatprep.subr.mxu0 0.0
    %4181 = vmatpush1.msra.mxu0 0.0
    %4182 = vmatprep.subr.mxu0 0.0
    %4183 = vmatpush1.msra.mxu0 0.0
    %4184 = vmatprep.subr.mxu0 0.0
    %4185 = vmatpush1.msra.mxu0 0.0
    %4186 = vmatprep.subr.mxu0 0.0
    %4187 = vmatpush1.msra.mxu0 0.0
    %4188 = vmatprep.subr.mxu0 0.0
    %4189 = vmatpush1.msra.mxu0 0.0
    %4190 = vmatprep.subr.mxu0 0.0
    %4191 = vmatpush1.msra.mxu0 0.0
    %4192 = vmatprep.mubr.f32.mxu0 0.0
    %4193 = vmatmul.mubr.f32.gmra.mrb[0].mxu0 %v4055
    %v4194 = vpop.f32.mrb[0].mxu0
    %v4195 = vadd.f32 0.0, %v4194
    %v4196 = vpop.f32.mrb[0].mxu0
    %4197 = vdwg.mxu0
    %v4198 = vadd.f32 %v3980, %v4124
    %v4199 = vadd.f32 %v3982, %v4126
    %v4200 = vxor.u32 %v4198, 2147483648
    %v4201 = vmul.f32 %v4200, 1.442695
    %v4202 = vpow.pop %v4201
    %v4203 = vadd.f32 %v4202, 1.0
    %v4204 = vrcp.pop %v4203
    %v4205 = vmul.f32 1.0, %v4204
    %v4206 = vxor.u32 %v4199, 2147483648
    %v4207 = vmul.f32 %v4206, 1.442695
    %v4208 = vpow.pop %v4207
    %v4209 = vadd.f32 %v4208, 1.0
    %v4210 = vrcp.pop %v4209
    %v4211 = vmul.f32 1.0, %v4210
    %v4212 = vadd.f32 %v4195, %v84
    %v4213 = vmul.f32 %v4205, %v4212
    %v4214 = vadd.f32 %v4051, %v4213
    %v4215 = vtanh.pop %v4214
    %v4216 = vsub.f32 %v3744, %v4215
    %v4217 = vmul.f32 %v4211, %v4216
    %v4218 = vadd.f32 %v4215, %v4217
    %v4219 = vld [vmem:[%s5 + $0x4] ss:$0 sm:$0xff]
    %v4220 = vld [vmem:[%s5 + $0x5] ss:$0 sm:$0xff]
    %v4221 = vsel %vm405, %v4218, 0.0
    %4222 = vadd.xlane.f32.xlu0 %v4221
    %v4223 = vpop.xlane.xlu0 %4222
    %v4224 = vrcp.pop 32.0
    %v4225 = vmul.f32 %v4223, %v4224
    %v4226 = vsub.f32 %v4218, %v4225
    %v4227 = vmul.f32 %v4226, %v4226
    %v4228 = vsel %vm405, %v4227, 0.0
    %4229 = vadd.xlane.f32.xlu0 %v4228
    %v4230 = vpop.xlane.xlu0 %4229
    %v4231 = vmul.f32 %v4230, %v4224
    %v4232 = vadd.f32 %v4231, 1e-05
    %v4233 = vrsqrt.pop %v4232
    %v4234 = vmul.f32 %v4226, %v4233
    %v4235 = vmul.f32 %v4234, %v4219
    %v4236 = vadd.f32 %v4235, %v4220
    %4237 = vst.msk [vmem:[#allocation9] sm:$0xff] %vm405, %v4236
    // Predicated region
    $region38: #{tpu_custom_call.1} parent=1 // pred_check
      _
    $region39: #{tpu_custom_call.1} parent=1 // pred_check_branch
      %4239 = sbr.rel (0) target = $region41
    $region40: #{tpu_custom_call.1} parent=1 // pred_region
      %s4241 = ssub.s32 128, 128
      %4242 = vsyncadd [#allocation5], %s4241
      %s4244 = sshll.u32 [#allocation9], 4
      %s4245 = int_to_ptr.vmem [resolvable:$true] %s4244
      %4247 = dma.vmem_to_hbm [thread:$0]  %s4245, 128, %s6, [#allocation5]
    $region41: #{tpu_custom_call.1} parent=1 // pred_fallthru
      _
    // Predicated region
    $region42: #{tpu_custom_call.1} parent=1 // pred_check
      _
    $region43: #{tpu_custom_call.1} parent=1 // pred_check_branch
      %4249 = sbr.rel (0) target = $region45
    $region44: #{tpu_custom_call.1} parent=1 // pred_region
      %4250 = dma.done [#allocation5], 128
    $region45: #{tpu_custom_call.1} parent=1 // pred_fallthru
      _
    %4251 = vsyncpa [#allocation4], 1
    %4252 = vsyncpa [#allocation7], 1
    %4253 = vsyncpa [#allocation5], 1

</llo_original>
